<compile_context>
chip_gen: v7x
topology: tpu7x:2x2x1
jax: 0.10.0
libtpu: 0.0.40
codegen_flags: <defaults>
</compile_context>

<pallas_src>
import functools

import jax
import jax.numpy as jnp
from jax import lax
from jax.experimental import pallas as pl
from jax.experimental.pallas import tpu as pltpu


# -----------------------------------------------------------------------------
# Fused Pallas kernel: 2 BiLSTM layers + Linear head, everything in VMEM/vregs.
# -----------------------------------------------------------------------------
def bilstm_fused_kernel(x_ref, wih1_ref, whh1_ref, b1_ref,
                        wih2_ref, whh2_ref, b2_ref,
                        wf_ref, bf_ref,
                        o_ref, *, T, B, H):
    """x_ref: (T*B, D) time-major rows.  o_ref: (T*B, O) time-major rows."""
    H4 = 4 * H

    def run_layer(xw, whh_blk):
        # xw:     (T*B, 8H) time-major precomputed input projection + bias.
        #         Columns [0:4H] feed the forward direction, [4H:8H] backward.
        # whh_blk:(2H, 8H) block-diagonal = blockdiag(W_hh_fwd, W_hh_bwd).
        zeros = jnp.zeros((B, H), jnp.float32)
        c_f, c_b = zeros, zeros
        h_cat = jnp.zeros((B, 2 * H), jnp.float32)   # [h_fwd | h_bwd]
        hf = [None] * T
        hb = [None] * T
        # Fully unrolled time loop (T is a small static constant): both
        # directions share one MXU matmul and one sigmoid/tanh pass per step.
        for s in range(T):
            tf = s
            tb = T - 1 - s
            # Contiguous static 2-row reads from the time-major slab.
            xw_step = jnp.concatenate(
                [xw[tf * B:(tf + 1) * B, :H4],     # fwd gates @ timestep tf
                 xw[tb * B:(tb + 1) * B, H4:]],    # bwd gates @ timestep tb
                axis=-1)                           # (B, 8H)
            gates = xw_step + jnp.dot(h_cat, whh_blk,
                                      preferred_element_type=jnp.float32)
            sig = jax.nn.sigmoid(gates)            # one EUP pass over (B, 8H)
            tnh = jnp.tanh(gates)                  # one EUP pass over (B, 8H)
            i_f, f_f = sig[:, 0 * H:1 * H], sig[:, 1 * H:2 * H]
            g_f, o_f = tnh[:, 2 * H:3 * H], sig[:, 3 * H:4 * H]
            i_b, f_b = sig[:, 4 * H:5 * H], sig[:, 5 * H:6 * H]
            g_b, o_b = tnh[:, 6 * H:7 * H], sig[:, 7 * H:8 * H]
            c_f = f_f * c_f + i_f * g_f
            c_b = f_b * c_b + i_b * g_b
            h_f = o_f * jnp.tanh(c_f)
            h_b = o_b * jnp.tanh(c_b)
            h_cat = jnp.concatenate([h_f, h_b], axis=-1)
            hf[tf] = h_f
            hb[tb] = h_b
        # Emit the layer output once, as a lane-dense time-major (T*B, 2H)
        # slab (pairs fwd/bwd hiddens of the SAME timestep per row block).
        rows = [jnp.concatenate([hf[t], hb[t]], axis=-1) for t in range(T)]
        return jnp.concatenate(rows, axis=0)

    # ---- Layer 1: input projection for both directions in one matmul ----
    x = x_ref[...]                                              # (T*B, D)
    xw1 = jnp.dot(x, wih1_ref[...],
                  preferred_element_type=jnp.float32) + b1_ref[...]
    y1 = run_layer(xw1, whh1_ref[...])                          # (T*B, 2H)

    # ---- Layer 2 (input = concat[fwd, bwd] of layer-1 output) ----
    xw2 = jnp.dot(y1, wih2_ref[...],
                  preferred_element_type=jnp.float32) + b2_ref[...]
    y2 = run_layer(xw2, whh2_ref[...])                          # (T*B, 2H)

    # ---- Final Linear head, fused as an epilogue ----
    o_ref[...] = jnp.dot(y2, wf_ref[...],
                         preferred_element_type=jnp.float32) + bf_ref[...]


# -----------------------------------------------------------------------------
# Wrapper: one grid-less pallas_call; all operands placed whole in VMEM.
# -----------------------------------------------------------------------------
def bilstm_forward(x_btd, params):
    """Mirrors Basic_BiLSTM.forward: x (B, T, D) -> (B, T, output_dim)."""
    B, T, D = x_btd.shape
    l1, l2 = params["layers"]
    H = l1["whh_f"].shape[0]
    O = params["final_w"].shape[1]

    # Time-major 2-D layout for the kernel (tiny one-time wrapper transpose).
    x_tm = jnp.transpose(x_btd, (1, 0, 2)).reshape(T * B, D)

    kernel = functools.partial(bilstm_fused_kernel, T=T, B=B, H=H)

    operands = (x_tm,
                l1["wih"], l1["whh_blk"], l1["b"],
                l2["wih"], l2["whh_blk"], l2["b"],
                params["final_w"], params["final_b"])

    out2d = pl.pallas_call(
        kernel,
        out_shape=jax.ShapeDtypeStruct((T * B, O), jnp.float32),
        in_specs=[pl.BlockSpec(memory_space=pltpu.MemorySpace.VMEM)
                  for _ in operands],
        out_specs=pl.BlockSpec(memory_space=pltpu.MemorySpace.VMEM),
    )(*operands)

    return jnp.transpose(out2d.reshape(T, B, O), (1, 0, 2))    # (B, T, O)


# -----------------------------------------------------------------------------
# Deterministic parameter init (PyTorch-style uniform(-1/sqrt(H), 1/sqrt(H))).
# Weights are pre-arranged for the fused kernel:
#   wih    : (in_dim, 8H) = [W_ih_fwd | W_ih_bwd], gate order (i, f, g, o)
#   whh_blk: (2H, 8H)      = blockdiag(W_hh_fwd, W_hh_bwd)
#   b      : (1, 8H)       = [b_ih_fwd + b_hh_fwd | b_ih_bwd + b_hh_bwd]
# (whh_f / whh_b are also kept for the pure-JAX reference.)
# -----------------------------------------------------------------------------
def init_params(key, input_dim, hidden, num_layers, output_dim):
    layers = []
    k = 1.0 / jnp.sqrt(jnp.float32(hidden))
    for layer in range(num_layers):
        in_dim = input_dim if layer == 0 else 2 * hidden
        per_dir = {}
        for direction in ("fwd", "bwd"):
            key, k1, k2, k3, k4 = jax.random.split(key, 5)
            w_ih = jax.random.uniform(k1, (in_dim, 4 * hidden),
                                      minval=-k, maxval=k, dtype=jnp.float32)
            w_hh = jax.random.uniform(k2, (hidden, 4 * hidden),
                                      minval=-k, maxval=k, dtype=jnp.float32)
            b_ih = jax.random.uniform(k3, (1, 4 * hidden),
                                      minval=-k, maxval=k, dtype=jnp.float32)
            b_hh = jax.random.uniform(k4, (1, 4 * hidden),
                                      minval=-k, maxval=k, dtype=jnp.float32)
            per_dir[direction] = (w_ih, w_hh, b_ih + b_hh)
        whh_f = per_dir["fwd"][1]
        whh_b = per_dir["bwd"][1]
        zpad = jnp.zeros((hidden, 4 * hidden), jnp.float32)
        whh_blk = jnp.concatenate(
            [jnp.concatenate([whh_f, zpad], axis=1),
             jnp.concatenate([zpad, whh_b], axis=1)], axis=0)
        layers.append({
            "wih": jnp.concatenate([per_dir["fwd"][0], per_dir["bwd"][0]],
                                   axis=1),
            "whh_f": whh_f,
            "whh_b": whh_b,
            "whh_blk": whh_blk,
            "b": jnp.concatenate([per_dir["fwd"][2], per_dir["bwd"][2]],
                                 axis=1),
        })
    key, k1, k2 = jax.random.split(key, 3)
    kf = 1.0 / jnp.sqrt(jnp.float32(2 * hidden))
    final_w = jax.random.uniform(k1, (2 * hidden, output_dim),
                                 minval=-kf, maxval=kf, dtype=jnp.float32)
    final_b = jax.random.uniform(k2, (1, output_dim),
                                 minval=-kf, maxval=kf, dtype=jnp.float32)
    return {"layers": layers, "final_w": final_w, "final_b": final_b}


# -----------------------------------------------------------------------------
# Pure-JAX reference (same math) for a correctness check.
# -----------------------------------------------------------------------------
def ref_lstm_direction(x_tbd, w_ih, w_hh, b, reverse):
    _, B, _ = x_tbd.shape
    H = w_hh.shape[0]

    def step(carry, xt):
        h, c = carry
        gates = xt @ w_ih + h @ w_hh + b
        i = jax.nn.sigmoid(gates[:, :H])
        f = jax.nn.sigmoid(gates[:, H:2 * H])
        g = jnp.tanh(gates[:, 2 * H:3 * H])
        o = jax.nn.sigmoid(gates[:, 3 * H:])
        c = f * c + i * g
        h = o * jnp.tanh(c)
        return (h, c), h

    xs = x_tbd[::-1] if reverse else x_tbd
    h0 = jnp.zeros((B, H), jnp.float32)
    _, hs = lax.scan(step, (h0, h0), xs)
    return hs[::-1] if reverse else hs


def ref_forward(x_btd, params):
    h = jnp.transpose(x_btd, (1, 0, 2))               # (T, B, D)
    for layer in params["layers"]:
        H4 = layer["whh_f"].shape[1]
        wih_f, wih_b = layer["wih"][:, :H4], layer["wih"][:, H4:]
        b_f, b_b = layer["b"][:, :H4], layer["b"][:, H4:]
        yf = ref_lstm_direction(h, wih_f, layer["whh_f"], b_f, reverse=False)
        yb = ref_lstm_direction(h, wih_b, layer["whh_b"], b_b, reverse=True)
        h = jnp.concatenate([yf, yb], axis=-1)
    out = h @ params["final_w"] + params["final_b"]
    return jnp.transpose(out, (1, 0, 2))              # (B, T, O)


# -----------------------------------------------------------------------------
if __name__ == "__main__":
    B, T = 2, 8
    INPUT_DIM, HIDDEN, LAYERS, OUT_DIM = 38, 32, 2, 1

    key = jax.random.PRNGKey(0)
    key, xkey, pkey = jax.random.split(key, 3)
    x = jax.random.normal(xkey, (B, T, INPUT_DIM), dtype=jnp.float32)
    params = init_params(pkey, INPUT_DIM, HIDDEN, LAYERS, OUT_DIM)

    out = jax.block_until_ready(bilstm_forward(x, params))
    assert out.shape == (B, T, OUT_DIM), out.shape

    ref = jax.block_until_ready(ref_forward(x, params))
    assert jnp.allclose(out, ref, atol=1e-4, rtol=1e-4), \
        float(jnp.max(jnp.abs(out - ref)))

    print("KERNEL_OK")
</pallas_src>

<mosaic_0001>
module attributes {stable_mosaic.version = 11 : i64} {
  func.func @bilstm_fused_kernel(%arg0: memref<16x38xf32, #tpu.memory_space<vmem>>, %arg1: memref<38x256xf32, #tpu.memory_space<vmem>>, %arg2: memref<64x256xf32, #tpu.memory_space<vmem>>, %arg3: memref<1x256xf32, #tpu.memory_space<vmem>>, %arg4: memref<64x256xf32, #tpu.memory_space<vmem>>, %arg5: memref<64x256xf32, #tpu.memory_space<vmem>>, %arg6: memref<1x256xf32, #tpu.memory_space<vmem>>, %arg7: memref<64x1xf32, #tpu.memory_space<vmem>>, %arg8: memref<1x1xf32, #tpu.memory_space<vmem>>, %arg9: memref<16x1xf32, #tpu.memory_space<vmem>>) attributes {dimension_semantics = [], scalar_prefetch = 0 : i64, scratch_operands = 0 : i64, tpu.core_type = #tpu.core_type<tc>} {
    %c0 = arith.constant 0 : index
    %c0_0 = arith.constant 0 : index
    %0 = vector.load %arg0[%c0, %c0_0] : memref<16x38xf32, #tpu.memory_space<vmem>>, vector<16x38xf32>
    %c0_1 = arith.constant 0 : index
    %c0_2 = arith.constant 0 : index
    %1 = vector.load %arg1[%c0_1, %c0_2] : memref<38x256xf32, #tpu.memory_space<vmem>>, vector<38x256xf32>
    %cst = arith.constant dense<0.000000e+00> : vector<16x256xf32>
    %2 = tpu.matmul %0, %1, %cst {dimension_numbers = #tpu.dot_dimension_numbers<[1], [0], [0], [1], [0, 0, 1, 1], [], []>} : vector<16x38xf32>, vector<38x256xf32>, vector<16x256xf32> -> vector<16x256xf32>
    %c0_3 = arith.constant 0 : index
    %c0_4 = arith.constant 0 : index
    %3 = vector.load %arg3[%c0_3, %c0_4] : memref<1x256xf32, #tpu.memory_space<vmem>>, vector<1x256xf32>
    %4 = vector.broadcast %3 : vector<1x256xf32> to vector<16x256xf32>
    %5 = arith.addf %2, %4 : vector<16x256xf32>
    %c0_5 = arith.constant 0 : index
    %c0_6 = arith.constant 0 : index
    %6 = vector.load %arg2[%c0_5, %c0_6] : memref<64x256xf32, #tpu.memory_space<vmem>>, vector<64x256xf32>
    %cst_7 = arith.constant 0.000000e+00 : f32
    %7 = vector.broadcast %cst_7 : f32 to vector<2x32xf32>
    %cst_8 = arith.constant 0.000000e+00 : f32
    %8 = vector.broadcast %cst_8 : f32 to vector<2x64xf32>
    %9 = vector.extract_strided_slice %5 {offsets = [0, 0], sizes = [2, 128], strides = [1, 1]} : vector<16x256xf32> to vector<2x128xf32>
    %10 = vector.extract_strided_slice %5 {offsets = [14, 128], sizes = [2, 128], strides = [1, 1]} : vector<16x256xf32> to vector<2x128xf32>
    %11 = tpu.concatenate %9, %10 in 1 : vector<2x128xf32>, vector<2x128xf32> -> vector<2x256xf32>
    %cst_9 = arith.constant dense<0.000000e+00> : vector<2x256xf32>
    %12 = tpu.matmul %8, %6, %cst_9 {dimension_numbers = #tpu.dot_dimension_numbers<[1], [0], [0], [1], [0, 0, 1, 1], [], []>} : vector<2x64xf32>, vector<64x256xf32>, vector<2x256xf32> -> vector<2x256xf32>
    %13 = arith.addf %11, %12 : vector<2x256xf32>
    %14 = arith.negf %13 : vector<2x256xf32>
    %15 = math.exp %14 : vector<2x256xf32>
    %cst_10 = arith.constant 1.000000e+00 : f32
    %16 = vector.broadcast %cst_10 : f32 to vector<2x256xf32>
    %17 = arith.addf %16, %15 : vector<2x256xf32>
    %18 = arith.divf %16, %17 : vector<2x256xf32>
    %19 = math.tanh %13 : vector<2x256xf32>
    %20 = vector.extract_strided_slice %18 {offsets = [0, 0], sizes = [2, 32], strides = [1, 1]} : vector<2x256xf32> to vector<2x32xf32>
    %21 = vector.extract_strided_slice %18 {offsets = [0, 32], sizes = [2, 32], strides = [1, 1]} : vector<2x256xf32> to vector<2x32xf32>
    %22 = vector.extract_strided_slice %19 {offsets = [0, 64], sizes = [2, 32], strides = [1, 1]} : vector<2x256xf32> to vector<2x32xf32>
    %23 = vector.extract_strided_slice %18 {offsets = [0, 96], sizes = [2, 32], strides = [1, 1]} : vector<2x256xf32> to vector<2x32xf32>
    %24 = vector.extract_strided_slice %18 {offsets = [0, 128], sizes = [2, 32], strides = [1, 1]} : vector<2x256xf32> to vector<2x32xf32>
    %25 = vector.extract_strided_slice %18 {offsets = [0, 160], sizes = [2, 32], strides = [1, 1]} : vector<2x256xf32> to vector<2x32xf32>
    %26 = vector.extract_strided_slice %19 {offsets = [0, 192], sizes = [2, 32], strides = [1, 1]} : vector<2x256xf32> to vector<2x32xf32>
    %27 = vector.extract_strided_slice %18 {offsets = [0, 224], sizes = [2, 32], strides = [1, 1]} : vector<2x256xf32> to vector<2x32xf32>
    %28 = arith.mulf %21, %7 : vector<2x32xf32>
    %29 = arith.mulf %20, %22 : vector<2x32xf32>
    %30 = arith.addf %28, %29 : vector<2x32xf32>
    %31 = arith.mulf %25, %7 : vector<2x32xf32>
    %32 = arith.mulf %24, %26 : vector<2x32xf32>
    %33 = arith.addf %31, %32 : vector<2x32xf32>
    %34 = math.tanh %30 : vector<2x32xf32>
    %35 = arith.mulf %23, %34 : vector<2x32xf32>
    %36 = math.tanh %33 : vector<2x32xf32>
    %37 = arith.mulf %27, %36 : vector<2x32xf32>
    %38 = tpu.concatenate %35, %37 in 1 : vector<2x32xf32>, vector<2x32xf32> -> vector<2x64xf32>
    %39 = vector.extract_strided_slice %5 {offsets = [2, 0], sizes = [2, 128], strides = [1, 1]} : vector<16x256xf32> to vector<2x128xf32>
    %40 = vector.extract_strided_slice %5 {offsets = [12, 128], sizes = [2, 128], strides = [1, 1]} : vector<16x256xf32> to vector<2x128xf32>
    %41 = tpu.concatenate %39, %40 in 1 : vector<2x128xf32>, vector<2x128xf32> -> vector<2x256xf32>
    %cst_11 = arith.constant dense<0.000000e+00> : vector<2x256xf32>
    %42 = tpu.matmul %38, %6, %cst_11 {dimension_numbers = #tpu.dot_dimension_numbers<[1], [0], [0], [1], [0, 0, 1, 1], [], []>} : vector<2x64xf32>, vector<64x256xf32>, vector<2x256xf32> -> vector<2x256xf32>
    %43 = arith.addf %41, %42 : vector<2x256xf32>
    %44 = arith.negf %43 : vector<2x256xf32>
    %45 = math.exp %44 : vector<2x256xf32>
    %cst_12 = arith.constant 1.000000e+00 : f32
    %46 = vector.broadcast %cst_12 : f32 to vector<2x256xf32>
    %47 = arith.addf %46, %45 : vector<2x256xf32>
    %48 = arith.divf %46, %47 : vector<2x256xf32>
    %49 = math.tanh %43 : vector<2x256xf32>
    %50 = vector.extract_strided_slice %48 {offsets = [0, 0], sizes = [2, 32], strides = [1, 1]} : vector<2x256xf32> to vector<2x32xf32>
    %51 = vector.extract_strided_slice %48 {offsets = [0, 32], sizes = [2, 32], strides = [1, 1]} : vector<2x256xf32> to vector<2x32xf32>
    %52 = vector.extract_strided_slice %49 {offsets = [0, 64], sizes = [2, 32], strides = [1, 1]} : vector<2x256xf32> to vector<2x32xf32>
    %53 = vector.extract_strided_slice %48 {offsets = [0, 96], sizes = [2, 32], strides = [1, 1]} : vector<2x256xf32> to vector<2x32xf32>
    %54 = vector.extract_strided_slice %48 {offsets = [0, 128], sizes = [2, 32], strides = [1, 1]} : vector<2x256xf32> to vector<2x32xf32>
    %55 = vector.extract_strided_slice %48 {offsets = [0, 160], sizes = [2, 32], strides = [1, 1]} : vector<2x256xf32> to vector<2x32xf32>
    %56 = vector.extract_strided_slice %49 {offsets = [0, 192], sizes = [2, 32], strides = [1, 1]} : vector<2x256xf32> to vector<2x32xf32>
    %57 = vector.extract_strided_slice %48 {offsets = [0, 224], sizes = [2, 32], strides = [1, 1]} : vector<2x256xf32> to vector<2x32xf32>
    %58 = arith.mulf %51, %30 : vector<2x32xf32>
    %59 = arith.mulf %50, %52 : vector<2x32xf32>
    %60 = arith.addf %58, %59 : vector<2x32xf32>
    %61 = arith.mulf %55, %33 : vector<2x32xf32>
    %62 = arith.mulf %54, %56 : vector<2x32xf32>
    %63 = arith.addf %61, %62 : vector<2x32xf32>
    %64 = math.tanh %60 : vector<2x32xf32>
    %65 = arith.mulf %53, %64 : vector<2x32xf32>
    %66 = math.tanh %63 : vector<2x32xf32>
    %67 = arith.mulf %57, %66 : vector<2x32xf32>
    %68 = tpu.concatenate %65, %67 in 1 : vector<2x32xf32>, vector<2x32xf32> -> vector<2x64xf32>
    %69 = vector.extract_strided_slice %5 {offsets = [4, 0], sizes = [2, 128], strides = [1, 1]} : vector<16x256xf32> to vector<2x128xf32>
    %70 = vector.extract_strided_slice %5 {offsets = [10, 128], sizes = [2, 128], strides = [1, 1]} : vector<16x256xf32> to vector<2x128xf32>
    %71 = tpu.concatenate %69, %70 in 1 : vector<2x128xf32>, vector<2x128xf32> -> vector<2x256xf32>
    %cst_13 = arith.constant dense<0.000000e+00> : vector<2x256xf32>
    %72 = tpu.matmul %68, %6, %cst_13 {dimension_numbers = #tpu.dot_dimension_numbers<[1], [0], [0], [1], [0, 0, 1, 1], [], []>} : vector<2x64xf32>, vector<64x256xf32>, vector<2x256xf32> -> vector<2x256xf32>
    %73 = arith.addf %71, %72 : vector<2x256xf32>
    %74 = arith.negf %73 : vector<2x256xf32>
    %75 = math.exp %74 : vector<2x256xf32>
    %cst_14 = arith.constant 1.000000e+00 : f32
    %76 = vector.broadcast %cst_14 : f32 to vector<2x256xf32>
    %77 = arith.addf %76, %75 : vector<2x256xf32>
    %78 = arith.divf %76, %77 : vector<2x256xf32>
    %79 = math.tanh %73 : vector<2x256xf32>
    %80 = vector.extract_strided_slice %78 {offsets = [0, 0], sizes = [2, 32], strides = [1, 1]} : vector<2x256xf32> to vector<2x32xf32>
    %81 = vector.extract_strided_slice %78 {offsets = [0, 32], sizes = [2, 32], strides = [1, 1]} : vector<2x256xf32> to vector<2x32xf32>
    %82 = vector.extract_strided_slice %79 {offsets = [0, 64], sizes = [2, 32], strides = [1, 1]} : vector<2x256xf32> to vector<2x32xf32>
    %83 = vector.extract_strided_slice %78 {offsets = [0, 96], sizes = [2, 32], strides = [1, 1]} : vector<2x256xf32> to vector<2x32xf32>
    %84 = vector.extract_strided_slice %78 {offsets = [0, 128], sizes = [2, 32], strides = [1, 1]} : vector<2x256xf32> to vector<2x32xf32>
    %85 = vector.extract_strided_slice %78 {offsets = [0, 160], sizes = [2, 32], strides = [1, 1]} : vector<2x256xf32> to vector<2x32xf32>
    %86 = vector.extract_strided_slice %79 {offsets = [0, 192], sizes = [2, 32], strides = [1, 1]} : vector<2x256xf32> to vector<2x32xf32>
    %87 = vector.extract_strided_slice %78 {offsets = [0, 224], sizes = [2, 32], strides = [1, 1]} : vector<2x256xf32> to vector<2x32xf32>
    %88 = arith.mulf %81, %60 : vector<2x32xf32>
    %89 = arith.mulf %80, %82 : vector<2x32xf32>
    %90 = arith.addf %88, %89 : vector<2x32xf32>
    %91 = arith.mulf %85, %63 : vector<2x32xf32>
    %92 = arith.mulf %84, %86 : vector<2x32xf32>
    %93 = arith.addf %91, %92 : vector<2x32xf32>
    %94 = math.tanh %90 : vector<2x32xf32>
    %95 = arith.mulf %83, %94 : vector<2x32xf32>
    %96 = math.tanh %93 : vector<2x32xf32>
    %97 = arith.mulf %87, %96 : vector<2x32xf32>
    %98 = tpu.concatenate %95, %97 in 1 : vector<2x32xf32>, vector<2x32xf32> -> vector<2x64xf32>
    %99 = vector.extract_strided_slice %5 {offsets = [6, 0], sizes = [2, 128], strides = [1, 1]} : vector<16x256xf32> to vector<2x128xf32>
    %100 = vector.extract_strided_slice %5 {offsets = [8, 128], sizes = [2, 128], strides = [1, 1]} : vector<16x256xf32> to vector<2x128xf32>
    %101 = tpu.concatenate %99, %100 in 1 : vector<2x128xf32>, vector<2x128xf32> -> vector<2x256xf32>
    %cst_15 = arith.constant dense<0.000000e+00> : vector<2x256xf32>
    %102 = tpu.matmul %98, %6, %cst_15 {dimension_numbers = #tpu.dot_dimension_numbers<[1], [0], [0], [1], [0, 0, 1, 1], [], []>} : vector<2x64xf32>, vector<64x256xf32>, vector<2x256xf32> -> vector<2x256xf32>
    %103 = arith.addf %101, %102 : vector<2x256xf32>
    %104 = arith.negf %103 : vector<2x256xf32>
    %105 = math.exp %104 : vector<2x256xf32>
    %cst_16 = arith.constant 1.000000e+00 : f32
    %106 = vector.broadcast %cst_16 : f32 to vector<2x256xf32>
    %107 = arith.addf %106, %105 : vector<2x256xf32>
    %108 = arith.divf %106, %107 : vector<2x256xf32>
    %109 = math.tanh %103 : vector<2x256xf32>
    %110 = vector.extract_strided_slice %108 {offsets = [0, 0], sizes = [2, 32], strides = [1, 1]} : vector<2x256xf32> to vector<2x32xf32>
    %111 = vector.extract_strided_slice %108 {offsets = [0, 32], sizes = [2, 32], strides = [1, 1]} : vector<2x256xf32> to vector<2x32xf32>
    %112 = vector.extract_strided_slice %109 {offsets = [0, 64], sizes = [2, 32], strides = [1, 1]} : vector<2x256xf32> to vector<2x32xf32>
    %113 = vector.extract_strided_slice %108 {offsets = [0, 96], sizes = [2, 32], strides = [1, 1]} : vector<2x256xf32> to vector<2x32xf32>
    %114 = vector.extract_strided_slice %108 {offsets = [0, 128], sizes = [2, 32], strides = [1, 1]} : vector<2x256xf32> to vector<2x32xf32>
    %115 = vector.extract_strided_slice %108 {offsets = [0, 160], sizes = [2, 32], strides = [1, 1]} : vector<2x256xf32> to vector<2x32xf32>
    %116 = vector.extract_strided_slice %109 {offsets = [0, 192], sizes = [2, 32], strides = [1, 1]} : vector<2x256xf32> to vector<2x32xf32>
    %117 = vector.extract_strided_slice %108 {offsets = [0, 224], sizes = [2, 32], strides = [1, 1]} : vector<2x256xf32> to vector<2x32xf32>
    %118 = arith.mulf %111, %90 : vector<2x32xf32>
    %119 = arith.mulf %110, %112 : vector<2x32xf32>
    %120 = arith.addf %118, %119 : vector<2x32xf32>
    %121 = arith.mulf %115, %93 : vector<2x32xf32>
    %122 = arith.mulf %114, %116 : vector<2x32xf32>
    %123 = arith.addf %121, %122 : vector<2x32xf32>
    %124 = math.tanh %120 : vector<2x32xf32>
    %125 = arith.mulf %113, %124 : vector<2x32xf32>
    %126 = math.tanh %123 : vector<2x32xf32>
    %127 = arith.mulf %117, %126 : vector<2x32xf32>
    %128 = tpu.concatenate %125, %127 in 1 : vector<2x32xf32>, vector<2x32xf32> -> vector<2x64xf32>
    %129 = vector.extract_strided_slice %5 {offsets = [8, 0], sizes = [2, 128], strides = [1, 1]} : vector<16x256xf32> to vector<2x128xf32>
    %130 = vector.extract_strided_slice %5 {offsets = [6, 128], sizes = [2, 128], strides = [1, 1]} : vector<16x256xf32> to vector<2x128xf32>
    %131 = tpu.concatenate %129, %130 in 1 : vector<2x128xf32>, vector<2x128xf32> -> vector<2x256xf32>
    %cst_17 = arith.constant dense<0.000000e+00> : vector<2x256xf32>
    %132 = tpu.matmul %128, %6, %cst_17 {dimension_numbers = #tpu.dot_dimension_numbers<[1], [0], [0], [1], [0, 0, 1, 1], [], []>} : vector<2x64xf32>, vector<64x256xf32>, vector<2x256xf32> -> vector<2x256xf32>
    %133 = arith.addf %131, %132 : vector<2x256xf32>
    %134 = arith.negf %133 : vector<2x256xf32>
    %135 = math.exp %134 : vector<2x256xf32>
    %cst_18 = arith.constant 1.000000e+00 : f32
    %136 = vector.broadcast %cst_18 : f32 to vector<2x256xf32>
    %137 = arith.addf %136, %135 : vector<2x256xf32>
    %138 = arith.divf %136, %137 : vector<2x256xf32>
    %139 = math.tanh %133 : vector<2x256xf32>
    %140 = vector.extract_strided_slice %138 {offsets = [0, 0], sizes = [2, 32], strides = [1, 1]} : vector<2x256xf32> to vector<2x32xf32>
    %141 = vector.extract_strided_slice %138 {offsets = [0, 32], sizes = [2, 32], strides = [1, 1]} : vector<2x256xf32> to vector<2x32xf32>
    %142 = vector.extract_strided_slice %139 {offsets = [0, 64], sizes = [2, 32], strides = [1, 1]} : vector<2x256xf32> to vector<2x32xf32>
    %143 = vector.extract_strided_slice %138 {offsets = [0, 96], sizes = [2, 32], strides = [1, 1]} : vector<2x256xf32> to vector<2x32xf32>
    %144 = vector.extract_strided_slice %138 {offsets = [0, 128], sizes = [2, 32], strides = [1, 1]} : vector<2x256xf32> to vector<2x32xf32>
    %145 = vector.extract_strided_slice %138 {offsets = [0, 160], sizes = [2, 32], strides = [1, 1]} : vector<2x256xf32> to vector<2x32xf32>
    %146 = vector.extract_strided_slice %139 {offsets = [0, 192], sizes = [2, 32], strides = [1, 1]} : vector<2x256xf32> to vector<2x32xf32>
    %147 = vector.extract_strided_slice %138 {offsets = [0, 224], sizes = [2, 32], strides = [1, 1]} : vector<2x256xf32> to vector<2x32xf32>
    %148 = arith.mulf %141, %120 : vector<2x32xf32>
    %149 = arith.mulf %140, %142 : vector<2x32xf32>
    %150 = arith.addf %148, %149 : vector<2x32xf32>
    %151 = arith.mulf %145, %123 : vector<2x32xf32>
    %152 = arith.mulf %144, %146 : vector<2x32xf32>
    %153 = arith.addf %151, %152 : vector<2x32xf32>
    %154 = math.tanh %150 : vector<2x32xf32>
    %155 = arith.mulf %143, %154 : vector<2x32xf32>
    %156 = math.tanh %153 : vector<2x32xf32>
    %157 = arith.mulf %147, %156 : vector<2x32xf32>
    %158 = tpu.concatenate %155, %157 in 1 : vector<2x32xf32>, vector<2x32xf32> -> vector<2x64xf32>
    %159 = vector.extract_strided_slice %5 {offsets = [10, 0], sizes = [2, 128], strides = [1, 1]} : vector<16x256xf32> to vector<2x128xf32>
    %160 = vector.extract_strided_slice %5 {offsets = [4, 128], sizes = [2, 128], strides = [1, 1]} : vector<16x256xf32> to vector<2x128xf32>
    %161 = tpu.concatenate %159, %160 in 1 : vector<2x128xf32>, vector<2x128xf32> -> vector<2x256xf32>
    %cst_19 = arith.constant dense<0.000000e+00> : vector<2x256xf32>
    %162 = tpu.matmul %158, %6, %cst_19 {dimension_numbers = #tpu.dot_dimension_numbers<[1], [0], [0], [1], [0, 0, 1, 1], [], []>} : vector<2x64xf32>, vector<64x256xf32>, vector<2x256xf32> -> vector<2x256xf32>
    %163 = arith.addf %161, %162 : vector<2x256xf32>
    %164 = arith.negf %163 : vector<2x256xf32>
    %165 = math.exp %164 : vector<2x256xf32>
    %cst_20 = arith.constant 1.000000e+00 : f32
    %166 = vector.broadcast %cst_20 : f32 to vector<2x256xf32>
    %167 = arith.addf %166, %165 : vector<2x256xf32>
    %168 = arith.divf %166, %167 : vector<2x256xf32>
    %169 = math.tanh %163 : vector<2x256xf32>
    %170 = vector.extract_strided_slice %168 {offsets = [0, 0], sizes = [2, 32], strides = [1, 1]} : vector<2x256xf32> to vector<2x32xf32>
    %171 = vector.extract_strided_slice %168 {offsets = [0, 32], sizes = [2, 32], strides = [1, 1]} : vector<2x256xf32> to vector<2x32xf32>
    %172 = vector.extract_strided_slice %169 {offsets = [0, 64], sizes = [2, 32], strides = [1, 1]} : vector<2x256xf32> to vector<2x32xf32>
    %173 = vector.extract_strided_slice %168 {offsets = [0, 96], sizes = [2, 32], strides = [1, 1]} : vector<2x256xf32> to vector<2x32xf32>
    %174 = vector.extract_strided_slice %168 {offsets = [0, 128], sizes = [2, 32], strides = [1, 1]} : vector<2x256xf32> to vector<2x32xf32>
    %175 = vector.extract_strided_slice %168 {offsets = [0, 160], sizes = [2, 32], strides = [1, 1]} : vector<2x256xf32> to vector<2x32xf32>
    %176 = vector.extract_strided_slice %169 {offsets = [0, 192], sizes = [2, 32], strides = [1, 1]} : vector<2x256xf32> to vector<2x32xf32>
    %177 = vector.extract_strided_slice %168 {offsets = [0, 224], sizes = [2, 32], strides = [1, 1]} : vector<2x256xf32> to vector<2x32xf32>
    %178 = arith.mulf %171, %150 : vector<2x32xf32>
    %179 = arith.mulf %170, %172 : vector<2x32xf32>
    %180 = arith.addf %178, %179 : vector<2x32xf32>
    %181 = arith.mulf %175, %153 : vector<2x32xf32>
    %182 = arith.mulf %174, %176 : vector<2x32xf32>
    %183 = arith.addf %181, %182 : vector<2x32xf32>
    %184 = math.tanh %180 : vector<2x32xf32>
    %185 = arith.mulf %173, %184 : vector<2x32xf32>
    %186 = math.tanh %183 : vector<2x32xf32>
    %187 = arith.mulf %177, %186 : vector<2x32xf32>
    %188 = tpu.concatenate %185, %187 in 1 : vector<2x32xf32>, vector<2x32xf32> -> vector<2x64xf32>
    %189 = vector.extract_strided_slice %5 {offsets = [12, 0], sizes = [2, 128], strides = [1, 1]} : vector<16x256xf32> to vector<2x128xf32>
    %190 = vector.extract_strided_slice %5 {offsets = [2, 128], sizes = [2, 128], strides = [1, 1]} : vector<16x256xf32> to vector<2x128xf32>
    %191 = tpu.concatenate %189, %190 in 1 : vector<2x128xf32>, vector<2x128xf32> -> vector<2x256xf32>
    %cst_21 = arith.constant dense<0.000000e+00> : vector<2x256xf32>
    %192 = tpu.matmul %188, %6, %cst_21 {dimension_numbers = #tpu.dot_dimension_numbers<[1], [0], [0], [1], [0, 0, 1, 1], [], []>} : vector<2x64xf32>, vector<64x256xf32>, vector<2x256xf32> -> vector<2x256xf32>
    %193 = arith.addf %191, %192 : vector<2x256xf32>
    %194 = arith.negf %193 : vector<2x256xf32>
    %195 = math.exp %194 : vector<2x256xf32>
    %cst_22 = arith.constant 1.000000e+00 : f32
    %196 = vector.broadcast %cst_22 : f32 to vector<2x256xf32>
    %197 = arith.addf %196, %195 : vector<2x256xf32>
    %198 = arith.divf %196, %197 : vector<2x256xf32>
    %199 = math.tanh %193 : vector<2x256xf32>
    %200 = vector.extract_strided_slice %198 {offsets = [0, 0], sizes = [2, 32], strides = [1, 1]} : vector<2x256xf32> to vector<2x32xf32>
    %201 = vector.extract_strided_slice %198 {offsets = [0, 32], sizes = [2, 32], strides = [1, 1]} : vector<2x256xf32> to vector<2x32xf32>
    %202 = vector.extract_strided_slice %199 {offsets = [0, 64], sizes = [2, 32], strides = [1, 1]} : vector<2x256xf32> to vector<2x32xf32>
    %203 = vector.extract_strided_slice %198 {offsets = [0, 96], sizes = [2, 32], strides = [1, 1]} : vector<2x256xf32> to vector<2x32xf32>
    %204 = vector.extract_strided_slice %198 {offsets = [0, 128], sizes = [2, 32], strides = [1, 1]} : vector<2x256xf32> to vector<2x32xf32>
    %205 = vector.extract_strided_slice %198 {offsets = [0, 160], sizes = [2, 32], strides = [1, 1]} : vector<2x256xf32> to vector<2x32xf32>
    %206 = vector.extract_strided_slice %199 {offsets = [0, 192], sizes = [2, 32], strides = [1, 1]} : vector<2x256xf32> to vector<2x32xf32>
    %207 = vector.extract_strided_slice %198 {offsets = [0, 224], sizes = [2, 32], strides = [1, 1]} : vector<2x256xf32> to vector<2x32xf32>
    %208 = arith.mulf %201, %180 : vector<2x32xf32>
    %209 = arith.mulf %200, %202 : vector<2x32xf32>
    %210 = arith.addf %208, %209 : vector<2x32xf32>
    %211 = arith.mulf %205, %183 : vector<2x32xf32>
    %212 = arith.mulf %204, %206 : vector<2x32xf32>
    %213 = arith.addf %211, %212 : vector<2x32xf32>
    %214 = math.tanh %210 : vector<2x32xf32>
    %215 = arith.mulf %203, %214 : vector<2x32xf32>
    %216 = math.tanh %213 : vector<2x32xf32>
    %217 = arith.mulf %207, %216 : vector<2x32xf32>
    %218 = tpu.concatenate %215, %217 in 1 : vector<2x32xf32>, vector<2x32xf32> -> vector<2x64xf32>
    %219 = vector.extract_strided_slice %5 {offsets = [14, 0], sizes = [2, 128], strides = [1, 1]} : vector<16x256xf32> to vector<2x128xf32>
    %220 = vector.extract_strided_slice %5 {offsets = [0, 128], sizes = [2, 128], strides = [1, 1]} : vector<16x256xf32> to vector<2x128xf32>
    %221 = tpu.concatenate %219, %220 in 1 : vector<2x128xf32>, vector<2x128xf32> -> vector<2x256xf32>
    %cst_23 = arith.constant dense<0.000000e+00> : vector<2x256xf32>
    %222 = tpu.matmul %218, %6, %cst_23 {dimension_numbers = #tpu.dot_dimension_numbers<[1], [0], [0], [1], [0, 0, 1, 1], [], []>} : vector<2x64xf32>, vector<64x256xf32>, vector<2x256xf32> -> vector<2x256xf32>
    %223 = arith.addf %221, %222 : vector<2x256xf32>
    %224 = arith.negf %223 : vector<2x256xf32>
    %225 = math.exp %224 : vector<2x256xf32>
    %cst_24 = arith.constant 1.000000e+00 : f32
    %226 = vector.broadcast %cst_24 : f32 to vector<2x256xf32>
    %227 = arith.addf %226, %225 : vector<2x256xf32>
    %228 = arith.divf %226, %227 : vector<2x256xf32>
    %229 = math.tanh %223 : vector<2x256xf32>
    %230 = vector.extract_strided_slice %228 {offsets = [0, 0], sizes = [2, 32], strides = [1, 1]} : vector<2x256xf32> to vector<2x32xf32>
    %231 = vector.extract_strided_slice %228 {offsets = [0, 32], sizes = [2, 32], strides = [1, 1]} : vector<2x256xf32> to vector<2x32xf32>
    %232 = vector.extract_strided_slice %229 {offsets = [0, 64], sizes = [2, 32], strides = [1, 1]} : vector<2x256xf32> to vector<2x32xf32>
    %233 = vector.extract_strided_slice %228 {offsets = [0, 96], sizes = [2, 32], strides = [1, 1]} : vector<2x256xf32> to vector<2x32xf32>
    %234 = vector.extract_strided_slice %228 {offsets = [0, 128], sizes = [2, 32], strides = [1, 1]} : vector<2x256xf32> to vector<2x32xf32>
    %235 = vector.extract_strided_slice %228 {offsets = [0, 160], sizes = [2, 32], strides = [1, 1]} : vector<2x256xf32> to vector<2x32xf32>
    %236 = vector.extract_strided_slice %229 {offsets = [0, 192], sizes = [2, 32], strides = [1, 1]} : vector<2x256xf32> to vector<2x32xf32>
    %237 = vector.extract_strided_slice %228 {offsets = [0, 224], sizes = [2, 32], strides = [1, 1]} : vector<2x256xf32> to vector<2x32xf32>
    %238 = arith.mulf %231, %210 : vector<2x32xf32>
    %239 = arith.mulf %230, %232 : vector<2x32xf32>
    %240 = arith.addf %238, %239 : vector<2x32xf32>
    %241 = arith.mulf %235, %213 : vector<2x32xf32>
    %242 = arith.mulf %234, %236 : vector<2x32xf32>
    %243 = arith.addf %241, %242 : vector<2x32xf32>
    %244 = math.tanh %240 : vector<2x32xf32>
    %245 = arith.mulf %233, %244 : vector<2x32xf32>
    %246 = math.tanh %243 : vector<2x32xf32>
    %247 = arith.mulf %237, %246 : vector<2x32xf32>
    %248 = tpu.concatenate %35, %247 in 1 : vector<2x32xf32>, vector<2x32xf32> -> vector<2x64xf32>
    %249 = tpu.concatenate %65, %217 in 1 : vector<2x32xf32>, vector<2x32xf32> -> vector<2x64xf32>
    %250 = tpu.concatenate %95, %187 in 1 : vector<2x32xf32>, vector<2x32xf32> -> vector<2x64xf32>
    %251 = tpu.concatenate %125, %157 in 1 : vector<2x32xf32>, vector<2x32xf32> -> vector<2x64xf32>
    %252 = tpu.concatenate %155, %127 in 1 : vector<2x32xf32>, vector<2x32xf32> -> vector<2x64xf32>
    %253 = tpu.concatenate %185, %97 in 1 : vector<2x32xf32>, vector<2x32xf32> -> vector<2x64xf32>
    %254 = tpu.concatenate %215, %67 in 1 : vector<2x32xf32>, vector<2x32xf32> -> vector<2x64xf32>
    %255 = tpu.concatenate %245, %37 in 1 : vector<2x32xf32>, vector<2x32xf32> -> vector<2x64xf32>
    %256 = tpu.concatenate %248, %249, %250, %251, %252, %253, %254, %255 in 0 : vector<2x64xf32>, vector<2x64xf32>, vector<2x64xf32>, vector<2x64xf32>, vector<2x64xf32>, vector<2x64xf32>, vector<2x64xf32>, vector<2x64xf32> -> vector<16x64xf32>
    %c0_25 = arith.constant 0 : index
    %c0_26 = arith.constant 0 : index
    %257 = vector.load %arg4[%c0_25, %c0_26] : memref<64x256xf32, #tpu.memory_space<vmem>>, vector<64x256xf32>
    %cst_27 = arith.constant dense<0.000000e+00> : vector<16x256xf32>
    %258 = tpu.matmul %256, %257, %cst_27 {dimension_numbers = #tpu.dot_dimension_numbers<[1], [0], [0], [1], [0, 0, 1, 1], [], []>} : vector<16x64xf32>, vector<64x256xf32>, vector<16x256xf32> -> vector<16x256xf32>
    %c0_28 = arith.constant 0 : index
    %c0_29 = arith.constant 0 : index
    %259 = vector.load %arg6[%c0_28, %c0_29] : memref<1x256xf32, #tpu.memory_space<vmem>>, vector<1x256xf32>
    %260 = vector.broadcast %259 : vector<1x256xf32> to vector<16x256xf32>
    %261 = arith.addf %258, %260 : vector<16x256xf32>
    %c0_30 = arith.constant 0 : index
    %c0_31 = arith.constant 0 : index
    %262 = vector.load %arg5[%c0_30, %c0_31] : memref<64x256xf32, #tpu.memory_space<vmem>>, vector<64x256xf32>
    %cst_32 = arith.constant 0.000000e+00 : f32
    %263 = vector.broadcast %cst_32 : f32 to vector<2x32xf32>
    %cst_33 = arith.constant 0.000000e+00 : f32
    %264 = vector.broadcast %cst_33 : f32 to vector<2x64xf32>
    %265 = vector.extract_strided_slice %261 {offsets = [0, 0], sizes = [2, 128], strides = [1, 1]} : vector<16x256xf32> to vector<2x128xf32>
    %266 = vector.extract_strided_slice %261 {offsets = [14, 128], sizes = [2, 128], strides = [1, 1]} : vector<16x256xf32> to vector<2x128xf32>
    %267 = tpu.concatenate %265, %266 in 1 : vector<2x128xf32>, vector<2x128xf32> -> vector<2x256xf32>
    %cst_34 = arith.constant dense<0.000000e+00> : vector<2x256xf32>
    %268 = tpu.matmul %264, %262, %cst_34 {dimension_numbers = #tpu.dot_dimension_numbers<[1], [0], [0], [1], [0, 0, 1, 1], [], []>} : vector<2x64xf32>, vector<64x256xf32>, vector<2x256xf32> -> vector<2x256xf32>
    %269 = arith.addf %267, %268 : vector<2x256xf32>
    %270 = arith.negf %269 : vector<2x256xf32>
    %271 = math.exp %270 : vector<2x256xf32>
    %cst_35 = arith.constant 1.000000e+00 : f32
    %272 = vector.broadcast %cst_35 : f32 to vector<2x256xf32>
    %273 = arith.addf %272, %271 : vector<2x256xf32>
    %274 = arith.divf %272, %273 : vector<2x256xf32>
    %275 = math.tanh %269 : vector<2x256xf32>
    %276 = vector.extract_strided_slice %274 {offsets = [0, 0], sizes = [2, 32], strides = [1, 1]} : vector<2x256xf32> to vector<2x32xf32>
    %277 = vector.extract_strided_slice %274 {offsets = [0, 32], sizes = [2, 32], strides = [1, 1]} : vector<2x256xf32> to vector<2x32xf32>
    %278 = vector.extract_strided_slice %275 {offsets = [0, 64], sizes = [2, 32], strides = [1, 1]} : vector<2x256xf32> to vector<2x32xf32>
    %279 = vector.extract_strided_slice %274 {offsets = [0, 96], sizes = [2, 32], strides = [1, 1]} : vector<2x256xf32> to vector<2x32xf32>
    %280 = vector.extract_strided_slice %274 {offsets = [0, 128], sizes = [2, 32], strides = [1, 1]} : vector<2x256xf32> to vector<2x32xf32>
    %281 = vector.extract_strided_slice %274 {offsets = [0, 160], sizes = [2, 32], strides = [1, 1]} : vector<2x256xf32> to vector<2x32xf32>
    %282 = vector.extract_strided_slice %275 {offsets = [0, 192], sizes = [2, 32], strides = [1, 1]} : vector<2x256xf32> to vector<2x32xf32>
    %283 = vector.extract_strided_slice %274 {offsets = [0, 224], sizes = [2, 32], strides = [1, 1]} : vector<2x256xf32> to vector<2x32xf32>
    %284 = arith.mulf %277, %263 : vector<2x32xf32>
    %285 = arith.mulf %276, %278 : vector<2x32xf32>
    %286 = arith.addf %284, %285 : vector<2x32xf32>
    %287 = arith.mulf %281, %263 : vector<2x32xf32>
    %288 = arith.mulf %280, %282 : vector<2x32xf32>
    %289 = arith.addf %287, %288 : vector<2x32xf32>
    %290 = math.tanh %286 : vector<2x32xf32>
    %291 = arith.mulf %279, %290 : vector<2x32xf32>
    %292 = math.tanh %289 : vector<2x32xf32>
    %293 = arith.mulf %283, %292 : vector<2x32xf32>
    %294 = tpu.concatenate %291, %293 in 1 : vector<2x32xf32>, vector<2x32xf32> -> vector<2x64xf32>
    %295 = vector.extract_strided_slice %261 {offsets = [2, 0], sizes = [2, 128], strides = [1, 1]} : vector<16x256xf32> to vector<2x128xf32>
    %296 = vector.extract_strided_slice %261 {offsets = [12, 128], sizes = [2, 128], strides = [1, 1]} : vector<16x256xf32> to vector<2x128xf32>
    %297 = tpu.concatenate %295, %296 in 1 : vector<2x128xf32>, vector<2x128xf32> -> vector<2x256xf32>
    %cst_36 = arith.constant dense<0.000000e+00> : vector<2x256xf32>
    %298 = tpu.matmul %294, %262, %cst_36 {dimension_numbers = #tpu.dot_dimension_numbers<[1], [0], [0], [1], [0, 0, 1, 1], [], []>} : vector<2x64xf32>, vector<64x256xf32>, vector<2x256xf32> -> vector<2x256xf32>
    %299 = arith.addf %297, %298 : vector<2x256xf32>
    %300 = arith.negf %299 : vector<2x256xf32>
    %301 = math.exp %300 : vector<2x256xf32>
    %cst_37 = arith.constant 1.000000e+00 : f32
    %302 = vector.broadcast %cst_37 : f32 to vector<2x256xf32>
    %303 = arith.addf %302, %301 : vector<2x256xf32>
    %304 = arith.divf %302, %303 : vector<2x256xf32>
    %305 = math.tanh %299 : vector<2x256xf32>
    %306 = vector.extract_strided_slice %304 {offsets = [0, 0], sizes = [2, 32], strides = [1, 1]} : vector<2x256xf32> to vector<2x32xf32>
    %307 = vector.extract_strided_slice %304 {offsets = [0, 32], sizes = [2, 32], strides = [1, 1]} : vector<2x256xf32> to vector<2x32xf32>
    %308 = vector.extract_strided_slice %305 {offsets = [0, 64], sizes = [2, 32], strides = [1, 1]} : vector<2x256xf32> to vector<2x32xf32>
    %309 = vector.extract_strided_slice %304 {offsets = [0, 96], sizes = [2, 32], strides = [1, 1]} : vector<2x256xf32> to vector<2x32xf32>
    %310 = vector.extract_strided_slice %304 {offsets = [0, 128], sizes = [2, 32], strides = [1, 1]} : vector<2x256xf32> to vector<2x32xf32>
    %311 = vector.extract_strided_slice %304 {offsets = [0, 160], sizes = [2, 32], strides = [1, 1]} : vector<2x256xf32> to vector<2x32xf32>
    %312 = vector.extract_strided_slice %305 {offsets = [0, 192], sizes = [2, 32], strides = [1, 1]} : vector<2x256xf32> to vector<2x32xf32>
    %313 = vector.extract_strided_slice %304 {offsets = [0, 224], sizes = [2, 32], strides = [1, 1]} : vector<2x256xf32> to vector<2x32xf32>
    %314 = arith.mulf %307, %286 : vector<2x32xf32>
    %315 = arith.mulf %306, %308 : vector<2x32xf32>
    %316 = arith.addf %314, %315 : vector<2x32xf32>
    %317 = arith.mulf %311, %289 : vector<2x32xf32>
    %318 = arith.mulf %310, %312 : vector<2x32xf32>
    %319 = arith.addf %317, %318 : vector<2x32xf32>
    %320 = math.tanh %316 : vector<2x32xf32>
    %321 = arith.mulf %309, %320 : vector<2x32xf32>
    %322 = math.tanh %319 : vector<2x32xf32>
    %323 = arith.mulf %313, %322 : vector<2x32xf32>
    %324 = tpu.concatenate %321, %323 in 1 : vector<2x32xf32>, vector<2x32xf32> -> vector<2x64xf32>
    %325 = vector.extract_strided_slice %261 {offsets = [4, 0], sizes = [2, 128], strides = [1, 1]} : vector<16x256xf32> to vector<2x128xf32>
    %326 = vector.extract_strided_slice %261 {offsets = [10, 128], sizes = [2, 128], strides = [1, 1]} : vector<16x256xf32> to vector<2x128xf32>
    %327 = tpu.concatenate %325, %326 in 1 : vector<2x128xf32>, vector<2x128xf32> -> vector<2x256xf32>
    %cst_38 = arith.constant dense<0.000000e+00> : vector<2x256xf32>
    %328 = tpu.matmul %324, %262, %cst_38 {dimension_numbers = #tpu.dot_dimension_numbers<[1], [0], [0], [1], [0, 0, 1, 1], [], []>} : vector<2x64xf32>, vector<64x256xf32>, vector<2x256xf32> -> vector<2x256xf32>
    %329 = arith.addf %327, %328 : vector<2x256xf32>
    %330 = arith.negf %329 : vector<2x256xf32>
    %331 = math.exp %330 : vector<2x256xf32>
    %cst_39 = arith.constant 1.000000e+00 : f32
    %332 = vector.broadcast %cst_39 : f32 to vector<2x256xf32>
    %333 = arith.addf %332, %331 : vector<2x256xf32>
    %334 = arith.divf %332, %333 : vector<2x256xf32>
    %335 = math.tanh %329 : vector<2x256xf32>
    %336 = vector.extract_strided_slice %334 {offsets = [0, 0], sizes = [2, 32], strides = [1, 1]} : vector<2x256xf32> to vector<2x32xf32>
    %337 = vector.extract_strided_slice %334 {offsets = [0, 32], sizes = [2, 32], strides = [1, 1]} : vector<2x256xf32> to vector<2x32xf32>
    %338 = vector.extract_strided_slice %335 {offsets = [0, 64], sizes = [2, 32], strides = [1, 1]} : vector<2x256xf32> to vector<2x32xf32>
    %339 = vector.extract_strided_slice %334 {offsets = [0, 96], sizes = [2, 32], strides = [1, 1]} : vector<2x256xf32> to vector<2x32xf32>
    %340 = vector.extract_strided_slice %334 {offsets = [0, 128], sizes = [2, 32], strides = [1, 1]} : vector<2x256xf32> to vector<2x32xf32>
    %341 = vector.extract_strided_slice %334 {offsets = [0, 160], sizes = [2, 32], strides = [1, 1]} : vector<2x256xf32> to vector<2x32xf32>
    %342 = vector.extract_strided_slice %335 {offsets = [0, 192], sizes = [2, 32], strides = [1, 1]} : vector<2x256xf32> to vector<2x32xf32>
    %343 = vector.extract_strided_slice %334 {offsets = [0, 224], sizes = [2, 32], strides = [1, 1]} : vector<2x256xf32> to vector<2x32xf32>
    %344 = arith.mulf %337, %316 : vector<2x32xf32>
    %345 = arith.mulf %336, %338 : vector<2x32xf32>
    %346 = arith.addf %344, %345 : vector<2x32xf32>
    %347 = arith.mulf %341, %319 : vector<2x32xf32>
    %348 = arith.mulf %340, %342 : vector<2x32xf32>
    %349 = arith.addf %347, %348 : vector<2x32xf32>
    %350 = math.tanh %346 : vector<2x32xf32>
    %351 = arith.mulf %339, %350 : vector<2x32xf32>
    %352 = math.tanh %349 : vector<2x32xf32>
    %353 = arith.mulf %343, %352 : vector<2x32xf32>
    %354 = tpu.concatenate %351, %353 in 1 : vector<2x32xf32>, vector<2x32xf32> -> vector<2x64xf32>
    %355 = vector.extract_strided_slice %261 {offsets = [6, 0], sizes = [2, 128], strides = [1, 1]} : vector<16x256xf32> to vector<2x128xf32>
    %356 = vector.extract_strided_slice %261 {offsets = [8, 128], sizes = [2, 128], strides = [1, 1]} : vector<16x256xf32> to vector<2x128xf32>
    %357 = tpu.concatenate %355, %356 in 1 : vector<2x128xf32>, vector<2x128xf32> -> vector<2x256xf32>
    %cst_40 = arith.constant dense<0.000000e+00> : vector<2x256xf32>
    %358 = tpu.matmul %354, %262, %cst_40 {dimension_numbers = #tpu.dot_dimension_numbers<[1], [0], [0], [1], [0, 0, 1, 1], [], []>} : vector<2x64xf32>, vector<64x256xf32>, vector<2x256xf32> -> vector<2x256xf32>
    %359 = arith.addf %357, %358 : vector<2x256xf32>
    %360 = arith.negf %359 : vector<2x256xf32>
    %361 = math.exp %360 : vector<2x256xf32>
    %cst_41 = arith.constant 1.000000e+00 : f32
    %362 = vector.broadcast %cst_41 : f32 to vector<2x256xf32>
    %363 = arith.addf %362, %361 : vector<2x256xf32>
    %364 = arith.divf %362, %363 : vector<2x256xf32>
    %365 = math.tanh %359 : vector<2x256xf32>
    %366 = vector.extract_strided_slice %364 {offsets = [0, 0], sizes = [2, 32], strides = [1, 1]} : vector<2x256xf32> to vector<2x32xf32>
    %367 = vector.extract_strided_slice %364 {offsets = [0, 32], sizes = [2, 32], strides = [1, 1]} : vector<2x256xf32> to vector<2x32xf32>
    %368 = vector.extract_strided_slice %365 {offsets = [0, 64], sizes = [2, 32], strides = [1, 1]} : vector<2x256xf32> to vector<2x32xf32>
    %369 = vector.extract_strided_slice %364 {offsets = [0, 96], sizes = [2, 32], strides = [1, 1]} : vector<2x256xf32> to vector<2x32xf32>
    %370 = vector.extract_strided_slice %364 {offsets = [0, 128], sizes = [2, 32], strides = [1, 1]} : vector<2x256xf32> to vector<2x32xf32>
    %371 = vector.extract_strided_slice %364 {offsets = [0, 160], sizes = [2, 32], strides = [1, 1]} : vector<2x256xf32> to vector<2x32xf32>
    %372 = vector.extract_strided_slice %365 {offsets = [0, 192], sizes = [2, 32], strides = [1, 1]} : vector<2x256xf32> to vector<2x32xf32>
    %373 = vector.extract_strided_slice %364 {offsets = [0, 224], sizes = [2, 32], strides = [1, 1]} : vector<2x256xf32> to vector<2x32xf32>
    %374 = arith.mulf %367, %346 : vector<2x32xf32>
    %375 = arith.mulf %366, %368 : vector<2x32xf32>
    %376 = arith.addf %374, %375 : vector<2x32xf32>
    %377 = arith.mulf %371, %349 : vector<2x32xf32>
    %378 = arith.mulf %370, %372 : vector<2x32xf32>
    %379 = arith.addf %377, %378 : vector<2x32xf32>
    %380 = math.tanh %376 : vector<2x32xf32>
    %381 = arith.mulf %369, %380 : vector<2x32xf32>
    %382 = math.tanh %379 : vector<2x32xf32>
    %383 = arith.mulf %373, %382 : vector<2x32xf32>
    %384 = tpu.concatenate %381, %383 in 1 : vector<2x32xf32>, vector<2x32xf32> -> vector<2x64xf32>
    %385 = vector.extract_strided_slice %261 {offsets = [8, 0], sizes = [2, 128], strides = [1, 1]} : vector<16x256xf32> to vector<2x128xf32>
    %386 = vector.extract_strided_slice %261 {offsets = [6, 128], sizes = [2, 128], strides = [1, 1]} : vector<16x256xf32> to vector<2x128xf32>
    %387 = tpu.concatenate %385, %386 in 1 : vector<2x128xf32>, vector<2x128xf32> -> vector<2x256xf32>
    %cst_42 = arith.constant dense<0.000000e+00> : vector<2x256xf32>
    %388 = tpu.matmul %384, %262, %cst_42 {dimension_numbers = #tpu.dot_dimension_numbers<[1], [0], [0], [1], [0, 0, 1, 1], [], []>} : vector<2x64xf32>, vector<64x256xf32>, vector<2x256xf32> -> vector<2x256xf32>
    %389 = arith.addf %387, %388 : vector<2x256xf32>
    %390 = arith.negf %389 : vector<2x256xf32>
    %391 = math.exp %390 : vector<2x256xf32>
    %cst_43 = arith.constant 1.000000e+00 : f32
    %392 = vector.broadcast %cst_43 : f32 to vector<2x256xf32>
    %393 = arith.addf %392, %391 : vector<2x256xf32>
    %394 = arith.divf %392, %393 : vector<2x256xf32>
    %395 = math.tanh %389 : vector<2x256xf32>
    %396 = vector.extract_strided_slice %394 {offsets = [0, 0], sizes = [2, 32], strides = [1, 1]} : vector<2x256xf32> to vector<2x32xf32>
    %397 = vector.extract_strided_slice %394 {offsets = [0, 32], sizes = [2, 32], strides = [1, 1]} : vector<2x256xf32> to vector<2x32xf32>
    %398 = vector.extract_strided_slice %395 {offsets = [0, 64], sizes = [2, 32], strides = [1, 1]} : vector<2x256xf32> to vector<2x32xf32>
    %399 = vector.extract_strided_slice %394 {offsets = [0, 96], sizes = [2, 32], strides = [1, 1]} : vector<2x256xf32> to vector<2x32xf32>
    %400 = vector.extract_strided_slice %394 {offsets = [0, 128], sizes = [2, 32], strides = [1, 1]} : vector<2x256xf32> to vector<2x32xf32>
    %401 = vector.extract_strided_slice %394 {offsets = [0, 160], sizes = [2, 32], strides = [1, 1]} : vector<2x256xf32> to vector<2x32xf32>
    %402 = vector.extract_strided_slice %395 {offsets = [0, 192], sizes = [2, 32], strides = [1, 1]} : vector<2x256xf32> to vector<2x32xf32>
    %403 = vector.extract_strided_slice %394 {offsets = [0, 224], sizes = [2, 32], strides = [1, 1]} : vector<2x256xf32> to vector<2x32xf32>
    %404 = arith.mulf %397, %376 : vector<2x32xf32>
    %405 = arith.mulf %396, %398 : vector<2x32xf32>
    %406 = arith.addf %404, %405 : vector<2x32xf32>
    %407 = arith.mulf %401, %379 : vector<2x32xf32>
    %408 = arith.mulf %400, %402 : vector<2x32xf32>
    %409 = arith.addf %407, %408 : vector<2x32xf32>
    %410 = math.tanh %406 : vector<2x32xf32>
    %411 = arith.mulf %399, %410 : vector<2x32xf32>
    %412 = math.tanh %409 : vector<2x32xf32>
    %413 = arith.mulf %403, %412 : vector<2x32xf32>
    %414 = tpu.concatenate %411, %413 in 1 : vector<2x32xf32>, vector<2x32xf32> -> vector<2x64xf32>
    %415 = vector.extract_strided_slice %261 {offsets = [10, 0], sizes = [2, 128], strides = [1, 1]} : vector<16x256xf32> to vector<2x128xf32>
    %416 = vector.extract_strided_slice %261 {offsets = [4, 128], sizes = [2, 128], strides = [1, 1]} : vector<16x256xf32> to vector<2x128xf32>
    %417 = tpu.concatenate %415, %416 in 1 : vector<2x128xf32>, vector<2x128xf32> -> vector<2x256xf32>
    %cst_44 = arith.constant dense<0.000000e+00> : vector<2x256xf32>
    %418 = tpu.matmul %414, %262, %cst_44 {dimension_numbers = #tpu.dot_dimension_numbers<[1], [0], [0], [1], [0, 0, 1, 1], [], []>} : vector<2x64xf32>, vector<64x256xf32>, vector<2x256xf32> -> vector<2x256xf32>
    %419 = arith.addf %417, %418 : vector<2x256xf32>
    %420 = arith.negf %419 : vector<2x256xf32>
    %421 = math.exp %420 : vector<2x256xf32>
    %cst_45 = arith.constant 1.000000e+00 : f32
    %422 = vector.broadcast %cst_45 : f32 to vector<2x256xf32>
    %423 = arith.addf %422, %421 : vector<2x256xf32>
    %424 = arith.divf %422, %423 : vector<2x256xf32>
    %425 = math.tanh %419 : vector<2x256xf32>
    %426 = vector.extract_strided_slice %424 {offsets = [0, 0], sizes = [2, 32], strides = [1, 1]} : vector<2x256xf32> to vector<2x32xf32>
    %427 = vector.extract_strided_slice %424 {offsets = [0, 32], sizes = [2, 32], strides = [1, 1]} : vector<2x256xf32> to vector<2x32xf32>
    %428 = vector.extract_strided_slice %425 {offsets = [0, 64], sizes = [2, 32], strides = [1, 1]} : vector<2x256xf32> to vector<2x32xf32>
    %429 = vector.extract_strided_slice %424 {offsets = [0, 96], sizes = [2, 32], strides = [1, 1]} : vector<2x256xf32> to vector<2x32xf32>
    %430 = vector.extract_strided_slice %424 {offsets = [0, 128], sizes = [2, 32], strides = [1, 1]} : vector<2x256xf32> to vector<2x32xf32>
    %431 = vector.extract_strided_slice %424 {offsets = [0, 160], sizes = [2, 32], strides = [1, 1]} : vector<2x256xf32> to vector<2x32xf32>
    %432 = vector.extract_strided_slice %425 {offsets = [0, 192], sizes = [2, 32], strides = [1, 1]} : vector<2x256xf32> to vector<2x32xf32>
    %433 = vector.extract_strided_slice %424 {offsets = [0, 224], sizes = [2, 32], strides = [1, 1]} : vector<2x256xf32> to vector<2x32xf32>
    %434 = arith.mulf %427, %406 : vector<2x32xf32>
    %435 = arith.mulf %426, %428 : vector<2x32xf32>
    %436 = arith.addf %434, %435 : vector<2x32xf32>
    %437 = arith.mulf %431, %409 : vector<2x32xf32>
    %438 = arith.mulf %430, %432 : vector<2x32xf32>
    %439 = arith.addf %437, %438 : vector<2x32xf32>
    %440 = math.tanh %436 : vector<2x32xf32>
    %441 = arith.mulf %429, %440 : vector<2x32xf32>
    %442 = math.tanh %439 : vector<2x32xf32>
    %443 = arith.mulf %433, %442 : vector<2x32xf32>
    %444 = tpu.concatenate %441, %443 in 1 : vector<2x32xf32>, vector<2x32xf32> -> vector<2x64xf32>
    %445 = vector.extract_strided_slice %261 {offsets = [12, 0], sizes = [2, 128], strides = [1, 1]} : vector<16x256xf32> to vector<2x128xf32>
    %446 = vector.extract_strided_slice %261 {offsets = [2, 128], sizes = [2, 128], strides = [1, 1]} : vector<16x256xf32> to vector<2x128xf32>
    %447 = tpu.concatenate %445, %446 in 1 : vector<2x128xf32>, vector<2x128xf32> -> vector<2x256xf32>
    %cst_46 = arith.constant dense<0.000000e+00> : vector<2x256xf32>
    %448 = tpu.matmul %444, %262, %cst_46 {dimension_numbers = #tpu.dot_dimension_numbers<[1], [0], [0], [1], [0, 0, 1, 1], [], []>} : vector<2x64xf32>, vector<64x256xf32>, vector<2x256xf32> -> vector<2x256xf32>
    %449 = arith.addf %447, %448 : vector<2x256xf32>
    %450 = arith.negf %449 : vector<2x256xf32>
    %451 = math.exp %450 : vector<2x256xf32>
    %cst_47 = arith.constant 1.000000e+00 : f32
    %452 = vector.broadcast %cst_47 : f32 to vector<2x256xf32>
    %453 = arith.addf %452, %451 : vector<2x256xf32>
    %454 = arith.divf %452, %453 : vector<2x256xf32>
    %455 = math.tanh %449 : vector<2x256xf32>
    %456 = vector.extract_strided_slice %454 {offsets = [0, 0], sizes = [2, 32], strides = [1, 1]} : vector<2x256xf32> to vector<2x32xf32>
    %457 = vector.extract_strided_slice %454 {offsets = [0, 32], sizes = [2, 32], strides = [1, 1]} : vector<2x256xf32> to vector<2x32xf32>
    %458 = vector.extract_strided_slice %455 {offsets = [0, 64], sizes = [2, 32], strides = [1, 1]} : vector<2x256xf32> to vector<2x32xf32>
    %459 = vector.extract_strided_slice %454 {offsets = [0, 96], sizes = [2, 32], strides = [1, 1]} : vector<2x256xf32> to vector<2x32xf32>
    %460 = vector.extract_strided_slice %454 {offsets = [0, 128], sizes = [2, 32], strides = [1, 1]} : vector<2x256xf32> to vector<2x32xf32>
    %461 = vector.extract_strided_slice %454 {offsets = [0, 160], sizes = [2, 32], strides = [1, 1]} : vector<2x256xf32> to vector<2x32xf32>
    %462 = vector.extract_strided_slice %455 {offsets = [0, 192], sizes = [2, 32], strides = [1, 1]} : vector<2x256xf32> to vector<2x32xf32>
    %463 = vector.extract_strided_slice %454 {offsets = [0, 224], sizes = [2, 32], strides = [1, 1]} : vector<2x256xf32> to vector<2x32xf32>
    %464 = arith.mulf %457, %436 : vector<2x32xf32>
    %465 = arith.mulf %456, %458 : vector<2x32xf32>
    %466 = arith.addf %464, %465 : vector<2x32xf32>
    %467 = arith.mulf %461, %439 : vector<2x32xf32>
    %468 = arith.mulf %460, %462 : vector<2x32xf32>
    %469 = arith.addf %467, %468 : vector<2x32xf32>
    %470 = math.tanh %466 : vector<2x32xf32>
    %471 = arith.mulf %459, %470 : vector<2x32xf32>
    %472 = math.tanh %469 : vector<2x32xf32>
    %473 = arith.mulf %463, %472 : vector<2x32xf32>
    %474 = tpu.concatenate %471, %473 in 1 : vector<2x32xf32>, vector<2x32xf32> -> vector<2x64xf32>
    %475 = vector.extract_strided_slice %261 {offsets = [14, 0], sizes = [2, 128], strides = [1, 1]} : vector<16x256xf32> to vector<2x128xf32>
    %476 = vector.extract_strided_slice %261 {offsets = [0, 128], sizes = [2, 128], strides = [1, 1]} : vector<16x256xf32> to vector<2x128xf32>
    %477 = tpu.concatenate %475, %476 in 1 : vector<2x128xf32>, vector<2x128xf32> -> vector<2x256xf32>
    %cst_48 = arith.constant dense<0.000000e+00> : vector<2x256xf32>
    %478 = tpu.matmul %474, %262, %cst_48 {dimension_numbers = #tpu.dot_dimension_numbers<[1], [0], [0], [1], [0, 0, 1, 1], [], []>} : vector<2x64xf32>, vector<64x256xf32>, vector<2x256xf32> -> vector<2x256xf32>
    %479 = arith.addf %477, %478 : vector<2x256xf32>
    %480 = arith.negf %479 : vector<2x256xf32>
    %481 = math.exp %480 : vector<2x256xf32>
    %cst_49 = arith.constant 1.000000e+00 : f32
    %482 = vector.broadcast %cst_49 : f32 to vector<2x256xf32>
    %483 = arith.addf %482, %481 : vector<2x256xf32>
    %484 = arith.divf %482, %483 : vector<2x256xf32>
    %485 = math.tanh %479 : vector<2x256xf32>
    %486 = vector.extract_strided_slice %484 {offsets = [0, 0], sizes = [2, 32], strides = [1, 1]} : vector<2x256xf32> to vector<2x32xf32>
    %487 = vector.extract_strided_slice %484 {offsets = [0, 32], sizes = [2, 32], strides = [1, 1]} : vector<2x256xf32> to vector<2x32xf32>
    %488 = vector.extract_strided_slice %485 {offsets = [0, 64], sizes = [2, 32], strides = [1, 1]} : vector<2x256xf32> to vector<2x32xf32>
    %489 = vector.extract_strided_slice %484 {offsets = [0, 96], sizes = [2, 32], strides = [1, 1]} : vector<2x256xf32> to vector<2x32xf32>
    %490 = vector.extract_strided_slice %484 {offsets = [0, 128], sizes = [2, 32], strides = [1, 1]} : vector<2x256xf32> to vector<2x32xf32>
    %491 = vector.extract_strided_slice %484 {offsets = [0, 160], sizes = [2, 32], strides = [1, 1]} : vector<2x256xf32> to vector<2x32xf32>
    %492 = vector.extract_strided_slice %485 {offsets = [0, 192], sizes = [2, 32], strides = [1, 1]} : vector<2x256xf32> to vector<2x32xf32>
    %493 = vector.extract_strided_slice %484 {offsets = [0, 224], sizes = [2, 32], strides = [1, 1]} : vector<2x256xf32> to vector<2x32xf32>
    %494 = arith.mulf %487, %466 : vector<2x32xf32>
    %495 = arith.mulf %486, %488 : vector<2x32xf32>
    %496 = arith.addf %494, %495 : vector<2x32xf32>
    %497 = arith.mulf %491, %469 : vector<2x32xf32>
    %498 = arith.mulf %490, %492 : vector<2x32xf32>
    %499 = arith.addf %497, %498 : vector<2x32xf32>
    %500 = math.tanh %496 : vector<2x32xf32>
    %501 = arith.mulf %489, %500 : vector<2x32xf32>
    %502 = math.tanh %499 : vector<2x32xf32>
    %503 = arith.mulf %493, %502 : vector<2x32xf32>
    %504 = tpu.concatenate %291, %503 in 1 : vector<2x32xf32>, vector<2x32xf32> -> vector<2x64xf32>
    %505 = tpu.concatenate %321, %473 in 1 : vector<2x32xf32>, vector<2x32xf32> -> vector<2x64xf32>
    %506 = tpu.concatenate %351, %443 in 1 : vector<2x32xf32>, vector<2x32xf32> -> vector<2x64xf32>
    %507 = tpu.concatenate %381, %413 in 1 : vector<2x32xf32>, vector<2x32xf32> -> vector<2x64xf32>
    %508 = tpu.concatenate %411, %383 in 1 : vector<2x32xf32>, vector<2x32xf32> -> vector<2x64xf32>
    %509 = tpu.concatenate %441, %353 in 1 : vector<2x32xf32>, vector<2x32xf32> -> vector<2x64xf32>
    %510 = tpu.concatenate %471, %323 in 1 : vector<2x32xf32>, vector<2x32xf32> -> vector<2x64xf32>
    %511 = tpu.concatenate %501, %293 in 1 : vector<2x32xf32>, vector<2x32xf32> -> vector<2x64xf32>
    %512 = tpu.concatenate %504, %505, %506, %507, %508, %509, %510, %511 in 0 : vector<2x64xf32>, vector<2x64xf32>, vector<2x64xf32>, vector<2x64xf32>, vector<2x64xf32>, vector<2x64xf32>, vector<2x64xf32>, vector<2x64xf32> -> vector<16x64xf32>
    %c0_50 = arith.constant 0 : index
    %c0_51 = arith.constant 0 : index
    %513 = vector.load %arg7[%c0_50, %c0_51] : memref<64x1xf32, #tpu.memory_space<vmem>>, vector<64x1xf32>
    %cst_52 = arith.constant dense<0.000000e+00> : vector<16x1xf32>
    %514 = tpu.matmul %512, %513, %cst_52 {dimension_numbers = #tpu.dot_dimension_numbers<[1], [0], [0], [1], [0, 0, 1, 1], [], []>} : vector<16x64xf32>, vector<64x1xf32>, vector<16x1xf32> -> vector<16x1xf32>
    %c0_53 = arith.constant 0 : index
    %c0_54 = arith.constant 0 : index
    %515 = vector.load %arg8[%c0_53, %c0_54] : memref<1x1xf32, #tpu.memory_space<vmem>>, vector<1x1xf32>
    %516 = vector.broadcast %515 : vector<1x1xf32> to vector<16x1xf32>
    %517 = arith.addf %514, %516 : vector<16x1xf32>
    %c0_55 = arith.constant 0 : index
    %c0_56 = arith.constant 0 : index
    %518 = vector.load %arg9[%c0_55, %c0_56] : memref<16x1xf32, #tpu.memory_space<vmem>>, vector<16x1xf32>
    tpu.vector_store %arg9[%c0_55, %c0_56], %517 {strides = array<i32>} : memref<16x1xf32, #tpu.memory_space<vmem>>, vector<16x1xf32>,
    return
  }
}

</mosaic_0001>

<llo_original>
// kernel: tpu_custom_call.1
$region0: #{tpu_custom_call.1}
  #allocation0 [shape = 'u32[]', space=smem, size = 0x4, offset = 0x4, fixed_abs, tag = 'smem constant byte address 0x4 - core index']
  #allocation1 [shape = 'u32[144,128]{1,0:T(1,128)}', space=vmem, size = 0x12000, scoped, tag = 'internal scratch']
  #allocation2 [shape = 'f32[1,1]{1,0:T(1,128)S(1)}', space=vmem, size = 0x200, scoped, tag = 'scoped memory for tpu_custom_call.1']
  %s0 = inlined_call_operand.vmem [shape: f32[16,38], index: 0, kind: input, shape index: {}]
  %s1 = inlined_call_operand.hbm [shape: f32[38,256], index: 1, kind: input, shape index: {}]
  %s2 = inlined_call_operand.hbm [shape: f32[64,256], index: 2, kind: input, shape index: {}]
  %s3 = inlined_call_operand.vmem [shape: f32[1,256], index: 3, kind: input, shape index: {}]
  %s4 = inlined_call_operand.hbm [shape: f32[64,256], index: 4, kind: input, shape index: {}]
  %s5 = inlined_call_operand.hbm [shape: f32[64,256], index: 5, kind: input, shape index: {}]
  %s6 = inlined_call_operand.vmem [shape: f32[1,256], index: 6, kind: input, shape index: {}]
  %s7 = inlined_call_operand.vmem [shape: f32[64,1], index: 7, kind: input, shape index: {}]
  %s8 = inlined_call_operand.<no memory space> [shape: f32[1,1], index: 8, kind: input, shape index: {}]
  %s9 = inlined_call_operand.vmem [shape: f32[16,1], index: 9, kind: output, shape index: {}]
  %s10 = sld [smem:[#allocation0]]
  $region62: #{tpu_custom_call.1} parent=0
    _
  %s12 = ssub.s32 1, %s10
  %s13 = scalar_select 0, %s12, %s10
  %v14 = vstv %s8
  %15 = vst [vmem:[#allocation2] sm:$0x1] %v14
  $region1: #{tpu_custom_call.1} parent=0
    #allocation3 [shape = 'u8[40960]{0}', space=vmem, size = 0xa000, scoped, tag = 'input window, operand 1, single buffered']
    #allocation4 [shape = 's32[1]{0}', space=sflag, size = 0x4, scoped, tag = 'scoped memory for tpu_custom_call.1']
    #allocation5 [shape = 'u8[65536]{0}', space=vmem, size = 0x10000, scoped, tag = 'input window, operand 2, single buffered']
    #allocation6 [shape = 's32[1]{0}', space=sflag, size = 0x4, scoped, tag = 'scoped memory for tpu_custom_call.1']
    #allocation7 [shape = 'u8[65536]{0}', space=vmem, size = 0x10000, scoped, tag = 'input window, operand 4, single buffered']
    #allocation8 [shape = 'u8[65536]{0}', space=vmem, size = 0x10000, scoped, tag = 'input window, operand 5, single buffered']
    #allocation9 [shape = 's32[1]{0}', space=sflag, size = 0x4, scoped, tag = 'scoped memory for tpu_custom_call.1']
    %16 = vsyncpa [#allocation4], 0
    %17 = vsyncpa [#allocation6], 0
    %18 = vsyncpa [#allocation9], 0
    // Predicated region
    $region2: #{tpu_custom_call.1} parent=1 // pred_check
      _
    $region3: #{tpu_custom_call.1} parent=1 // pred_check_branch
      %20 = sbr.rel (0) target = $region5
    $region4: #{tpu_custom_call.1} parent=1 // pred_region
      _
    $region5: #{tpu_custom_call.1} parent=1 // pred_fallthru
      _
    // Predicated region
    $region6: #{tpu_custom_call.1} parent=1 // pred_check
      _
    $region7: #{tpu_custom_call.1} parent=1 // pred_check_branch
      %22 = sbr.rel (0) target = $region9
    $region8: #{tpu_custom_call.1} parent=1 // pred_region
      %s24 = ssub.s32 1280, 1280
      %25 = vsyncadd [#allocation4], %s24
      %s26 = sshll.u32 [#allocation3], 4
      %s27 = int_to_ptr.vmem [resolvable:$true] %s26
      %32 = dma.hbm_to_vmem [thread:$0]  %s1, 1280, %s27, [#allocation4], 256, 256, 16
    $region9: #{tpu_custom_call.1} parent=1 // pred_fallthru
      _
    // Predicated region
    $region10: #{tpu_custom_call.1} parent=1 // pred_check
      _
    $region11: #{tpu_custom_call.1} parent=1 // pred_check_branch
      %34 = sbr.rel (0) target = $region13
    $region12: #{tpu_custom_call.1} parent=1 // pred_region
      %s36 = ssub.s32 2048, 2048
      %37 = vsyncadd [#allocation6], %s36
      %s38 = sshll.u32 [#allocation5], 4
      %s39 = int_to_ptr.vmem [resolvable:$true] %s38
      %44 = dma.hbm_to_vmem [thread:$0]  %s2, 2048, %s39, [#allocation6], 256, 256, 16
    $region13: #{tpu_custom_call.1} parent=1 // pred_fallthru
      _
    // Predicated region
    $region14: #{tpu_custom_call.1} parent=1 // pred_check
      _
    $region15: #{tpu_custom_call.1} parent=1 // pred_check_branch
      %46 = sbr.rel (0) target = $region17
    $region16: #{tpu_custom_call.1} parent=1 // pred_region
      _
    $region17: #{tpu_custom_call.1} parent=1 // pred_fallthru
      _
    // Predicated region
    $region18: #{tpu_custom_call.1} parent=1 // pred_check
      _
    $region19: #{tpu_custom_call.1} parent=1 // pred_check_branch
      %48 = sbr.rel (0) target = $region21
    $region20: #{tpu_custom_call.1} parent=1 // pred_region
      %s50 = ssub.s32 2048, 2048
      %51 = vsyncadd [#allocation6], %s50
      %s52 = sshll.u32 [#allocation7], 4
      %s53 = int_to_ptr.vmem [resolvable:$true] %s52
      %58 = dma.hbm_to_vmem [thread:$0]  %s4, 2048, %s53, [#allocation6], 256, 256, 16
    $region21: #{tpu_custom_call.1} parent=1 // pred_fallthru
      _
    // Predicated region
    $region22: #{tpu_custom_call.1} parent=1 // pred_check
      _
    $region23: #{tpu_custom_call.1} parent=1 // pred_check_branch
      %60 = sbr.rel (0) target = $region25
    $region24: #{tpu_custom_call.1} parent=1 // pred_region
      %s62 = ssub.s32 2048, 2048
      %63 = vsyncadd [#allocation9], %s62
      %s64 = sshll.u32 [#allocation8], 4
      %s65 = int_to_ptr.vmem [resolvable:$true] %s64
      %70 = dma.hbm_to_vmem [thread:$0]  %s5, 2048, %s65, [#allocation9], 256, 256, 16
    $region25: #{tpu_custom_call.1} parent=1 // pred_fallthru
      _
    // Predicated region
    $region26: #{tpu_custom_call.1} parent=1 // pred_check
      _
    $region27: #{tpu_custom_call.1} parent=1 // pred_check_branch
      %72 = sbr.rel (0) target = $region29
    $region28: #{tpu_custom_call.1} parent=1 // pred_region
      _
    $region29: #{tpu_custom_call.1} parent=1 // pred_fallthru
      _
    // Predicated region
    $region30: #{tpu_custom_call.1} parent=1 // pred_check
      _
    $region31: #{tpu_custom_call.1} parent=1 // pred_check_branch
      %74 = sbr.rel (0) target = $region33
    $region32: #{tpu_custom_call.1} parent=1 // pred_region
      _
    $region33: #{tpu_custom_call.1} parent=1 // pred_fallthru
      _
    // Predicated region
    $region34: #{tpu_custom_call.1} parent=1 // pred_check
      _
    $region35: #{tpu_custom_call.1} parent=1 // pred_check_branch
      %76 = sbr.rel (0) target = $region37
    $region36: #{tpu_custom_call.1} parent=1 // pred_region
      _
    $region37: #{tpu_custom_call.1} parent=1 // pred_fallthru
      _
    // Predicated region
    $region38: #{tpu_custom_call.1} parent=1 // pred_check
      _
    $region39: #{tpu_custom_call.1} parent=1 // pred_check_branch
      %78 = sbr.rel (0) target = $region41
    $region40: #{tpu_custom_call.1} parent=1 // pred_region
      %79 = dma.done [#allocation4], 1280
    $region41: #{tpu_custom_call.1} parent=1 // pred_fallthru
      _
    // Predicated region
    $region42: #{tpu_custom_call.1} parent=1 // pred_check
      _
    $region43: #{tpu_custom_call.1} parent=1 // pred_check_branch
      %81 = sbr.rel (0) target = $region45
    $region44: #{tpu_custom_call.1} parent=1 // pred_region
      %82 = dma.done [#allocation6], 2048
    $region45: #{tpu_custom_call.1} parent=1 // pred_fallthru
      _
    // Predicated region
    $region46: #{tpu_custom_call.1} parent=1 // pred_check
      _
    $region47: #{tpu_custom_call.1} parent=1 // pred_check_branch
      %84 = sbr.rel (0) target = $region49
    $region48: #{tpu_custom_call.1} parent=1 // pred_region
      %85 = dma.done [#allocation6], 2048
    $region49: #{tpu_custom_call.1} parent=1 // pred_fallthru
      _
    // Predicated region
    $region50: #{tpu_custom_call.1} parent=1 // pred_check
      _
    $region51: #{tpu_custom_call.1} parent=1 // pred_check_branch
      %87 = sbr.rel (0) target = $region53
    $region52: #{tpu_custom_call.1} parent=1 // pred_region
      %88 = dma.done [#allocation9], 2048
    $region53: #{tpu_custom_call.1} parent=1 // pred_fallthru
      _
    %v89 = vld [vmem:[%s0] sm:$0xff]
    %v90 = vld [vmem:[%s0 + $0x8] sm:$0xff]
    %v91 = vld [vmem:[#allocation3] sm:$0xff]
    %v92 = vld [vmem:[#allocation3 + $0x8] sm:$0xff]
    %v93 = vld [vmem:[#allocation3 + $0x10] sm:$0xff]
    %v94 = vld [vmem:[#allocation3 + $0x18] sm:$0xff]
    %v95 = vld [vmem:[#allocation3 + $0x20] sm:$0xff]
    %v96 = vld [vmem:[#allocation3 + $0x28] sm:$0xff]
    %v97 = vld [vmem:[#allocation3 + $0x30] sm:$0xff]
    %v98 = vld [vmem:[#allocation3 + $0x38] sm:$0xff]
    %v99 = vld [vmem:[#allocation3 + $0x40] sm:$0x3f]
    %v100 = vld [vmem:[#allocation3 + $0x48] sm:$0x3f]
    %v101 = vld [vmem:[%s3] sm:$0x3]
    %v103 = vlaneseq
    %v104 = vshrl.u32 %v103, 7
    %v105 = vsub.s32 0, %v104
    %v106 = vrot.slane %v101, %v105
    %v107 = vlaneseq
    %v108 = vshrl.u32 %v107, 7
    %v109 = vsub.s32 1, %v108
    %v110 = vrot.slane %v101, %v109
    %vm113 = vcmask 310272
    %v115 = vsel %vm113, %v89, 0
    %v118 = vsel %vm113, %v90, 0
    %vm120 = vcmask 1045504
    %v122 = vsel %vm120, %v99, 0
    %v125 = vsel %vm120, %v100, 0
    %127 = vmatprep.subr.mxu0 %v92
    %128 = vmatpush1.msra.mxu0 %v91
    %129 = vmatprep.subr.mxu0 %v94
    %130 = vmatpush1.msra.mxu0 %v93
    %131 = vmatprep.subr.mxu0 %v96
    %132 = vmatpush1.msra.mxu0 %v95
    %133 = vmatprep.subr.mxu0 %v98
    %134 = vmatpush1.msra.mxu0 %v97
    %135 = vmatprep.subr.mxu0 %v125
    %136 = vmatpush1.msra.mxu0 %v122
    %137 = vmatprep.subr.mxu0 0.0
    %138 = vmatpush1.msra.mxu0 0.0
    %139 = vmatprep.subr.mxu0 0.0
    %140 = vmatpush1.msra.mxu0 0.0
    %141 = vmatprep.subr.mxu0 0.0
    %142 = vmatpush1.msra.mxu0 0.0
    %143 = vmatprep.subr.mxu0 0.0
    %144 = vmatpush1.msra.mxu0 0.0
    %145 = vmatprep.subr.mxu0 0.0
    %146 = vmatpush1.msra.mxu0 0.0
    %147 = vmatprep.subr.mxu0 0.0
    %148 = vmatpush1.msra.mxu0 0.0
    %149 = vmatprep.subr.mxu0 0.0
    %150 = vmatpush1.msra.mxu0 0.0
    %151 = vmatprep.subr.mxu0 0.0
    %152 = vmatpush1.msra.mxu0 0.0
    %153 = vmatprep.subr.mxu0 0.0
    %154 = vmatpush1.msra.mxu0 0.0
    %155 = vmatprep.subr.mxu0 0.0
    %156 = vmatpush1.msra.mxu0 0.0
    %157 = vmatprep.subr.mxu0 0.0
    %158 = vmatpush1.msra.mxu0 0.0
    %159 = vmatprep.subr.mxu0 0.0
    %160 = vmatpush1.msra.mxu0 0.0
    %161 = vmatprep.subr.mxu0 0.0
    %162 = vmatpush1.msra.mxu0 0.0
    %163 = vmatprep.subr.mxu0 0.0
    %164 = vmatpush1.msra.mxu0 0.0
    %165 = vmatprep.subr.mxu0 0.0
    %166 = vmatpush1.msra.mxu0 0.0
    %167 = vmatprep.subr.mxu0 0.0
    %168 = vmatpush1.msra.mxu0 0.0
    %169 = vmatprep.subr.mxu0 0.0
    %170 = vmatpush1.msra.mxu0 0.0
    %171 = vmatprep.subr.mxu0 0.0
    %172 = vmatpush1.msra.mxu0 0.0
    %173 = vmatprep.subr.mxu0 0.0
    %174 = vmatpush1.msra.mxu0 0.0
    %175 = vmatprep.subr.mxu0 0.0
    %176 = vmatpush1.msra.mxu0 0.0
    %177 = vmatprep.subr.mxu0 0.0
    %178 = vmatpush1.msra.mxu0 0.0
    %179 = vmatprep.subr.mxu0 0.0
    %180 = vmatpush1.msra.mxu0 0.0
    %181 = vmatprep.subr.mxu0 0.0
    %182 = vmatpush1.msra.mxu0 0.0
    %183 = vmatprep.subr.mxu0 0.0
    %184 = vmatpush1.msra.mxu0 0.0
    %185 = vmatprep.subr.mxu0 0.0
    %186 = vmatpush1.msra.mxu0 0.0
    %187 = vmatprep.subr.mxu0 0.0
    %188 = vmatpush1.msra.mxu0 0.0
    %189 = vmatprep.subr.mxu0 0.0
    %190 = vmatpush1.msra.mxu0 0.0
    %191 = vmatprep.mubr.f32.mxu0 0.0
    %192 = vmatmul.mubr.f32.gmra.mrb[0].mxu0 %v115
    %v193 = vpop.f32.mrb[0].mxu0
    %v194 = vadd.f32 %v106, %v193
    %v195 = vpop.f32.mrb[0].mxu0
    %v196 = vadd.f32 %v110, %v195
    %197 = vmatprep.mubr.f32.mxu0 0.0
    %198 = vmatmul.mubr.f32.gmra.mrb[0].mxu0 %v118
    %v199 = vpop.f32.mrb[0].mxu0
    %v200 = vadd.f32 %v106, %v199
    %v201 = vpop.f32.mrb[0].mxu0
    %v202 = vadd.f32 %v110, %v201
    %203 = vdwg.mxu0
    %v204 = vld [vmem:[#allocation5] sm:$0xff]
    %v205 = vld [vmem:[#allocation5 + $0x8] sm:$0xff]
    %v206 = vld [vmem:[#allocation5 + $0x10] sm:$0xff]
    %v207 = vld [vmem:[#allocation5 + $0x18] sm:$0xff]
    %v208 = vld [vmem:[#allocation5 + $0x20] sm:$0xff]
    %v209 = vld [vmem:[#allocation5 + $0x28] sm:$0xff]
    %v210 = vld [vmem:[#allocation5 + $0x30] sm:$0xff]
    %v211 = vld [vmem:[#allocation5 + $0x38] sm:$0xff]
    %v212 = vld [vmem:[#allocation5 + $0x40] sm:$0xff]
    %v213 = vld [vmem:[#allocation5 + $0x48] sm:$0xff]
    %v214 = vld [vmem:[#allocation5 + $0x50] sm:$0xff]
    %v215 = vld [vmem:[#allocation5 + $0x58] sm:$0xff]
    %v216 = vld [vmem:[#allocation5 + $0x60] sm:$0xff]
    %v217 = vld [vmem:[#allocation5 + $0x68] sm:$0xff]
    %v218 = vld [vmem:[#allocation5 + $0x70] sm:$0xff]
    %v219 = vld [vmem:[#allocation5 + $0x78] sm:$0xff]
    %v221 = vrot.slane %v202, 6
    %vm223 = vcmask 523264
    %v225 = vsel %vm223, 0.0, 0
    %227 = vmatprep.subr.mxu0 %v205
    %228 = vmatpush1.msra.mxu0 %v204
    %229 = vmatprep.subr.mxu0 %v207
    %230 = vmatpush1.msra.mxu0 %v206
    %231 = vmatprep.subr.mxu0 %v209
    %232 = vmatpush1.msra.mxu0 %v208
    %233 = vmatprep.subr.mxu0 %v211
    %234 = vmatpush1.msra.mxu0 %v210
    %235 = vmatprep.subr.mxu0 %v213
    %236 = vmatpush1.msra.mxu0 %v212
    %237 = vmatprep.subr.mxu0 %v215
    %238 = vmatpush1.msra.mxu0 %v214
    %239 = vmatprep.subr.mxu0 %v217
    %240 = vmatpush1.msra.mxu0 %v216
    %241 = vmatprep.subr.mxu0 %v219
    %242 = vmatpush1.msra.mxu0 %v218
    %243 = vmatprep.subr.mxu0 0.0
    %244 = vmatpush1.msra.mxu0 0.0
    %245 = vmatprep.subr.mxu0 0.0
    %246 = vmatpush1.msra.mxu0 0.0
    %247 = vmatprep.subr.mxu0 0.0
    %248 = vmatpush1.msra.mxu0 0.0
    %249 = vmatprep.subr.mxu0 0.0
    %250 = vmatpush1.msra.mxu0 0.0
    %251 = vmatprep.subr.mxu0 0.0
    %252 = vmatpush1.msra.mxu0 0.0
    %253 = vmatprep.subr.mxu0 0.0
    %254 = vmatpush1.msra.mxu0 0.0
    %255 = vmatprep.subr.mxu0 0.0
    %256 = vmatpush1.msra.mxu0 0.0
    %257 = vmatprep.subr.mxu0 0.0
    %258 = vmatpush1.msra.mxu0 0.0
    %259 = vmatprep.subr.mxu0 0.0
    %260 = vmatpush1.msra.mxu0 0.0
    %261 = vmatprep.subr.mxu0 0.0
    %262 = vmatpush1.msra.mxu0 0.0
    %263 = vmatprep.subr.mxu0 0.0
    %264 = vmatpush1.msra.mxu0 0.0
    %265 = vmatprep.subr.mxu0 0.0
    %266 = vmatpush1.msra.mxu0 0.0
    %267 = vmatprep.subr.mxu0 0.0
    %268 = vmatpush1.msra.mxu0 0.0
    %269 = vmatprep.subr.mxu0 0.0
    %270 = vmatpush1.msra.mxu0 0.0
    %271 = vmatprep.subr.mxu0 0.0
    %272 = vmatpush1.msra.mxu0 0.0
    %273 = vmatprep.subr.mxu0 0.0
    %274 = vmatpush1.msra.mxu0 0.0
    %275 = vmatprep.subr.mxu0 0.0
    %276 = vmatpush1.msra.mxu0 0.0
    %277 = vmatprep.subr.mxu0 0.0
    %278 = vmatpush1.msra.mxu0 0.0
    %279 = vmatprep.subr.mxu0 0.0
    %280 = vmatpush1.msra.mxu0 0.0
    %281 = vmatprep.subr.mxu0 0.0
    %282 = vmatpush1.msra.mxu0 0.0
    %283 = vmatprep.subr.mxu0 0.0
    %284 = vmatpush1.msra.mxu0 0.0
    %285 = vmatprep.subr.mxu0 0.0
    %286 = vmatpush1.msra.mxu0 0.0
    %287 = vmatprep.subr.mxu0 0.0
    %288 = vmatpush1.msra.mxu0 0.0
    %289 = vmatprep.subr.mxu0 0.0
    %290 = vmatpush1.msra.mxu0 0.0
    %291 = vmatprep.mubr.f32.mxu0 0.0
    %292 = vmatmul.mubr.f32.gmra.mrb[0].mxu0 %v225
    %v293 = vpop.f32.mrb[0].mxu0
    %v294 = vadd.f32 0.0, %v293
    %v295 = vpop.f32.mrb[0].mxu0
    %v296 = vadd.f32 0.0, %v295
    %297 = vdwg.mxu0
    %v298 = vadd.f32 %v194, %v294
    %v299 = vadd.f32 %v221, %v296
    %v300 = vxor.u32 %v298, 2147483648
    %v301 = vxor.u32 %v299, 2147483648
    %v302 = vmul.f32 %v300, 1.442695
    %v303 = vpow.pop %v302
    %v304 = vmul.f32 %v301, 1.442695
    %v305 = vpow.pop %v304
    %v306 = vadd.f32 %v303, 1.0
    %v307 = vadd.f32 %v305, 1.0
    %v308 = vrcp.pop %v306
    %v309 = vmul.f32 1.0, %v308
    %v310 = vrcp.pop %v307
    %v311 = vmul.f32 1.0, %v310
    %v312 = vtanh.pop %v298
    %v313 = vtanh.pop %v299
    %v314 = vmul.f32 %v309, 0.0
    %316 = vrot.lane.b32.xlu0 %v312, 64
    %v317 = vpop.permute.xlu0 %316
    %v319 = vmul.f32 %v309, %v317
    %321 = vrot.lane.b32.xlu0 %v319, 32
    %v322 = vpop.permute.xlu0 %321
    %v324 = vadd.f32 %v314, %v322
    %v325 = vmul.f32 %v311, 0.0
    %327 = vrot.lane.b32.xlu0 %v313, 64
    %v328 = vpop.permute.xlu0 %327
    %v330 = vmul.f32 %v311, %v328
    %332 = vrot.lane.b32.xlu0 %v330, 32
    %v333 = vpop.permute.xlu0 %332
    %v335 = vadd.f32 %v325, %v333
    %v336 = vtanh.pop %v324
    %338 = vrot.lane.b32.xlu0 %v336, 64
    %v339 = vpop.permute.xlu0 %338
    %v341 = vmul.f32 %v309, %v339
    %v342 = vtanh.pop %v335
    %344 = vrot.lane.b32.xlu0 %v342, 64
    %v345 = vpop.permute.xlu0 %344
    %v347 = vmul.f32 %v311, %v345
    %349 = vrot.lane.b32.xlu0 %v341, 32
    %v350 = vpop.permute.xlu0 %349
    %353 = vrot.lane.b32.xlu0 %v347, 64
    %v354 = vpop.permute.xlu0 %353
    %vm356 = vcmask 261120
    %v357 = vsel %vm356, %v350, %v354
    %v358 = vrot.slane %v202, 2
    %v361 = vsel %vm223, %v357, 0
    %363 = vmatprep.subr.mxu0 %v205
    %364 = vmatpush1.msra.mxu0 %v204
    %365 = vmatprep.subr.mxu0 %v207
    %366 = vmatpush1.msra.mxu0 %v206
    %367 = vmatprep.subr.mxu0 %v209
    %368 = vmatpush1.msra.mxu0 %v208
    %369 = vmatprep.subr.mxu0 %v211
    %370 = vmatpush1.msra.mxu0 %v210
    %371 = vmatprep.subr.mxu0 %v213
    %372 = vmatpush1.msra.mxu0 %v212
    %373 = vmatprep.subr.mxu0 %v215
    %374 = vmatpush1.msra.mxu0 %v214
    %375 = vmatprep.subr.mxu0 %v217
    %376 = vmatpush1.msra.mxu0 %v216
    %377 = vmatprep.subr.mxu0 %v219
    %378 = vmatpush1.msra.mxu0 %v218
    %379 = vmatprep.subr.mxu0 0.0
    %380 = vmatpush1.msra.mxu0 0.0
    %381 = vmatprep.subr.mxu0 0.0
    %382 = vmatpush1.msra.mxu0 0.0
    %383 = vmatprep.subr.mxu0 0.0
    %384 = vmatpush1.msra.mxu0 0.0
    %385 = vmatprep.subr.mxu0 0.0
    %386 = vmatpush1.msra.mxu0 0.0
    %387 = vmatprep.subr.mxu0 0.0
    %388 = vmatpush1.msra.mxu0 0.0
    %389 = vmatprep.subr.mxu0 0.0
    %390 = vmatpush1.msra.mxu0 0.0
    %391 = vmatprep.subr.mxu0 0.0
    %392 = vmatpush1.msra.mxu0 0.0
    %393 = vmatprep.subr.mxu0 0.0
    %394 = vmatpush1.msra.mxu0 0.0
    %395 = vmatprep.subr.mxu0 0.0
    %396 = vmatpush1.msra.mxu0 0.0
    %397 = vmatprep.subr.mxu0 0.0
    %398 = vmatpush1.msra.mxu0 0.0
    %399 = vmatprep.subr.mxu0 0.0
    %400 = vmatpush1.msra.mxu0 0.0
    %401 = vmatprep.subr.mxu0 0.0
    %402 = vmatpush1.msra.mxu0 0.0
    %403 = vmatprep.subr.mxu0 0.0
    %404 = vmatpush1.msra.mxu0 0.0
    %405 = vmatprep.subr.mxu0 0.0
    %406 = vmatpush1.msra.mxu0 0.0
    %407 = vmatprep.subr.mxu0 0.0
    %408 = vmatpush1.msra.mxu0 0.0
    %409 = vmatprep.subr.mxu0 0.0
    %410 = vmatpush1.msra.mxu0 0.0
    %411 = vmatprep.subr.mxu0 0.0
    %412 = vmatpush1.msra.mxu0 0.0
    %413 = vmatprep.subr.mxu0 0.0
    %414 = vmatpush1.msra.mxu0 0.0
    %415 = vmatprep.subr.mxu0 0.0
    %416 = vmatpush1.msra.mxu0 0.0
    %417 = vmatprep.subr.mxu0 0.0
    %418 = vmatpush1.msra.mxu0 0.0
    %419 = vmatprep.subr.mxu0 0.0
    %420 = vmatpush1.msra.mxu0 0.0
    %421 = vmatprep.subr.mxu0 0.0
    %422 = vmatpush1.msra.mxu0 0.0
    %423 = vmatprep.subr.mxu0 0.0
    %424 = vmatpush1.msra.mxu0 0.0
    %425 = vmatprep.subr.mxu0 0.0
    %426 = vmatpush1.msra.mxu0 0.0
    %427 = vmatprep.mubr.f32.mxu0 0.0
    %428 = vmatmul.mubr.f32.gmra.mrb[0].mxu0 %v361
    %v429 = vpop.f32.mrb[0].mxu0
    %v430 = vadd.f32 0.0, %v429
    %v431 = vpop.f32.mrb[0].mxu0
    %v432 = vadd.f32 0.0, %v431
    %433 = vdwg.mxu0
    %v436 = vrot.slane %v430, 6
    %v437 = vrot.slane %v432, 6
    %v440 = vadd.f32 %v194, %v436
    %v441 = vadd.f32 %v358, %v437
    %v442 = vxor.u32 %v440, 2147483648
    %v443 = vxor.u32 %v441, 2147483648
    %v444 = vmul.f32 %v442, 1.442695
    %v445 = vpow.pop %v444
    %v446 = vmul.f32 %v443, 1.442695
    %v447 = vpow.pop %v446
    %v448 = vadd.f32 %v445, 1.0
    %v449 = vadd.f32 %v447, 1.0
    %v450 = vrcp.pop %v448
    %v451 = vmul.f32 1.0, %v450
    %v452 = vrcp.pop %v449
    %v453 = vmul.f32 1.0, %v452
    %v454 = vtanh.pop %v440
    %v455 = vtanh.pop %v441
    %v457 = vrot.slane %v324, 6
    %v459 = vmul.f32 %v451, %v457
    %461 = vrot.lane.b32.xlu0 %v454, 64
    %v462 = vpop.permute.xlu0 %461
    %v464 = vmul.f32 %v451, %v462
    %466 = vrot.lane.b32.xlu0 %v464, 32
    %v467 = vpop.permute.xlu0 %466
    %v469 = vadd.f32 %v459, %v467
    %v471 = vrot.slane %v335, 6
    %v473 = vmul.f32 %v453, %v471
    %475 = vrot.lane.b32.xlu0 %v455, 64
    %v476 = vpop.permute.xlu0 %475
    %v478 = vmul.f32 %v453, %v476
    %480 = vrot.lane.b32.xlu0 %v478, 32
    %v481 = vpop.permute.xlu0 %480
    %v483 = vadd.f32 %v473, %v481
    %v484 = vtanh.pop %v469
    %486 = vrot.lane.b32.xlu0 %v484, 64
    %v487 = vpop.permute.xlu0 %486
    %v489 = vmul.f32 %v451, %v487
    %v490 = vtanh.pop %v483
    %492 = vrot.lane.b32.xlu0 %v490, 64
    %v493 = vpop.permute.xlu0 %492
    %v495 = vmul.f32 %v453, %v493
    %497 = vrot.lane.b32.xlu0 %v489, 32
    %v498 = vpop.permute.xlu0 %497
    %501 = vrot.lane.b32.xlu0 %v495, 64
    %v502 = vpop.permute.xlu0 %501
    %v504 = vsel %vm356, %v498, %v502
    %v506 = vrot.slane %v504, 2
    %v507 = vsel %vm223, %v506, 0
    %509 = vmatprep.subr.mxu0 %v205
    %510 = vmatpush1.msra.mxu0 %v204
    %511 = vmatprep.subr.mxu0 %v207
    %512 = vmatpush1.msra.mxu0 %v206
    %513 = vmatprep.subr.mxu0 %v209
    %514 = vmatpush1.msra.mxu0 %v208
    %515 = vmatprep.subr.mxu0 %v211
    %516 = vmatpush1.msra.mxu0 %v210
    %517 = vmatprep.subr.mxu0 %v213
    %518 = vmatpush1.msra.mxu0 %v212
    %519 = vmatprep.subr.mxu0 %v215
    %520 = vmatpush1.msra.mxu0 %v214
    %521 = vmatprep.subr.mxu0 %v217
    %522 = vmatpush1.msra.mxu0 %v216
    %523 = vmatprep.subr.mxu0 %v219
    %524 = vmatpush1.msra.mxu0 %v218
    %525 = vmatprep.subr.mxu0 0.0
    %526 = vmatpush1.msra.mxu0 0.0
    %527 = vmatprep.subr.mxu0 0.0
    %528 = vmatpush1.msra.mxu0 0.0
    %529 = vmatprep.subr.mxu0 0.0
    %530 = vmatpush1.msra.mxu0 0.0
    %531 = vmatprep.subr.mxu0 0.0
    %532 = vmatpush1.msra.mxu0 0.0
    %533 = vmatprep.subr.mxu0 0.0
    %534 = vmatpush1.msra.mxu0 0.0
    %535 = vmatprep.subr.mxu0 0.0
    %536 = vmatpush1.msra.mxu0 0.0
    %537 = vmatprep.subr.mxu0 0.0
    %538 = vmatpush1.msra.mxu0 0.0
    %539 = vmatprep.subr.mxu0 0.0
    %540 = vmatpush1.msra.mxu0 0.0
    %541 = vmatprep.subr.mxu0 0.0
    %542 = vmatpush1.msra.mxu0 0.0
    %543 = vmatprep.subr.mxu0 0.0
    %544 = vmatpush1.msra.mxu0 0.0
    %545 = vmatprep.subr.mxu0 0.0
    %546 = vmatpush1.msra.mxu0 0.0
    %547 = vmatprep.subr.mxu0 0.0
    %548 = vmatpush1.msra.mxu0 0.0
    %549 = vmatprep.subr.mxu0 0.0
    %550 = vmatpush1.msra.mxu0 0.0
    %551 = vmatprep.subr.mxu0 0.0
    %552 = vmatpush1.msra.mxu0 0.0
    %553 = vmatprep.subr.mxu0 0.0
    %554 = vmatpush1.msra.mxu0 0.0
    %555 = vmatprep.subr.mxu0 0.0
    %556 = vmatpush1.msra.mxu0 0.0
    %557 = vmatprep.subr.mxu0 0.0
    %558 = vmatpush1.msra.mxu0 0.0
    %559 = vmatprep.subr.mxu0 0.0
    %560 = vmatpush1.msra.mxu0 0.0
    %561 = vmatprep.subr.mxu0 0.0
    %562 = vmatpush1.msra.mxu0 0.0
    %563 = vmatprep.subr.mxu0 0.0
    %564 = vmatpush1.msra.mxu0 0.0
    %565 = vmatprep.subr.mxu0 0.0
    %566 = vmatpush1.msra.mxu0 0.0
    %567 = vmatprep.subr.mxu0 0.0
    %568 = vmatpush1.msra.mxu0 0.0
    %569 = vmatprep.subr.mxu0 0.0
    %570 = vmatpush1.msra.mxu0 0.0
    %571 = vmatprep.subr.mxu0 0.0
    %572 = vmatpush1.msra.mxu0 0.0
    %573 = vmatprep.mubr.f32.mxu0 0.0
    %574 = vmatmul.mubr.f32.gmra.mrb[0].mxu0 %v507
    %v575 = vpop.f32.mrb[0].mxu0
    %v576 = vadd.f32 0.0, %v575
    %v577 = vpop.f32.mrb[0].mxu0
    %v578 = vadd.f32 0.0, %v577
    %579 = vdwg.mxu0
    %v582 = vrot.slane %v576, 4
    %v583 = vrot.slane %v578, 4
    %v586 = vadd.f32 %v194, %v582
    %v587 = vadd.f32 %v221, %v583
    %v588 = vxor.u32 %v586, 2147483648
    %v589 = vxor.u32 %v587, 2147483648
    %v590 = vmul.f32 %v588, 1.442695
    %v591 = vpow.pop %v590
    %v592 = vmul.f32 %v589, 1.442695
    %v593 = vpow.pop %v592
    %v594 = vadd.f32 %v591, 1.0
    %v595 = vadd.f32 %v593, 1.0
    %v596 = vrcp.pop %v594
    %v597 = vmul.f32 1.0, %v596
    %v598 = vrcp.pop %v595
    %v599 = vmul.f32 1.0, %v598
    %v600 = vtanh.pop %v586
    %v601 = vtanh.pop %v587
    %v603 = vrot.slane %v469, 6
    %v605 = vmul.f32 %v597, %v603
    %607 = vrot.lane.b32.xlu0 %v600, 64
    %v608 = vpop.permute.xlu0 %607
    %v610 = vmul.f32 %v597, %v608
    %612 = vrot.lane.b32.xlu0 %v610, 32
    %v613 = vpop.permute.xlu0 %612
    %v615 = vadd.f32 %v605, %v613
    %v617 = vrot.slane %v483, 6
    %v619 = vmul.f32 %v599, %v617
    %621 = vrot.lane.b32.xlu0 %v601, 64
    %v622 = vpop.permute.xlu0 %621
    %v624 = vmul.f32 %v599, %v622
    %626 = vrot.lane.b32.xlu0 %v624, 32
    %v627 = vpop.permute.xlu0 %626
    %v629 = vadd.f32 %v619, %v627
    %v630 = vtanh.pop %v615
    %632 = vrot.lane.b32.xlu0 %v630, 64
    %v633 = vpop.permute.xlu0 %632
    %v635 = vmul.f32 %v597, %v633
    %v636 = vtanh.pop %v629
    %638 = vrot.lane.b32.xlu0 %v636, 64
    %v639 = vpop.permute.xlu0 %638
    %v641 = vmul.f32 %v599, %v639
    %643 = vrot.lane.b32.xlu0 %v635, 32
    %v644 = vpop.permute.xlu0 %643
    %647 = vrot.lane.b32.xlu0 %v641, 64
    %v648 = vpop.permute.xlu0 %647
    %v650 = vsel %vm356, %v644, %v648
    %v652 = vrot.slane %v650, 4
    %v653 = vsel %vm223, %v652, 0
    %655 = vmatprep.subr.mxu0 %v205
    %656 = vmatpush1.msra.mxu0 %v204
    %657 = vmatprep.subr.mxu0 %v207
    %658 = vmatpush1.msra.mxu0 %v206
    %659 = vmatprep.subr.mxu0 %v209
    %660 = vmatpush1.msra.mxu0 %v208
    %661 = vmatprep.subr.mxu0 %v211
    %662 = vmatpush1.msra.mxu0 %v210
    %663 = vmatprep.subr.mxu0 %v213
    %664 = vmatpush1.msra.mxu0 %v212
    %665 = vmatprep.subr.mxu0 %v215
    %666 = vmatpush1.msra.mxu0 %v214
    %667 = vmatprep.subr.mxu0 %v217
    %668 = vmatpush1.msra.mxu0 %v216
    %669 = vmatprep.subr.mxu0 %v219
    %670 = vmatpush1.msra.mxu0 %v218
    %671 = vmatprep.subr.mxu0 0.0
    %672 = vmatpush1.msra.mxu0 0.0
    %673 = vmatprep.subr.mxu0 0.0
    %674 = vmatpush1.msra.mxu0 0.0
    %675 = vmatprep.subr.mxu0 0.0
    %676 = vmatpush1.msra.mxu0 0.0
    %677 = vmatprep.subr.mxu0 0.0
    %678 = vmatpush1.msra.mxu0 0.0
    %679 = vmatprep.subr.mxu0 0.0
    %680 = vmatpush1.msra.mxu0 0.0
    %681 = vmatprep.subr.mxu0 0.0
    %682 = vmatpush1.msra.mxu0 0.0
    %683 = vmatprep.subr.mxu0 0.0
    %684 = vmatpush1.msra.mxu0 0.0
    %685 = vmatprep.subr.mxu0 0.0
    %686 = vmatpush1.msra.mxu0 0.0
    %687 = vmatprep.subr.mxu0 0.0
    %688 = vmatpush1.msra.mxu0 0.0
    %689 = vmatprep.subr.mxu0 0.0
    %690 = vmatpush1.msra.mxu0 0.0
    %691 = vmatprep.subr.mxu0 0.0
    %692 = vmatpush1.msra.mxu0 0.0
    %693 = vmatprep.subr.mxu0 0.0
    %694 = vmatpush1.msra.mxu0 0.0
    %695 = vmatprep.subr.mxu0 0.0
    %696 = vmatpush1.msra.mxu0 0.0
    %697 = vmatprep.subr.mxu0 0.0
    %698 = vmatpush1.msra.mxu0 0.0
    %699 = vmatprep.subr.mxu0 0.0
    %700 = vmatpush1.msra.mxu0 0.0
    %701 = vmatprep.subr.mxu0 0.0
    %702 = vmatpush1.msra.mxu0 0.0
    %703 = vmatprep.subr.mxu0 0.0
    %704 = vmatpush1.msra.mxu0 0.0
    %705 = vmatprep.subr.mxu0 0.0
    %706 = vmatpush1.msra.mxu0 0.0
    %707 = vmatprep.subr.mxu0 0.0
    %708 = vmatpush1.msra.mxu0 0.0
    %709 = vmatprep.subr.mxu0 0.0
    %710 = vmatpush1.msra.mxu0 0.0
    %711 = vmatprep.subr.mxu0 0.0
    %712 = vmatpush1.msra.mxu0 0.0
    %713 = vmatprep.subr.mxu0 0.0
    %714 = vmatpush1.msra.mxu0 0.0
    %715 = vmatprep.subr.mxu0 0.0
    %716 = vmatpush1.msra.mxu0 0.0
    %717 = vmatprep.subr.mxu0 0.0
    %718 = vmatpush1.msra.mxu0 0.0
    %719 = vmatprep.mubr.f32.mxu0 0.0
    %720 = vmatmul.mubr.f32.gmra.mrb[0].mxu0 %v653
    %v721 = vpop.f32.mrb[0].mxu0
    %v722 = vadd.f32 0.0, %v721
    %v723 = vpop.f32.mrb[0].mxu0
    %v724 = vadd.f32 0.0, %v723
    %725 = vdwg.mxu0
    %v728 = vrot.slane %v722, 2
    %v729 = vrot.slane %v724, 2
    %v732 = vadd.f32 %v194, %v728
    %v733 = vadd.f32 %v358, %v729
    %v734 = vxor.u32 %v732, 2147483648
    %v735 = vxor.u32 %v733, 2147483648
    %v736 = vmul.f32 %v734, 1.442695
    %v737 = vpow.pop %v736
    %v738 = vmul.f32 %v735, 1.442695
    %v739 = vpow.pop %v738
    %v740 = vadd.f32 %v737, 1.0
    %v741 = vadd.f32 %v739, 1.0
    %v742 = vrcp.pop %v740
    %v743 = vmul.f32 1.0, %v742
    %v744 = vrcp.pop %v741
    %v745 = vmul.f32 1.0, %v744
    %v746 = vtanh.pop %v732
    %v747 = vtanh.pop %v733
    %v749 = vrot.slane %v615, 6
    %v751 = vmul.f32 %v743, %v749
    %753 = vrot.lane.b32.xlu0 %v746, 64
    %v754 = vpop.permute.xlu0 %753
    %v756 = vmul.f32 %v743, %v754
    %758 = vrot.lane.b32.xlu0 %v756, 32
    %v759 = vpop.permute.xlu0 %758
    %v761 = vadd.f32 %v751, %v759
    %v763 = vrot.slane %v629, 6
    %v765 = vmul.f32 %v745, %v763
    %767 = vrot.lane.b32.xlu0 %v747, 64
    %v768 = vpop.permute.xlu0 %767
    %v770 = vmul.f32 %v745, %v768
    %772 = vrot.lane.b32.xlu0 %v770, 32
    %v773 = vpop.permute.xlu0 %772
    %v775 = vadd.f32 %v765, %v773
    %v776 = vtanh.pop %v761
    %778 = vrot.lane.b32.xlu0 %v776, 64
    %v779 = vpop.permute.xlu0 %778
    %v781 = vmul.f32 %v743, %v779
    %v782 = vtanh.pop %v775
    %784 = vrot.lane.b32.xlu0 %v782, 64
    %v785 = vpop.permute.xlu0 %784
    %v787 = vmul.f32 %v745, %v785
    %789 = vrot.lane.b32.xlu0 %v781, 32
    %v790 = vpop.permute.xlu0 %789
    %793 = vrot.lane.b32.xlu0 %v787, 64
    %v794 = vpop.permute.xlu0 %793
    %v796 = vsel %vm356, %v790, %v794
    %v798 = vrot.slane %v196, 6
    %v801 = vrot.slane %v796, 6
    %v802 = vsel %vm223, %v801, 0
    %804 = vmatprep.subr.mxu0 %v205
    %805 = vmatpush1.msra.mxu0 %v204
    %806 = vmatprep.subr.mxu0 %v207
    %807 = vmatpush1.msra.mxu0 %v206
    %808 = vmatprep.subr.mxu0 %v209
    %809 = vmatpush1.msra.mxu0 %v208
    %810 = vmatprep.subr.mxu0 %v211
    %811 = vmatpush1.msra.mxu0 %v210
    %812 = vmatprep.subr.mxu0 %v213
    %813 = vmatpush1.msra.mxu0 %v212
    %814 = vmatprep.subr.mxu0 %v215
    %815 = vmatpush1.msra.mxu0 %v214
    %816 = vmatprep.subr.mxu0 %v217
    %817 = vmatpush1.msra.mxu0 %v216
    %818 = vmatprep.subr.mxu0 %v219
    %819 = vmatpush1.msra.mxu0 %v218
    %820 = vmatprep.subr.mxu0 0.0
    %821 = vmatpush1.msra.mxu0 0.0
    %822 = vmatprep.subr.mxu0 0.0
    %823 = vmatpush1.msra.mxu0 0.0
    %824 = vmatprep.subr.mxu0 0.0
    %825 = vmatpush1.msra.mxu0 0.0
    %826 = vmatprep.subr.mxu0 0.0
    %827 = vmatpush1.msra.mxu0 0.0
    %828 = vmatprep.subr.mxu0 0.0
    %829 = vmatpush1.msra.mxu0 0.0
    %830 = vmatprep.subr.mxu0 0.0
    %831 = vmatpush1.msra.mxu0 0.0
    %832 = vmatprep.subr.mxu0 0.0
    %833 = vmatpush1.msra.mxu0 0.0
    %834 = vmatprep.subr.mxu0 0.0
    %835 = vmatpush1.msra.mxu0 0.0
    %836 = vmatprep.subr.mxu0 0.0
    %837 = vmatpush1.msra.mxu0 0.0
    %838 = vmatprep.subr.mxu0 0.0
    %839 = vmatpush1.msra.mxu0 0.0
    %840 = vmatprep.subr.mxu0 0.0
    %841 = vmatpush1.msra.mxu0 0.0
    %842 = vmatprep.subr.mxu0 0.0
    %843 = vmatpush1.msra.mxu0 0.0
    %844 = vmatprep.subr.mxu0 0.0
    %845 = vmatpush1.msra.mxu0 0.0
    %846 = vmatprep.subr.mxu0 0.0
    %847 = vmatpush1.msra.mxu0 0.0
    %848 = vmatprep.subr.mxu0 0.0
    %849 = vmatpush1.msra.mxu0 0.0
    %850 = vmatprep.subr.mxu0 0.0
    %851 = vmatpush1.msra.mxu0 0.0
    %852 = vmatprep.subr.mxu0 0.0
    %853 = vmatpush1.msra.mxu0 0.0
    %854 = vmatprep.subr.mxu0 0.0
    %855 = vmatpush1.msra.mxu0 0.0
    %856 = vmatprep.subr.mxu0 0.0
    %857 = vmatpush1.msra.mxu0 0.0
    %858 = vmatprep.subr.mxu0 0.0
    %859 = vmatpush1.msra.mxu0 0.0
    %860 = vmatprep.subr.mxu0 0.0
    %861 = vmatpush1.msra.mxu0 0.0
    %862 = vmatprep.subr.mxu0 0.0
    %863 = vmatpush1.msra.mxu0 0.0
    %864 = vmatprep.subr.mxu0 0.0
    %865 = vmatpush1.msra.mxu0 0.0
    %866 = vmatprep.subr.mxu0 0.0
    %867 = vmatpush1.msra.mxu0 0.0
    %868 = vmatprep.mubr.f32.mxu0 0.0
    %869 = vmatmul.mubr.f32.gmra.mrb[0].mxu0 %v802
    %v870 = vpop.f32.mrb[0].mxu0
    %v871 = vadd.f32 0.0, %v870
    %v872 = vpop.f32.mrb[0].mxu0
    %v873 = vadd.f32 0.0, %v872
    %874 = vdwg.mxu0
    %v875 = vadd.f32 %v200, %v871
    %v876 = vadd.f32 %v798, %v873
    %v877 = vxor.u32 %v875, 2147483648
    %v878 = vxor.u32 %v876, 2147483648
    %v879 = vmul.f32 %v877, 1.442695
    %v880 = vpow.pop %v879
    %v881 = vmul.f32 %v878, 1.442695
    %v882 = vpow.pop %v881
    %v883 = vadd.f32 %v880, 1.0
    %v884 = vadd.f32 %v882, 1.0
    %v885 = vrcp.pop %v883
    %v886 = vmul.f32 1.0, %v885
    %v887 = vrcp.pop %v884
    %v888 = vmul.f32 1.0, %v887
    %v889 = vtanh.pop %v875
    %v890 = vtanh.pop %v876
    %v892 = vrot.slane %v761, 6
    %v894 = vmul.f32 %v886, %v892
    %896 = vrot.lane.b32.xlu0 %v889, 64
    %v897 = vpop.permute.xlu0 %896
    %v899 = vmul.f32 %v886, %v897
    %901 = vrot.lane.b32.xlu0 %v899, 32
    %v902 = vpop.permute.xlu0 %901
    %v904 = vadd.f32 %v894, %v902
    %v906 = vrot.slane %v775, 6
    %v908 = vmul.f32 %v888, %v906
    %910 = vrot.lane.b32.xlu0 %v890, 64
    %v911 = vpop.permute.xlu0 %910
    %v913 = vmul.f32 %v888, %v911
    %915 = vrot.lane.b32.xlu0 %v913, 32
    %v916 = vpop.permute.xlu0 %915
    %v918 = vadd.f32 %v908, %v916
    %v919 = vtanh.pop %v904
    %921 = vrot.lane.b32.xlu0 %v919, 64
    %v922 = vpop.permute.xlu0 %921
    %v924 = vmul.f32 %v886, %v922
    %v925 = vtanh.pop %v918
    %927 = vrot.lane.b32.xlu0 %v925, 64
    %v928 = vpop.permute.xlu0 %927
    %v930 = vmul.f32 %v888, %v928
    %932 = vrot.lane.b32.xlu0 %v924, 32
    %v933 = vpop.permute.xlu0 %932
    %936 = vrot.lane.b32.xlu0 %v930, 64
    %v937 = vpop.permute.xlu0 %936
    %v939 = vsel %vm356, %v933, %v937
    %v940 = vrot.slane %v196, 2
    %v943 = vsel %vm223, %v939, 0
    %945 = vmatprep.subr.mxu0 %v205
    %946 = vmatpush1.msra.mxu0 %v204
    %947 = vmatprep.subr.mxu0 %v207
    %948 = vmatpush1.msra.mxu0 %v206
    %949 = vmatprep.subr.mxu0 %v209
    %950 = vmatpush1.msra.mxu0 %v208
    %951 = vmatprep.subr.mxu0 %v211
    %952 = vmatpush1.msra.mxu0 %v210
    %953 = vmatprep.subr.mxu0 %v213
    %954 = vmatpush1.msra.mxu0 %v212
    %955 = vmatprep.subr.mxu0 %v215
    %956 = vmatpush1.msra.mxu0 %v214
    %957 = vmatprep.subr.mxu0 %v217
    %958 = vmatpush1.msra.mxu0 %v216
    %959 = vmatprep.subr.mxu0 %v219
    %960 = vmatpush1.msra.mxu0 %v218
    %961 = vmatprep.subr.mxu0 0.0
    %962 = vmatpush1.msra.mxu0 0.0
    %963 = vmatprep.subr.mxu0 0.0
    %964 = vmatpush1.msra.mxu0 0.0
    %965 = vmatprep.subr.mxu0 0.0
    %966 = vmatpush1.msra.mxu0 0.0
    %967 = vmatprep.subr.mxu0 0.0
    %968 = vmatpush1.msra.mxu0 0.0
    %969 = vmatprep.subr.mxu0 0.0
    %970 = vmatpush1.msra.mxu0 0.0
    %971 = vmatprep.subr.mxu0 0.0
    %972 = vmatpush1.msra.mxu0 0.0
    %973 = vmatprep.subr.mxu0 0.0
    %974 = vmatpush1.msra.mxu0 0.0
    %975 = vmatprep.subr.mxu0 0.0
    %976 = vmatpush1.msra.mxu0 0.0
    %977 = vmatprep.subr.mxu0 0.0
    %978 = vmatpush1.msra.mxu0 0.0
    %979 = vmatprep.subr.mxu0 0.0
    %980 = vmatpush1.msra.mxu0 0.0
    %981 = vmatprep.subr.mxu0 0.0
    %982 = vmatpush1.msra.mxu0 0.0
    %983 = vmatprep.subr.mxu0 0.0
    %984 = vmatpush1.msra.mxu0 0.0
    %985 = vmatprep.subr.mxu0 0.0
    %986 = vmatpush1.msra.mxu0 0.0
    %987 = vmatprep.subr.mxu0 0.0
    %988 = vmatpush1.msra.mxu0 0.0
    %989 = vmatprep.subr.mxu0 0.0
    %990 = vmatpush1.msra.mxu0 0.0
    %991 = vmatprep.subr.mxu0 0.0
    %992 = vmatpush1.msra.mxu0 0.0
    %993 = vmatprep.subr.mxu0 0.0
    %994 = vmatpush1.msra.mxu0 0.0
    %995 = vmatprep.subr.mxu0 0.0
    %996 = vmatpush1.msra.mxu0 0.0
    %997 = vmatprep.subr.mxu0 0.0
    %998 = vmatpush1.msra.mxu0 0.0
    %999 = vmatprep.subr.mxu0 0.0
    %1000 = vmatpush1.msra.mxu0 0.0
    %1001 = vmatprep.subr.mxu0 0.0
    %1002 = vmatpush1.msra.mxu0 0.0
    %1003 = vmatprep.subr.mxu0 0.0
    %1004 = vmatpush1.msra.mxu0 0.0
    %1005 = vmatprep.subr.mxu0 0.0
    %1006 = vmatpush1.msra.mxu0 0.0
    %1007 = vmatprep.subr.mxu0 0.0
    %1008 = vmatpush1.msra.mxu0 0.0
    %1009 = vmatprep.mubr.f32.mxu0 0.0
    %1010 = vmatmul.mubr.f32.gmra.mrb[0].mxu0 %v943
    %v1011 = vpop.f32.mrb[0].mxu0
    %v1012 = vadd.f32 0.0, %v1011
    %v1013 = vpop.f32.mrb[0].mxu0
    %v1014 = vadd.f32 0.0, %v1013
    %1015 = vdwg.mxu0
    %v1018 = vrot.slane %v1012, 6
    %v1019 = vrot.slane %v1014, 6
    %v1022 = vadd.f32 %v200, %v1018
    %v1023 = vadd.f32 %v940, %v1019
    %v1024 = vxor.u32 %v1022, 2147483648
    %v1025 = vxor.u32 %v1023, 2147483648
    %v1026 = vmul.f32 %v1024, 1.442695
    %v1027 = vpow.pop %v1026
    %v1028 = vmul.f32 %v1025, 1.442695
    %v1029 = vpow.pop %v1028
    %v1030 = vadd.f32 %v1027, 1.0
    %v1031 = vadd.f32 %v1029, 1.0
    %v1032 = vrcp.pop %v1030
    %v1033 = vmul.f32 1.0, %v1032
    %v1034 = vrcp.pop %v1031
    %v1035 = vmul.f32 1.0, %v1034
    %v1036 = vtanh.pop %v1022
    %v1037 = vtanh.pop %v1023
    %v1039 = vrot.slane %v904, 6
    %v1041 = vmul.f32 %v1033, %v1039
    %1043 = vrot.lane.b32.xlu0 %v1036, 64
    %v1044 = vpop.permute.xlu0 %1043
    %v1046 = vmul.f32 %v1033, %v1044
    %1048 = vrot.lane.b32.xlu0 %v1046, 32
    %v1049 = vpop.permute.xlu0 %1048
    %v1051 = vadd.f32 %v1041, %v1049
    %v1053 = vrot.slane %v918, 6
    %v1055 = vmul.f32 %v1035, %v1053
    %1057 = vrot.lane.b32.xlu0 %v1037, 64
    %v1058 = vpop.permute.xlu0 %1057
    %v1060 = vmul.f32 %v1035, %v1058
    %1062 = vrot.lane.b32.xlu0 %v1060, 32
    %v1063 = vpop.permute.xlu0 %1062
    %v1065 = vadd.f32 %v1055, %v1063
    %v1066 = vtanh.pop %v1051
    %1068 = vrot.lane.b32.xlu0 %v1066, 64
    %v1069 = vpop.permute.xlu0 %1068
    %v1071 = vmul.f32 %v1033, %v1069
    %v1072 = vtanh.pop %v1065
    %1074 = vrot.lane.b32.xlu0 %v1072, 64
    %v1075 = vpop.permute.xlu0 %1074
    %v1077 = vmul.f32 %v1035, %v1075
    %1079 = vrot.lane.b32.xlu0 %v1071, 32
    %v1080 = vpop.permute.xlu0 %1079
    %1083 = vrot.lane.b32.xlu0 %v1077, 64
    %v1084 = vpop.permute.xlu0 %1083
    %v1086 = vsel %vm356, %v1080, %v1084
    %v1088 = vrot.slane %v1086, 2
    %v1089 = vsel %vm223, %v1088, 0
    %1091 = vmatprep.subr.mxu0 %v205
    %1092 = vmatpush1.msra.mxu0 %v204
    %1093 = vmatprep.subr.mxu0 %v207
    %1094 = vmatpush1.msra.mxu0 %v206
    %1095 = vmatprep.subr.mxu0 %v209
    %1096 = vmatpush1.msra.mxu0 %v208
    %1097 = vmatprep.subr.mxu0 %v211
    %1098 = vmatpush1.msra.mxu0 %v210
    %1099 = vmatprep.subr.mxu0 %v213
    %1100 = vmatpush1.msra.mxu0 %v212
    %1101 = vmatprep.subr.mxu0 %v215
    %1102 = vmatpush1.msra.mxu0 %v214
    %1103 = vmatprep.subr.mxu0 %v217
    %1104 = vmatpush1.msra.mxu0 %v216
    %1105 = vmatprep.subr.mxu0 %v219
    %1106 = vmatpush1.msra.mxu0 %v218
    %1107 = vmatprep.subr.mxu0 0.0
    %1108 = vmatpush1.msra.mxu0 0.0
    %1109 = vmatprep.subr.mxu0 0.0
    %1110 = vmatpush1.msra.mxu0 0.0
    %1111 = vmatprep.subr.mxu0 0.0
    %1112 = vmatpush1.msra.mxu0 0.0
    %1113 = vmatprep.subr.mxu0 0.0
    %1114 = vmatpush1.msra.mxu0 0.0
    %1115 = vmatprep.subr.mxu0 0.0
    %1116 = vmatpush1.msra.mxu0 0.0
    %1117 = vmatprep.subr.mxu0 0.0
    %1118 = vmatpush1.msra.mxu0 0.0
    %1119 = vmatprep.subr.mxu0 0.0
    %1120 = vmatpush1.msra.mxu0 0.0
    %1121 = vmatprep.subr.mxu0 0.0
    %1122 = vmatpush1.msra.mxu0 0.0
    %1123 = vmatprep.subr.mxu0 0.0
    %1124 = vmatpush1.msra.mxu0 0.0
    %1125 = vmatprep.subr.mxu0 0.0
    %1126 = vmatpush1.msra.mxu0 0.0
    %1127 = vmatprep.subr.mxu0 0.0
    %1128 = vmatpush1.msra.mxu0 0.0
    %1129 = vmatprep.subr.mxu0 0.0
    %1130 = vmatpush1.msra.mxu0 0.0
    %1131 = vmatprep.subr.mxu0 0.0
    %1132 = vmatpush1.msra.mxu0 0.0
    %1133 = vmatprep.subr.mxu0 0.0
    %1134 = vmatpush1.msra.mxu0 0.0
    %1135 = vmatprep.subr.mxu0 0.0
    %1136 = vmatpush1.msra.mxu0 0.0
    %1137 = vmatprep.subr.mxu0 0.0
    %1138 = vmatpush1.msra.mxu0 0.0
    %1139 = vmatprep.subr.mxu0 0.0
    %1140 = vmatpush1.msra.mxu0 0.0
    %1141 = vmatprep.subr.mxu0 0.0
    %1142 = vmatpush1.msra.mxu0 0.0
    %1143 = vmatprep.subr.mxu0 0.0
    %1144 = vmatpush1.msra.mxu0 0.0
    %1145 = vmatprep.subr.mxu0 0.0
    %1146 = vmatpush1.msra.mxu0 0.0
    %1147 = vmatprep.subr.mxu0 0.0
    %1148 = vmatpush1.msra.mxu0 0.0
    %1149 = vmatprep.subr.mxu0 0.0
    %1150 = vmatpush1.msra.mxu0 0.0
    %1151 = vmatprep.subr.mxu0 0.0
    %1152 = vmatpush1.msra.mxu0 0.0
    %1153 = vmatprep.subr.mxu0 0.0
    %1154 = vmatpush1.msra.mxu0 0.0
    %1155 = vmatprep.mubr.f32.mxu0 0.0
    %1156 = vmatmul.mubr.f32.gmra.mrb[0].mxu0 %v1089
    %v1157 = vpop.f32.mrb[0].mxu0
    %v1158 = vadd.f32 0.0, %v1157
    %v1159 = vpop.f32.mrb[0].mxu0
    %v1160 = vadd.f32 0.0, %v1159
    %1161 = vdwg.mxu0
    %v1164 = vrot.slane %v1158, 4
    %v1165 = vrot.slane %v1160, 4
    %v1168 = vadd.f32 %v200, %v1164
    %v1169 = vadd.f32 %v798, %v1165
    %v1170 = vxor.u32 %v1168, 2147483648
    %v1171 = vxor.u32 %v1169, 2147483648
    %v1172 = vmul.f32 %v1170, 1.442695
    %v1173 = vpow.pop %v1172
    %v1174 = vmul.f32 %v1171, 1.442695
    %v1175 = vpow.pop %v1174
    %v1176 = vadd.f32 %v1173, 1.0
    %v1177 = vadd.f32 %v1175, 1.0
    %v1178 = vrcp.pop %v1176
    %v1179 = vmul.f32 1.0, %v1178
    %v1180 = vrcp.pop %v1177
    %v1181 = vmul.f32 1.0, %v1180
    %v1182 = vtanh.pop %v1168
    %v1183 = vtanh.pop %v1169
    %v1185 = vrot.slane %v1051, 6
    %v1187 = vmul.f32 %v1179, %v1185
    %1189 = vrot.lane.b32.xlu0 %v1182, 64
    %v1190 = vpop.permute.xlu0 %1189
    %v1192 = vmul.f32 %v1179, %v1190
    %1194 = vrot.lane.b32.xlu0 %v1192, 32
    %v1195 = vpop.permute.xlu0 %1194
    %v1197 = vadd.f32 %v1187, %v1195
    %v1199 = vrot.slane %v1065, 6
    %v1201 = vmul.f32 %v1181, %v1199
    %1203 = vrot.lane.b32.xlu0 %v1183, 64
    %v1204 = vpop.permute.xlu0 %1203
    %v1206 = vmul.f32 %v1181, %v1204
    %1208 = vrot.lane.b32.xlu0 %v1206, 32
    %v1209 = vpop.permute.xlu0 %1208
    %v1211 = vadd.f32 %v1201, %v1209
    %v1212 = vtanh.pop %v1197
    %1214 = vrot.lane.b32.xlu0 %v1212, 64
    %v1215 = vpop.permute.xlu0 %1214
    %v1217 = vmul.f32 %v1179, %v1215
    %v1218 = vtanh.pop %v1211
    %1220 = vrot.lane.b32.xlu0 %v1218, 64
    %v1221 = vpop.permute.xlu0 %1220
    %v1223 = vmul.f32 %v1181, %v1221
    %1225 = vrot.lane.b32.xlu0 %v1217, 32
    %v1226 = vpop.permute.xlu0 %1225
    %1229 = vrot.lane.b32.xlu0 %v1223, 64
    %v1230 = vpop.permute.xlu0 %1229
    %v1232 = vsel %vm356, %v1226, %v1230
    %v1234 = vrot.slane %v1232, 4
    %v1235 = vsel %vm223, %v1234, 0
    %1237 = vmatprep.subr.mxu0 %v205
    %1238 = vmatpush1.msra.mxu0 %v204
    %1239 = vmatprep.subr.mxu0 %v207
    %1240 = vmatpush1.msra.mxu0 %v206
    %1241 = vmatprep.subr.mxu0 %v209
    %1242 = vmatpush1.msra.mxu0 %v208
    %1243 = vmatprep.subr.mxu0 %v211
    %1244 = vmatpush1.msra.mxu0 %v210
    %1245 = vmatprep.subr.mxu0 %v213
    %1246 = vmatpush1.msra.mxu0 %v212
    %1247 = vmatprep.subr.mxu0 %v215
    %1248 = vmatpush1.msra.mxu0 %v214
    %1249 = vmatprep.subr.mxu0 %v217
    %1250 = vmatpush1.msra.mxu0 %v216
    %1251 = vmatprep.subr.mxu0 %v219
    %1252 = vmatpush1.msra.mxu0 %v218
    %1253 = vmatprep.subr.mxu0 0.0
    %1254 = vmatpush1.msra.mxu0 0.0
    %1255 = vmatprep.subr.mxu0 0.0
    %1256 = vmatpush1.msra.mxu0 0.0
    %1257 = vmatprep.subr.mxu0 0.0
    %1258 = vmatpush1.msra.mxu0 0.0
    %1259 = vmatprep.subr.mxu0 0.0
    %1260 = vmatpush1.msra.mxu0 0.0
    %1261 = vmatprep.subr.mxu0 0.0
    %1262 = vmatpush1.msra.mxu0 0.0
    %1263 = vmatprep.subr.mxu0 0.0
    %1264 = vmatpush1.msra.mxu0 0.0
    %1265 = vmatprep.subr.mxu0 0.0
    %1266 = vmatpush1.msra.mxu0 0.0
    %1267 = vmatprep.subr.mxu0 0.0
    %1268 = vmatpush1.msra.mxu0 0.0
    %1269 = vmatprep.subr.mxu0 0.0
    %1270 = vmatpush1.msra.mxu0 0.0
    %1271 = vmatprep.subr.mxu0 0.0
    %1272 = vmatpush1.msra.mxu0 0.0
    %1273 = vmatprep.subr.mxu0 0.0
    %1274 = vmatpush1.msra.mxu0 0.0
    %1275 = vmatprep.subr.mxu0 0.0
    %1276 = vmatpush1.msra.mxu0 0.0
    %1277 = vmatprep.subr.mxu0 0.0
    %1278 = vmatpush1.msra.mxu0 0.0
    %1279 = vmatprep.subr.mxu0 0.0
    %1280 = vmatpush1.msra.mxu0 0.0
    %1281 = vmatprep.subr.mxu0 0.0
    %1282 = vmatpush1.msra.mxu0 0.0
    %1283 = vmatprep.subr.mxu0 0.0
    %1284 = vmatpush1.msra.mxu0 0.0
    %1285 = vmatprep.subr.mxu0 0.0
    %1286 = vmatpush1.msra.mxu0 0.0
    %1287 = vmatprep.subr.mxu0 0.0
    %1288 = vmatpush1.msra.mxu0 0.0
    %1289 = vmatprep.subr.mxu0 0.0
    %1290 = vmatpush1.msra.mxu0 0.0
    %1291 = vmatprep.subr.mxu0 0.0
    %1292 = vmatpush1.msra.mxu0 0.0
    %1293 = vmatprep.subr.mxu0 0.0
    %1294 = vmatpush1.msra.mxu0 0.0
    %1295 = vmatprep.subr.mxu0 0.0
    %1296 = vmatpush1.msra.mxu0 0.0
    %1297 = vmatprep.subr.mxu0 0.0
    %1298 = vmatpush1.msra.mxu0 0.0
    %1299 = vmatprep.subr.mxu0 0.0
    %1300 = vmatpush1.msra.mxu0 0.0
    %1301 = vmatprep.mubr.f32.mxu0 0.0
    %1302 = vmatmul.mubr.f32.gmra.mrb[0].mxu0 %v1235
    %v1303 = vpop.f32.mrb[0].mxu0
    %v1304 = vadd.f32 0.0, %v1303
    %v1305 = vpop.f32.mrb[0].mxu0
    %v1306 = vadd.f32 0.0, %v1305
    %1307 = vdwg.mxu0
    %v1310 = vrot.slane %v1304, 2
    %v1311 = vrot.slane %v1306, 2
    %v1314 = vadd.f32 %v200, %v1310
    %v1315 = vadd.f32 %v940, %v1311
    %v1316 = vxor.u32 %v1314, 2147483648
    %v1317 = vxor.u32 %v1315, 2147483648
    %v1318 = vmul.f32 %v1316, 1.442695
    %v1319 = vpow.pop %v1318
    %v1320 = vmul.f32 %v1317, 1.442695
    %v1321 = vpow.pop %v1320
    %v1322 = vadd.f32 %v1319, 1.0
    %v1323 = vadd.f32 %v1321, 1.0
    %v1324 = vrcp.pop %v1322
    %v1325 = vmul.f32 1.0, %v1324
    %v1326 = vrcp.pop %v1323
    %v1327 = vmul.f32 1.0, %v1326
    %v1328 = vtanh.pop %v1314
    %v1329 = vtanh.pop %v1315
    %v1331 = vrot.slane %v1197, 6
    %v1333 = vmul.f32 %v1325, %v1331
    %1335 = vrot.lane.b32.xlu0 %v1328, 64
    %v1336 = vpop.permute.xlu0 %1335
    %v1338 = vmul.f32 %v1325, %v1336
    %1340 = vrot.lane.b32.xlu0 %v1338, 32
    %v1341 = vpop.permute.xlu0 %1340
    %v1343 = vadd.f32 %v1333, %v1341
    %v1345 = vrot.slane %v1211, 6
    %v1347 = vmul.f32 %v1327, %v1345
    %1349 = vrot.lane.b32.xlu0 %v1329, 64
    %v1350 = vpop.permute.xlu0 %1349
    %v1352 = vmul.f32 %v1327, %v1350
    %1354 = vrot.lane.b32.xlu0 %v1352, 32
    %v1355 = vpop.permute.xlu0 %1354
    %v1357 = vadd.f32 %v1347, %v1355
    %v1358 = vtanh.pop %v1343
    %1360 = vrot.lane.b32.xlu0 %v1358, 64
    %v1361 = vpop.permute.xlu0 %1360
    %v1363 = vmul.f32 %v1325, %v1361
    %v1364 = vtanh.pop %v1357
    %1366 = vrot.lane.b32.xlu0 %v1364, 64
    %v1367 = vpop.permute.xlu0 %1366
    %v1369 = vmul.f32 %v1327, %v1367
    %v1371 = vrot.slane %v1369, 6
    %1372 = vrot.lane.b32.xlu0 %v1371, 64
    %v1373 = vpop.permute.xlu0 %1372
    %v1375 = vsel %vm356, %v350, %v1373
    %v1376 = vrot.slane %v1223, 2
    %1377 = vrot.lane.b32.xlu0 %v1376, 64
    %v1378 = vpop.permute.xlu0 %1377
    %v1380 = vsel %vm356, %v498, %v1378
    %v1381 = vrot.slane %v1077, 6
    %1382 = vrot.lane.b32.xlu0 %v1381, 64
    %v1383 = vpop.permute.xlu0 %1382
    %v1385 = vsel %vm356, %v644, %v1383
    %v1386 = vrot.slane %v930, 2
    %1387 = vrot.lane.b32.xlu0 %v1386, 64
    %v1388 = vpop.permute.xlu0 %1387
    %v1390 = vsel %vm356, %v790, %v1388
    %v1391 = vrot.slane %v787, 6
    %1392 = vrot.lane.b32.xlu0 %v1391, 64
    %v1393 = vpop.permute.xlu0 %1392
    %v1395 = vsel %vm356, %v933, %v1393
    %v1396 = vrot.slane %v641, 2
    %1397 = vrot.lane.b32.xlu0 %v1396, 64
    %v1398 = vpop.permute.xlu0 %1397
    %v1400 = vsel %vm356, %v1080, %v1398
    %v1401 = vrot.slane %v495, 6
    %1402 = vrot.lane.b32.xlu0 %v1401, 64
    %v1403 = vpop.permute.xlu0 %1402
    %v1405 = vsel %vm356, %v1226, %v1403
    %1407 = vrot.lane.b32.xlu0 %v1363, 32
    %v1408 = vpop.permute.xlu0 %1407
    %v1410 = vrot.slane %v347, 2
    %1411 = vrot.lane.b32.xlu0 %v1410, 64
    %v1412 = vpop.permute.xlu0 %1411
    %v1414 = vsel %vm356, %v1408, %v1412
    %vm1415 = vcmask 1041408
    %v1416 = vsel %vm1415, %v1375, %v1380
    %vm1417 = vcmask 1043456
    %v1418 = vsel %vm1417, %v1416, %v1385
    %v1419 = vsel %vm120, %v1418, %v1390
    %v1420 = vsel %vm1415, %v1395, %v1400
    %v1421 = vsel %vm1417, %v1420, %v1405
    %v1422 = vsel %vm120, %v1421, %v1414
    %v1423 = vld [vmem:[#allocation7] sm:$0xff]
    %v1424 = vld [vmem:[#allocation7 + $0x8] sm:$0xff]
    %v1425 = vld [vmem:[#allocation7 + $0x10] sm:$0xff]
    %v1426 = vld [vmem:[#allocation7 + $0x18] sm:$0xff]
    %v1427 = vld [vmem:[#allocation7 + $0x20] sm:$0xff]
    %v1428 = vld [vmem:[#allocation7 + $0x28] sm:$0xff]
    %v1429 = vld [vmem:[#allocation7 + $0x30] sm:$0xff]
    %v1430 = vld [vmem:[#allocation7 + $0x38] sm:$0xff]
    %v1431 = vld [vmem:[#allocation7 + $0x40] sm:$0xff]
    %v1432 = vld [vmem:[#allocation7 + $0x48] sm:$0xff]
    %v1433 = vld [vmem:[#allocation7 + $0x50] sm:$0xff]
    %v1434 = vld [vmem:[#allocation7 + $0x58] sm:$0xff]
    %v1435 = vld [vmem:[#allocation7 + $0x60] sm:$0xff]
    %v1436 = vld [vmem:[#allocation7 + $0x68] sm:$0xff]
    %v1437 = vld [vmem:[#allocation7 + $0x70] sm:$0xff]
    %v1438 = vld [vmem:[#allocation7 + $0x78] sm:$0xff]
    %v1439 = vld [vmem:[%s6] sm:$0x3]
    %v1441 = vlaneseq
    %v1442 = vshrl.u32 %v1441, 7
    %v1443 = vsub.s32 0, %v1442
    %v1444 = vrot.slane %v1439, %v1443
    %v1445 = vlaneseq
    %v1446 = vshrl.u32 %v1445, 7
    %v1447 = vsub.s32 1, %v1446
    %v1448 = vrot.slane %v1439, %v1447
    %v1452 = vsel %vm223, %v1419, 0
    %v1455 = vsel %vm223, %v1422, 0
    %1457 = vmatprep.subr.mxu0 %v1424
    %1458 = vmatpush1.msra.mxu0 %v1423
    %1459 = vmatprep.subr.mxu0 %v1426
    %1460 = vmatpush1.msra.mxu0 %v1425
    %1461 = vmatprep.subr.mxu0 %v1428
    %1462 = vmatpush1.msra.mxu0 %v1427
    %1463 = vmatprep.subr.mxu0 %v1430
    %1464 = vmatpush1.msra.mxu0 %v1429
    %1465 = vmatprep.subr.mxu0 %v1432
    %1466 = vmatpush1.msra.mxu0 %v1431
    %1467 = vmatprep.subr.mxu0 %v1434
    %1468 = vmatpush1.msra.mxu0 %v1433
    %1469 = vmatprep.subr.mxu0 %v1436
    %1470 = vmatpush1.msra.mxu0 %v1435
    %1471 = vmatprep.subr.mxu0 %v1438
    %1472 = vmatpush1.msra.mxu0 %v1437
    %1473 = vmatprep.subr.mxu0 0.0
    %1474 = vmatpush1.msra.mxu0 0.0
    %1475 = vmatprep.subr.mxu0 0.0
    %1476 = vmatpush1.msra.mxu0 0.0
    %1477 = vmatprep.subr.mxu0 0.0
    %1478 = vmatpush1.msra.mxu0 0.0
    %1479 = vmatprep.subr.mxu0 0.0
    %1480 = vmatpush1.msra.mxu0 0.0
    %1481 = vmatprep.subr.mxu0 0.0
    %1482 = vmatpush1.msra.mxu0 0.0
    %1483 = vmatprep.subr.mxu0 0.0
    %1484 = vmatpush1.msra.mxu0 0.0
    %1485 = vmatprep.subr.mxu0 0.0
    %1486 = vmatpush1.msra.mxu0 0.0
    %1487 = vmatprep.subr.mxu0 0.0
    %1488 = vmatpush1.msra.mxu0 0.0
    %1489 = vmatprep.subr.mxu0 0.0
    %1490 = vmatpush1.msra.mxu0 0.0
    %1491 = vmatprep.subr.mxu0 0.0
    %1492 = vmatpush1.msra.mxu0 0.0
    %1493 = vmatprep.subr.mxu0 0.0
    %1494 = vmatpush1.msra.mxu0 0.0
    %1495 = vmatprep.subr.mxu0 0.0
    %1496 = vmatpush1.msra.mxu0 0.0
    %1497 = vmatprep.subr.mxu0 0.0
    %1498 = vmatpush1.msra.mxu0 0.0
    %1499 = vmatprep.subr.mxu0 0.0
    %1500 = vmatpush1.msra.mxu0 0.0
    %1501 = vmatprep.subr.mxu0 0.0
    %1502 = vmatpush1.msra.mxu0 0.0
    %1503 = vmatprep.subr.mxu0 0.0
    %1504 = vmatpush1.msra.mxu0 0.0
    %1505 = vmatprep.subr.mxu0 0.0
    %1506 = vmatpush1.msra.mxu0 0.0
    %1507 = vmatprep.subr.mxu0 0.0
    %1508 = vmatpush1.msra.mxu0 0.0
    %1509 = vmatprep.subr.mxu0 0.0
    %1510 = vmatpush1.msra.mxu0 0.0
    %1511 = vmatprep.subr.mxu0 0.0
    %1512 = vmatpush1.msra.mxu0 0.0
    %1513 = vmatprep.subr.mxu0 0.0
    %1514 = vmatpush1.msra.mxu0 0.0
    %1515 = vmatprep.subr.mxu0 0.0
    %1516 = vmatpush1.msra.mxu0 0.0
    %1517 = vmatprep.subr.mxu0 0.0
    %1518 = vmatpush1.msra.mxu0 0.0
    %1519 = vmatprep.subr.mxu0 0.0
    %1520 = vmatpush1.msra.mxu0 0.0
    %1521 = vmatprep.mubr.f32.mxu0 0.0
    %1522 = vmatmul.mubr.f32.gmra.mrb[0].mxu0 %v1452
    %v1523 = vpop.f32.mrb[0].mxu0
    %v1524 = vadd.f32 %v1444, %v1523
    %v1525 = vpop.f32.mrb[0].mxu0
    %v1526 = vadd.f32 %v1448, %v1525
    %1527 = vmatprep.mubr.f32.mxu0 0.0
    %1528 = vmatmul.mubr.f32.gmra.mrb[0].mxu0 %v1455
    %v1529 = vpop.f32.mrb[0].mxu0
    %v1530 = vadd.f32 %v1444, %v1529
    %v1531 = vpop.f32.mrb[0].mxu0
    %v1532 = vadd.f32 %v1448, %v1531
    %1533 = vdwg.mxu0
    %v1534 = vld [vmem:[#allocation8] sm:$0xff]
    %v1535 = vld [vmem:[#allocation8 + $0x8] sm:$0xff]
    %v1536 = vld [vmem:[#allocation8 + $0x10] sm:$0xff]
    %v1537 = vld [vmem:[#allocation8 + $0x18] sm:$0xff]
    %v1538 = vld [vmem:[#allocation8 + $0x20] sm:$0xff]
    %v1539 = vld [vmem:[#allocation8 + $0x28] sm:$0xff]
    %v1540 = vld [vmem:[#allocation8 + $0x30] sm:$0xff]
    %v1541 = vld [vmem:[#allocation8 + $0x38] sm:$0xff]
    %v1542 = vld [vmem:[#allocation8 + $0x40] sm:$0xff]
    %v1543 = vld [vmem:[#allocation8 + $0x48] sm:$0xff]
    %v1544 = vld [vmem:[#allocation8 + $0x50] sm:$0xff]
    %v1545 = vld [vmem:[#allocation8 + $0x58] sm:$0xff]
    %v1546 = vld [vmem:[#allocation8 + $0x60] sm:$0xff]
    %v1547 = vld [vmem:[#allocation8 + $0x68] sm:$0xff]
    %v1548 = vld [vmem:[#allocation8 + $0x70] sm:$0xff]
    %v1549 = vld [vmem:[#allocation8 + $0x78] sm:$0xff]
    %v1551 = vrot.slane %v1532, 6
    %1553 = vmatprep.subr.mxu0 %v1535
    %1554 = vmatpush1.msra.mxu0 %v1534
    %1555 = vmatprep.subr.mxu0 %v1537
    %1556 = vmatpush1.msra.mxu0 %v1536
    %1557 = vmatprep.subr.mxu0 %v1539
    %1558 = vmatpush1.msra.mxu0 %v1538
    %1559 = vmatprep.subr.mxu0 %v1541
    %1560 = vmatpush1.msra.mxu0 %v1540
    %1561 = vmatprep.subr.mxu0 %v1543
    %1562 = vmatpush1.msra.mxu0 %v1542
    %1563 = vmatprep.subr.mxu0 %v1545
    %1564 = vmatpush1.msra.mxu0 %v1544
    %1565 = vmatprep.subr.mxu0 %v1547
    %1566 = vmatpush1.msra.mxu0 %v1546
    %1567 = vmatprep.subr.mxu0 %v1549
    %1568 = vmatpush1.msra.mxu0 %v1548
    %1569 = vmatprep.subr.mxu0 0.0
    %1570 = vmatpush1.msra.mxu0 0.0
    %1571 = vmatprep.subr.mxu0 0.0
    %1572 = vmatpush1.msra.mxu0 0.0
    %1573 = vmatprep.subr.mxu0 0.0
    %1574 = vmatpush1.msra.mxu0 0.0
    %1575 = vmatprep.subr.mxu0 0.0
    %1576 = vmatpush1.msra.mxu0 0.0
    %1577 = vmatprep.subr.mxu0 0.0
    %1578 = vmatpush1.msra.mxu0 0.0
    %1579 = vmatprep.subr.mxu0 0.0
    %1580 = vmatpush1.msra.mxu0 0.0
    %1581 = vmatprep.subr.mxu0 0.0
    %1582 = vmatpush1.msra.mxu0 0.0
    %1583 = vmatprep.subr.mxu0 0.0
    %1584 = vmatpush1.msra.mxu0 0.0
    %1585 = vmatprep.subr.mxu0 0.0
    %1586 = vmatpush1.msra.mxu0 0.0
    %1587 = vmatprep.subr.mxu0 0.0
    %1588 = vmatpush1.msra.mxu0 0.0
    %1589 = vmatprep.subr.mxu0 0.0
    %1590 = vmatpush1.msra.mxu0 0.0
    %1591 = vmatprep.subr.mxu0 0.0
    %1592 = vmatpush1.msra.mxu0 0.0
    %1593 = vmatprep.subr.mxu0 0.0
    %1594 = vmatpush1.msra.mxu0 0.0
    %1595 = vmatprep.subr.mxu0 0.0
    %1596 = vmatpush1.msra.mxu0 0.0
    %1597 = vmatprep.subr.mxu0 0.0
    %1598 = vmatpush1.msra.mxu0 0.0
    %1599 = vmatprep.subr.mxu0 0.0
    %1600 = vmatpush1.msra.mxu0 0.0
    %1601 = vmatprep.subr.mxu0 0.0
    %1602 = vmatpush1.msra.mxu0 0.0
    %1603 = vmatprep.subr.mxu0 0.0
    %1604 = vmatpush1.msra.mxu0 0.0
    %1605 = vmatprep.subr.mxu0 0.0
    %1606 = vmatpush1.msra.mxu0 0.0
    %1607 = vmatprep.subr.mxu0 0.0
    %1608 = vmatpush1.msra.mxu0 0.0
    %1609 = vmatprep.subr.mxu0 0.0
    %1610 = vmatpush1.msra.mxu0 0.0
    %1611 = vmatprep.subr.mxu0 0.0
    %1612 = vmatpush1.msra.mxu0 0.0
    %1613 = vmatprep.subr.mxu0 0.0
    %1614 = vmatpush1.msra.mxu0 0.0
    %1615 = vmatprep.subr.mxu0 0.0
    %1616 = vmatpush1.msra.mxu0 0.0
    %1617 = vmatprep.mubr.f32.mxu0 0.0
    %1618 = vmatmul.mubr.f32.gmra.mrb[0].mxu0 %v225
    %v1619 = vpop.f32.mrb[0].mxu0
    %v1620 = vadd.f32 0.0, %v1619
    %v1621 = vpop.f32.mrb[0].mxu0
    %v1622 = vadd.f32 0.0, %v1621
    %1623 = vdwg.mxu0
    %v1624 = vadd.f32 %v1524, %v1620
    %v1625 = vadd.f32 %v1551, %v1622
    %v1626 = vxor.u32 %v1624, 2147483648
    %v1627 = vxor.u32 %v1625, 2147483648
    %v1628 = vmul.f32 %v1626, 1.442695
    %v1629 = vpow.pop %v1628
    %v1630 = vmul.f32 %v1627, 1.442695
    %v1631 = vpow.pop %v1630
    %v1632 = vadd.f32 %v1629, 1.0
    %v1633 = vadd.f32 %v1631, 1.0
    %v1634 = vrcp.pop %v1632
    %v1635 = vmul.f32 1.0, %v1634
    %v1636 = vrcp.pop %v1633
    %v1637 = vmul.f32 1.0, %v1636
    %v1638 = vtanh.pop %v1624
    %v1639 = vtanh.pop %v1625
    %v1640 = vmul.f32 %v1635, 0.0
    %1642 = vrot.lane.b32.xlu0 %v1638, 64
    %v1643 = vpop.permute.xlu0 %1642
    %v1645 = vmul.f32 %v1635, %v1643
    %1647 = vrot.lane.b32.xlu0 %v1645, 32
    %v1648 = vpop.permute.xlu0 %1647
    %v1650 = vadd.f32 %v1640, %v1648
    %v1651 = vmul.f32 %v1637, 0.0
    %1653 = vrot.lane.b32.xlu0 %v1639, 64
    %v1654 = vpop.permute.xlu0 %1653
    %v1656 = vmul.f32 %v1637, %v1654
    %1658 = vrot.lane.b32.xlu0 %v1656, 32
    %v1659 = vpop.permute.xlu0 %1658
    %v1661 = vadd.f32 %v1651, %v1659
    %v1662 = vtanh.pop %v1650
    %1664 = vrot.lane.b32.xlu0 %v1662, 64
    %v1665 = vpop.permute.xlu0 %1664
    %v1667 = vmul.f32 %v1635, %v1665
    %v1668 = vtanh.pop %v1661
    %1670 = vrot.lane.b32.xlu0 %v1668, 64
    %v1671 = vpop.permute.xlu0 %1670
    %v1673 = vmul.f32 %v1637, %v1671
    %1675 = vrot.lane.b32.xlu0 %v1667, 32
    %v1676 = vpop.permute.xlu0 %1675
    %1679 = vrot.lane.b32.xlu0 %v1673, 64
    %v1680 = vpop.permute.xlu0 %1679
    %v1682 = vsel %vm356, %v1676, %v1680
    %v1683 = vrot.slane %v1532, 2
    %v1686 = vsel %vm223, %v1682, 0
    %1688 = vmatprep.subr.mxu0 %v1535
    %1689 = vmatpush1.msra.mxu0 %v1534
    %1690 = vmatprep.subr.mxu0 %v1537
    %1691 = vmatpush1.msra.mxu0 %v1536
    %1692 = vmatprep.subr.mxu0 %v1539
    %1693 = vmatpush1.msra.mxu0 %v1538
    %1694 = vmatprep.subr.mxu0 %v1541
    %1695 = vmatpush1.msra.mxu0 %v1540
    %1696 = vmatprep.subr.mxu0 %v1543
    %1697 = vmatpush1.msra.mxu0 %v1542
    %1698 = vmatprep.subr.mxu0 %v1545
    %1699 = vmatpush1.msra.mxu0 %v1544
    %1700 = vmatprep.subr.mxu0 %v1547
    %1701 = vmatpush1.msra.mxu0 %v1546
    %1702 = vmatprep.subr.mxu0 %v1549
    %1703 = vmatpush1.msra.mxu0 %v1548
    %1704 = vmatprep.subr.mxu0 0.0
    %1705 = vmatpush1.msra.mxu0 0.0
    %1706 = vmatprep.subr.mxu0 0.0
    %1707 = vmatpush1.msra.mxu0 0.0
    %1708 = vmatprep.subr.mxu0 0.0
    %1709 = vmatpush1.msra.mxu0 0.0
    %1710 = vmatprep.subr.mxu0 0.0
    %1711 = vmatpush1.msra.mxu0 0.0
    %1712 = vmatprep.subr.mxu0 0.0
    %1713 = vmatpush1.msra.mxu0 0.0
    %1714 = vmatprep.subr.mxu0 0.0
    %1715 = vmatpush1.msra.mxu0 0.0
    %1716 = vmatprep.subr.mxu0 0.0
    %1717 = vmatpush1.msra.mxu0 0.0
    %1718 = vmatprep.subr.mxu0 0.0
    %1719 = vmatpush1.msra.mxu0 0.0
    %1720 = vmatprep.subr.mxu0 0.0
    %1721 = vmatpush1.msra.mxu0 0.0
    %1722 = vmatprep.subr.mxu0 0.0
    %1723 = vmatpush1.msra.mxu0 0.0
    %1724 = vmatprep.subr.mxu0 0.0
    %1725 = vmatpush1.msra.mxu0 0.0
    %1726 = vmatprep.subr.mxu0 0.0
    %1727 = vmatpush1.msra.mxu0 0.0
    %1728 = vmatprep.subr.mxu0 0.0
    %1729 = vmatpush1.msra.mxu0 0.0
    %1730 = vmatprep.subr.mxu0 0.0
    %1731 = vmatpush1.msra.mxu0 0.0
    %1732 = vmatprep.subr.mxu0 0.0
    %1733 = vmatpush1.msra.mxu0 0.0
    %1734 = vmatprep.subr.mxu0 0.0
    %1735 = vmatpush1.msra.mxu0 0.0
    %1736 = vmatprep.subr.mxu0 0.0
    %1737 = vmatpush1.msra.mxu0 0.0
    %1738 = vmatprep.subr.mxu0 0.0
    %1739 = vmatpush1.msra.mxu0 0.0
    %1740 = vmatprep.subr.mxu0 0.0
    %1741 = vmatpush1.msra.mxu0 0.0
    %1742 = vmatprep.subr.mxu0 0.0
    %1743 = vmatpush1.msra.mxu0 0.0
    %1744 = vmatprep.subr.mxu0 0.0
    %1745 = vmatpush1.msra.mxu0 0.0
    %1746 = vmatprep.subr.mxu0 0.0
    %1747 = vmatpush1.msra.mxu0 0.0
    %1748 = vmatprep.subr.mxu0 0.0
    %1749 = vmatpush1.msra.mxu0 0.0
    %1750 = vmatprep.subr.mxu0 0.0
    %1751 = vmatpush1.msra.mxu0 0.0
    %1752 = vmatprep.mubr.f32.mxu0 0.0
    %1753 = vmatmul.mubr.f32.gmra.mrb[0].mxu0 %v1686
    %v1754 = vpop.f32.mrb[0].mxu0
    %v1755 = vadd.f32 0.0, %v1754
    %v1756 = vpop.f32.mrb[0].mxu0
    %v1757 = vadd.f32 0.0, %v1756
    %1758 = vdwg.mxu0
    %v1761 = vrot.slane %v1755, 6
    %v1762 = vrot.slane %v1757, 6
    %v1765 = vadd.f32 %v1524, %v1761
    %v1766 = vadd.f32 %v1683, %v1762
    %v1767 = vxor.u32 %v1765, 2147483648
    %v1768 = vxor.u32 %v1766, 2147483648
    %v1769 = vmul.f32 %v1767, 1.442695
    %v1770 = vpow.pop %v1769
    %v1771 = vmul.f32 %v1768, 1.442695
    %v1772 = vpow.pop %v1771
    %v1773 = vadd.f32 %v1770, 1.0
    %v1774 = vadd.f32 %v1772, 1.0
    %v1775 = vrcp.pop %v1773
    %v1776 = vmul.f32 1.0, %v1775
    %v1777 = vrcp.pop %v1774
    %v1778 = vmul.f32 1.0, %v1777
    %v1779 = vtanh.pop %v1765
    %v1780 = vtanh.pop %v1766
    %v1782 = vrot.slane %v1650, 6
    %v1784 = vmul.f32 %v1776, %v1782
    %1786 = vrot.lane.b32.xlu0 %v1779, 64
    %v1787 = vpop.permute.xlu0 %1786
    %v1789 = vmul.f32 %v1776, %v1787
    %1791 = vrot.lane.b32.xlu0 %v1789, 32
    %v1792 = vpop.permute.xlu0 %1791
    %v1794 = vadd.f32 %v1784, %v1792
    %v1796 = vrot.slane %v1661, 6
    %v1798 = vmul.f32 %v1778, %v1796
    %1800 = vrot.lane.b32.xlu0 %v1780, 64
    %v1801 = vpop.permute.xlu0 %1800
    %v1803 = vmul.f32 %v1778, %v1801
    %1805 = vrot.lane.b32.xlu0 %v1803, 32
    %v1806 = vpop.permute.xlu0 %1805
    %v1808 = vadd.f32 %v1798, %v1806
    %v1809 = vtanh.pop %v1794
    %1811 = vrot.lane.b32.xlu0 %v1809, 64
    %v1812 = vpop.permute.xlu0 %1811
    %v1814 = vmul.f32 %v1776, %v1812
    %v1815 = vtanh.pop %v1808
    %1817 = vrot.lane.b32.xlu0 %v1815, 64
    %v1818 = vpop.permute.xlu0 %1817
    %v1820 = vmul.f32 %v1778, %v1818
    %1822 = vrot.lane.b32.xlu0 %v1814, 32
    %v1823 = vpop.permute.xlu0 %1822
    %1826 = vrot.lane.b32.xlu0 %v1820, 64
    %v1827 = vpop.permute.xlu0 %1826
    %v1829 = vsel %vm356, %v1823, %v1827
    %v1831 = vrot.slane %v1829, 2
    %v1832 = vsel %vm223, %v1831, 0
    %1834 = vmatprep.subr.mxu0 %v1535
    %1835 = vmatpush1.msra.mxu0 %v1534
    %1836 = vmatprep.subr.mxu0 %v1537
    %1837 = vmatpush1.msra.mxu0 %v1536
    %1838 = vmatprep.subr.mxu0 %v1539
    %1839 = vmatpush1.msra.mxu0 %v1538
    %1840 = vmatprep.subr.mxu0 %v1541
    %1841 = vmatpush1.msra.mxu0 %v1540
    %1842 = vmatprep.subr.mxu0 %v1543
    %1843 = vmatpush1.msra.mxu0 %v1542
    %1844 = vmatprep.subr.mxu0 %v1545
    %1845 = vmatpush1.msra.mxu0 %v1544
    %1846 = vmatprep.subr.mxu0 %v1547
    %1847 = vmatpush1.msra.mxu0 %v1546
    %1848 = vmatprep.subr.mxu0 %v1549
    %1849 = vmatpush1.msra.mxu0 %v1548
    %1850 = vmatprep.subr.mxu0 0.0
    %1851 = vmatpush1.msra.mxu0 0.0
    %1852 = vmatprep.subr.mxu0 0.0
    %1853 = vmatpush1.msra.mxu0 0.0
    %1854 = vmatprep.subr.mxu0 0.0
    %1855 = vmatpush1.msra.mxu0 0.0
    %1856 = vmatprep.subr.mxu0 0.0
    %1857 = vmatpush1.msra.mxu0 0.0
    %1858 = vmatprep.subr.mxu0 0.0
    %1859 = vmatpush1.msra.mxu0 0.0
    %1860 = vmatprep.subr.mxu0 0.0
    %1861 = vmatpush1.msra.mxu0 0.0
    %1862 = vmatprep.subr.mxu0 0.0
    %1863 = vmatpush1.msra.mxu0 0.0
    %1864 = vmatprep.subr.mxu0 0.0
    %1865 = vmatpush1.msra.mxu0 0.0
    %1866 = vmatprep.subr.mxu0 0.0
    %1867 = vmatpush1.msra.mxu0 0.0
    %1868 = vmatprep.subr.mxu0 0.0
    %1869 = vmatpush1.msra.mxu0 0.0
    %1870 = vmatprep.subr.mxu0 0.0
    %1871 = vmatpush1.msra.mxu0 0.0
    %1872 = vmatprep.subr.mxu0 0.0
    %1873 = vmatpush1.msra.mxu0 0.0
    %1874 = vmatprep.subr.mxu0 0.0
    %1875 = vmatpush1.msra.mxu0 0.0
    %1876 = vmatprep.subr.mxu0 0.0
    %1877 = vmatpush1.msra.mxu0 0.0
    %1878 = vmatprep.subr.mxu0 0.0
    %1879 = vmatpush1.msra.mxu0 0.0
    %1880 = vmatprep.subr.mxu0 0.0
    %1881 = vmatpush1.msra.mxu0 0.0
    %1882 = vmatprep.subr.mxu0 0.0
    %1883 = vmatpush1.msra.mxu0 0.0
    %1884 = vmatprep.subr.mxu0 0.0
    %1885 = vmatpush1.msra.mxu0 0.0
    %1886 = vmatprep.subr.mxu0 0.0
    %1887 = vmatpush1.msra.mxu0 0.0
    %1888 = vmatprep.subr.mxu0 0.0
    %1889 = vmatpush1.msra.mxu0 0.0
    %1890 = vmatprep.subr.mxu0 0.0
    %1891 = vmatpush1.msra.mxu0 0.0
    %1892 = vmatprep.subr.mxu0 0.0
    %1893 = vmatpush1.msra.mxu0 0.0
    %1894 = vmatprep.subr.mxu0 0.0
    %1895 = vmatpush1.msra.mxu0 0.0
    %1896 = vmatprep.subr.mxu0 0.0
    %1897 = vmatpush1.msra.mxu0 0.0
    %1898 = vmatprep.mubr.f32.mxu0 0.0
    %1899 = vmatmul.mubr.f32.gmra.mrb[0].mxu0 %v1832
    %v1900 = vpop.f32.mrb[0].mxu0
    %v1901 = vadd.f32 0.0, %v1900
    %v1902 = vpop.f32.mrb[0].mxu0
    %v1903 = vadd.f32 0.0, %v1902
    %1904 = vdwg.mxu0
    %v1907 = vrot.slane %v1901, 4
    %v1908 = vrot.slane %v1903, 4
    %v1911 = vadd.f32 %v1524, %v1907
    %v1912 = vadd.f32 %v1551, %v1908
    %v1913 = vxor.u32 %v1911, 2147483648
    %v1914 = vxor.u32 %v1912, 2147483648
    %v1915 = vmul.f32 %v1913, 1.442695
    %v1916 = vpow.pop %v1915
    %v1917 = vmul.f32 %v1914, 1.442695
    %v1918 = vpow.pop %v1917
    %v1919 = vadd.f32 %v1916, 1.0
    %v1920 = vadd.f32 %v1918, 1.0
    %v1921 = vrcp.pop %v1919
    %v1922 = vmul.f32 1.0, %v1921
    %v1923 = vrcp.pop %v1920
    %v1924 = vmul.f32 1.0, %v1923
    %v1925 = vtanh.pop %v1911
    %v1926 = vtanh.pop %v1912
    %v1928 = vrot.slane %v1794, 6
    %v1930 = vmul.f32 %v1922, %v1928
    %1932 = vrot.lane.b32.xlu0 %v1925, 64
    %v1933 = vpop.permute.xlu0 %1932
    %v1935 = vmul.f32 %v1922, %v1933
    %1937 = vrot.lane.b32.xlu0 %v1935, 32
    %v1938 = vpop.permute.xlu0 %1937
    %v1940 = vadd.f32 %v1930, %v1938
    %v1942 = vrot.slane %v1808, 6
    %v1944 = vmul.f32 %v1924, %v1942
    %1946 = vrot.lane.b32.xlu0 %v1926, 64
    %v1947 = vpop.permute.xlu0 %1946
    %v1949 = vmul.f32 %v1924, %v1947
    %1951 = vrot.lane.b32.xlu0 %v1949, 32
    %v1952 = vpop.permute.xlu0 %1951
    %v1954 = vadd.f32 %v1944, %v1952
    %v1955 = vtanh.pop %v1940
    %1957 = vrot.lane.b32.xlu0 %v1955, 64
    %v1958 = vpop.permute.xlu0 %1957
    %v1960 = vmul.f32 %v1922, %v1958
    %v1961 = vtanh.pop %v1954
    %1963 = vrot.lane.b32.xlu0 %v1961, 64
    %v1964 = vpop.permute.xlu0 %1963
    %v1966 = vmul.f32 %v1924, %v1964
    %1968 = vrot.lane.b32.xlu0 %v1960, 32
    %v1969 = vpop.permute.xlu0 %1968
    %1972 = vrot.lane.b32.xlu0 %v1966, 64
    %v1973 = vpop.permute.xlu0 %1972
    %v1975 = vsel %vm356, %v1969, %v1973
    %v1977 = vrot.slane %v1975, 4
    %v1978 = vsel %vm223, %v1977, 0
    %1980 = vmatprep.subr.mxu0 %v1535
    %1981 = vmatpush1.msra.mxu0 %v1534
    %1982 = vmatprep.subr.mxu0 %v1537
    %1983 = vmatpush1.msra.mxu0 %v1536
    %1984 = vmatprep.subr.mxu0 %v1539
    %1985 = vmatpush1.msra.mxu0 %v1538
    %1986 = vmatprep.subr.mxu0 %v1541
    %1987 = vmatpush1.msra.mxu0 %v1540
    %1988 = vmatprep.subr.mxu0 %v1543
    %1989 = vmatpush1.msra.mxu0 %v1542
    %1990 = vmatprep.subr.mxu0 %v1545
    %1991 = vmatpush1.msra.mxu0 %v1544
    %1992 = vmatprep.subr.mxu0 %v1547
    %1993 = vmatpush1.msra.mxu0 %v1546
    %1994 = vmatprep.subr.mxu0 %v1549
    %1995 = vmatpush1.msra.mxu0 %v1548
    %1996 = vmatprep.subr.mxu0 0.0
    %1997 = vmatpush1.msra.mxu0 0.0
    %1998 = vmatprep.subr.mxu0 0.0
    %1999 = vmatpush1.msra.mxu0 0.0
    %2000 = vmatprep.subr.mxu0 0.0
    %2001 = vmatpush1.msra.mxu0 0.0
    %2002 = vmatprep.subr.mxu0 0.0
    %2003 = vmatpush1.msra.mxu0 0.0
    %2004 = vmatprep.subr.mxu0 0.0
    %2005 = vmatpush1.msra.mxu0 0.0
    %2006 = vmatprep.subr.mxu0 0.0
    %2007 = vmatpush1.msra.mxu0 0.0
    %2008 = vmatprep.subr.mxu0 0.0
    %2009 = vmatpush1.msra.mxu0 0.0
    %2010 = vmatprep.subr.mxu0 0.0
    %2011 = vmatpush1.msra.mxu0 0.0
    %2012 = vmatprep.subr.mxu0 0.0
    %2013 = vmatpush1.msra.mxu0 0.0
    %2014 = vmatprep.subr.mxu0 0.0
    %2015 = vmatpush1.msra.mxu0 0.0
    %2016 = vmatprep.subr.mxu0 0.0
    %2017 = vmatpush1.msra.mxu0 0.0
    %2018 = vmatprep.subr.mxu0 0.0
    %2019 = vmatpush1.msra.mxu0 0.0
    %2020 = vmatprep.subr.mxu0 0.0
    %2021 = vmatpush1.msra.mxu0 0.0
    %2022 = vmatprep.subr.mxu0 0.0
    %2023 = vmatpush1.msra.mxu0 0.0
    %2024 = vmatprep.subr.mxu0 0.0
    %2025 = vmatpush1.msra.mxu0 0.0
    %2026 = vmatprep.subr.mxu0 0.0
    %2027 = vmatpush1.msra.mxu0 0.0
    %2028 = vmatprep.subr.mxu0 0.0
    %2029 = vmatpush1.msra.mxu0 0.0
    %2030 = vmatprep.subr.mxu0 0.0
    %2031 = vmatpush1.msra.mxu0 0.0
    %2032 = vmatprep.subr.mxu0 0.0
    %2033 = vmatpush1.msra.mxu0 0.0
    %2034 = vmatprep.subr.mxu0 0.0
    %2035 = vmatpush1.msra.mxu0 0.0
    %2036 = vmatprep.subr.mxu0 0.0
    %2037 = vmatpush1.msra.mxu0 0.0
    %2038 = vmatprep.subr.mxu0 0.0
    %2039 = vmatpush1.msra.mxu0 0.0
    %2040 = vmatprep.subr.mxu0 0.0
    %2041 = vmatpush1.msra.mxu0 0.0
    %2042 = vmatprep.subr.mxu0 0.0
    %2043 = vmatpush1.msra.mxu0 0.0
    %2044 = vmatprep.mubr.f32.mxu0 0.0
    %2045 = vmatmul.mubr.f32.gmra.mrb[0].mxu0 %v1978
    %v2046 = vpop.f32.mrb[0].mxu0
    %v2047 = vadd.f32 0.0, %v2046
    %v2048 = vpop.f32.mrb[0].mxu0
    %v2049 = vadd.f32 0.0, %v2048
    %2050 = vdwg.mxu0
    %v2053 = vrot.slane %v2047, 2
    %v2054 = vrot.slane %v2049, 2
    %v2057 = vadd.f32 %v1524, %v2053
    %v2058 = vadd.f32 %v1683, %v2054
    %v2059 = vxor.u32 %v2057, 2147483648
    %v2060 = vxor.u32 %v2058, 2147483648
    %v2061 = vmul.f32 %v2059, 1.442695
    %v2062 = vpow.pop %v2061
    %v2063 = vmul.f32 %v2060, 1.442695
    %v2064 = vpow.pop %v2063
    %v2065 = vadd.f32 %v2062, 1.0
    %v2066 = vadd.f32 %v2064, 1.0
    %v2067 = vrcp.pop %v2065
    %v2068 = vmul.f32 1.0, %v2067
    %v2069 = vrcp.pop %v2066
    %v2070 = vmul.f32 1.0, %v2069
    %v2071 = vtanh.pop %v2057
    %v2072 = vtanh.pop %v2058
    %v2074 = vrot.slane %v1940, 6
    %v2076 = vmul.f32 %v2068, %v2074
    %2078 = vrot.lane.b32.xlu0 %v2071, 64
    %v2079 = vpop.permute.xlu0 %2078
    %v2081 = vmul.f32 %v2068, %v2079
    %2083 = vrot.lane.b32.xlu0 %v2081, 32
    %v2084 = vpop.permute.xlu0 %2083
    %v2086 = vadd.f32 %v2076, %v2084
    %v2088 = vrot.slane %v1954, 6
    %v2090 = vmul.f32 %v2070, %v2088
    %2092 = vrot.lane.b32.xlu0 %v2072, 64
    %v2093 = vpop.permute.xlu0 %2092
    %v2095 = vmul.f32 %v2070, %v2093
    %2097 = vrot.lane.b32.xlu0 %v2095, 32
    %v2098 = vpop.permute.xlu0 %2097
    %v2100 = vadd.f32 %v2090, %v2098
    %v2101 = vtanh.pop %v2086
    %2103 = vrot.lane.b32.xlu0 %v2101, 64
    %v2104 = vpop.permute.xlu0 %2103
    %v2106 = vmul.f32 %v2068, %v2104
    %v2107 = vtanh.pop %v2100
    %2109 = vrot.lane.b32.xlu0 %v2107, 64
    %v2110 = vpop.permute.xlu0 %2109
    %v2112 = vmul.f32 %v2070, %v2110
    %2114 = vrot.lane.b32.xlu0 %v2106, 32
    %v2115 = vpop.permute.xlu0 %2114
    %2118 = vrot.lane.b32.xlu0 %v2112, 64
    %v2119 = vpop.permute.xlu0 %2118
    %v2121 = vsel %vm356, %v2115, %v2119
    %v2123 = vrot.slane %v1526, 6
    %v2126 = vrot.slane %v2121, 6
    %v2127 = vsel %vm223, %v2126, 0
    %2129 = vmatprep.subr.mxu0 %v1535
    %2130 = vmatpush1.msra.mxu0 %v1534
    %2131 = vmatprep.subr.mxu0 %v1537
    %2132 = vmatpush1.msra.mxu0 %v1536
    %2133 = vmatprep.subr.mxu0 %v1539
    %2134 = vmatpush1.msra.mxu0 %v1538
    %2135 = vmatprep.subr.mxu0 %v1541
    %2136 = vmatpush1.msra.mxu0 %v1540
    %2137 = vmatprep.subr.mxu0 %v1543
    %2138 = vmatpush1.msra.mxu0 %v1542
    %2139 = vmatprep.subr.mxu0 %v1545
    %2140 = vmatpush1.msra.mxu0 %v1544
    %2141 = vmatprep.subr.mxu0 %v1547
    %2142 = vmatpush1.msra.mxu0 %v1546
    %2143 = vmatprep.subr.mxu0 %v1549
    %2144 = vmatpush1.msra.mxu0 %v1548
    %2145 = vmatprep.subr.mxu0 0.0
    %2146 = vmatpush1.msra.mxu0 0.0
    %2147 = vmatprep.subr.mxu0 0.0
    %2148 = vmatpush1.msra.mxu0 0.0
    %2149 = vmatprep.subr.mxu0 0.0
    %2150 = vmatpush1.msra.mxu0 0.0
    %2151 = vmatprep.subr.mxu0 0.0
    %2152 = vmatpush1.msra.mxu0 0.0
    %2153 = vmatprep.subr.mxu0 0.0
    %2154 = vmatpush1.msra.mxu0 0.0
    %2155 = vmatprep.subr.mxu0 0.0
    %2156 = vmatpush1.msra.mxu0 0.0
    %2157 = vmatprep.subr.mxu0 0.0
    %2158 = vmatpush1.msra.mxu0 0.0
    %2159 = vmatprep.subr.mxu0 0.0
    %2160 = vmatpush1.msra.mxu0 0.0
    %2161 = vmatprep.subr.mxu0 0.0
    %2162 = vmatpush1.msra.mxu0 0.0
    %2163 = vmatprep.subr.mxu0 0.0
    %2164 = vmatpush1.msra.mxu0 0.0
    %2165 = vmatprep.subr.mxu0 0.0
    %2166 = vmatpush1.msra.mxu0 0.0
    %2167 = vmatprep.subr.mxu0 0.0
    %2168 = vmatpush1.msra.mxu0 0.0
    %2169 = vmatprep.subr.mxu0 0.0
    %2170 = vmatpush1.msra.mxu0 0.0
    %2171 = vmatprep.subr.mxu0 0.0
    %2172 = vmatpush1.msra.mxu0 0.0
    %2173 = vmatprep.subr.mxu0 0.0
    %2174 = vmatpush1.msra.mxu0 0.0
    %2175 = vmatprep.subr.mxu0 0.0
    %2176 = vmatpush1.msra.mxu0 0.0
    %2177 = vmatprep.subr.mxu0 0.0
    %2178 = vmatpush1.msra.mxu0 0.0
    %2179 = vmatprep.subr.mxu0 0.0
    %2180 = vmatpush1.msra.mxu0 0.0
    %2181 = vmatprep.subr.mxu0 0.0
    %2182 = vmatpush1.msra.mxu0 0.0
    %2183 = vmatprep.subr.mxu0 0.0
    %2184 = vmatpush1.msra.mxu0 0.0
    %2185 = vmatprep.subr.mxu0 0.0
    %2186 = vmatpush1.msra.mxu0 0.0
    %2187 = vmatprep.subr.mxu0 0.0
    %2188 = vmatpush1.msra.mxu0 0.0
    %2189 = vmatprep.subr.mxu0 0.0
    %2190 = vmatpush1.msra.mxu0 0.0
    %2191 = vmatprep.subr.mxu0 0.0
    %2192 = vmatpush1.msra.mxu0 0.0
    %2193 = vmatprep.mubr.f32.mxu0 0.0
    %2194 = vmatmul.mubr.f32.gmra.mrb[0].mxu0 %v2127
    %v2195 = vpop.f32.mrb[0].mxu0
    %v2196 = vadd.f32 0.0, %v2195
    %v2197 = vpop.f32.mrb[0].mxu0
    %v2198 = vadd.f32 0.0, %v2197
    %2199 = vdwg.mxu0
    %v2200 = vadd.f32 %v1530, %v2196
    %v2201 = vadd.f32 %v2123, %v2198
    %v2202 = vxor.u32 %v2200, 2147483648
    %v2203 = vxor.u32 %v2201, 2147483648
    %v2204 = vmul.f32 %v2202, 1.442695
    %v2205 = vpow.pop %v2204
    %v2206 = vmul.f32 %v2203, 1.442695
    %v2207 = vpow.pop %v2206
    %v2208 = vadd.f32 %v2205, 1.0
    %v2209 = vadd.f32 %v2207, 1.0
    %v2210 = vrcp.pop %v2208
    %v2211 = vmul.f32 1.0, %v2210
    %v2212 = vrcp.pop %v2209
    %v2213 = vmul.f32 1.0, %v2212
    %v2214 = vtanh.pop %v2200
    %v2215 = vtanh.pop %v2201
    %v2217 = vrot.slane %v2086, 6
    %v2219 = vmul.f32 %v2211, %v2217
    %2221 = vrot.lane.b32.xlu0 %v2214, 64
    %v2222 = vpop.permute.xlu0 %2221
    %v2224 = vmul.f32 %v2211, %v2222
    %2226 = vrot.lane.b32.xlu0 %v2224, 32
    %v2227 = vpop.permute.xlu0 %2226
    %v2229 = vadd.f32 %v2219, %v2227
    %v2231 = vrot.slane %v2100, 6
    %v2233 = vmul.f32 %v2213, %v2231
    %2235 = vrot.lane.b32.xlu0 %v2215, 64
    %v2236 = vpop.permute.xlu0 %2235
    %v2238 = vmul.f32 %v2213, %v2236
    %2240 = vrot.lane.b32.xlu0 %v2238, 32
    %v2241 = vpop.permute.xlu0 %2240
    %v2243 = vadd.f32 %v2233, %v2241
    %v2244 = vtanh.pop %v2229
    %2246 = vrot.lane.b32.xlu0 %v2244, 64
    %v2247 = vpop.permute.xlu0 %2246
    %v2249 = vmul.f32 %v2211, %v2247
    %v2250 = vtanh.pop %v2243
    %2252 = vrot.lane.b32.xlu0 %v2250, 64
    %v2253 = vpop.permute.xlu0 %2252
    %v2255 = vmul.f32 %v2213, %v2253
    %2257 = vrot.lane.b32.xlu0 %v2249, 32
    %v2258 = vpop.permute.xlu0 %2257
    %2261 = vrot.lane.b32.xlu0 %v2255, 64
    %v2262 = vpop.permute.xlu0 %2261
    %v2264 = vsel %vm356, %v2258, %v2262
    %v2265 = vrot.slane %v1526, 2
    %v2268 = vsel %vm223, %v2264, 0
    %2270 = vmatprep.subr.mxu0 %v1535
    %2271 = vmatpush1.msra.mxu0 %v1534
    %2272 = vmatprep.subr.mxu0 %v1537
    %2273 = vmatpush1.msra.mxu0 %v1536
    %2274 = vmatprep.subr.mxu0 %v1539
    %2275 = vmatpush1.msra.mxu0 %v1538
    %2276 = vmatprep.subr.mxu0 %v1541
    %2277 = vmatpush1.msra.mxu0 %v1540
    %2278 = vmatprep.subr.mxu0 %v1543
    %2279 = vmatpush1.msra.mxu0 %v1542
    %2280 = vmatprep.subr.mxu0 %v1545
    %2281 = vmatpush1.msra.mxu0 %v1544
    %2282 = vmatprep.subr.mxu0 %v1547
    %2283 = vmatpush1.msra.mxu0 %v1546
    %2284 = vmatprep.subr.mxu0 %v1549
    %2285 = vmatpush1.msra.mxu0 %v1548
    %2286 = vmatprep.subr.mxu0 0.0
    %2287 = vmatpush1.msra.mxu0 0.0
    %2288 = vmatprep.subr.mxu0 0.0
    %2289 = vmatpush1.msra.mxu0 0.0
    %2290 = vmatprep.subr.mxu0 0.0
    %2291 = vmatpush1.msra.mxu0 0.0
    %2292 = vmatprep.subr.mxu0 0.0
    %2293 = vmatpush1.msra.mxu0 0.0
    %2294 = vmatprep.subr.mxu0 0.0
    %2295 = vmatpush1.msra.mxu0 0.0
    %2296 = vmatprep.subr.mxu0 0.0
    %2297 = vmatpush1.msra.mxu0 0.0
    %2298 = vmatprep.subr.mxu0 0.0
    %2299 = vmatpush1.msra.mxu0 0.0
    %2300 = vmatprep.subr.mxu0 0.0
    %2301 = vmatpush1.msra.mxu0 0.0
    %2302 = vmatprep.subr.mxu0 0.0
    %2303 = vmatpush1.msra.mxu0 0.0
    %2304 = vmatprep.subr.mxu0 0.0
    %2305 = vmatpush1.msra.mxu0 0.0
    %2306 = vmatprep.subr.mxu0 0.0
    %2307 = vmatpush1.msra.mxu0 0.0
    %2308 = vmatprep.subr.mxu0 0.0
    %2309 = vmatpush1.msra.mxu0 0.0
    %2310 = vmatprep.subr.mxu0 0.0
    %2311 = vmatpush1.msra.mxu0 0.0
    %2312 = vmatprep.subr.mxu0 0.0
    %2313 = vmatpush1.msra.mxu0 0.0
    %2314 = vmatprep.subr.mxu0 0.0
    %2315 = vmatpush1.msra.mxu0 0.0
    %2316 = vmatprep.subr.mxu0 0.0
    %2317 = vmatpush1.msra.mxu0 0.0
    %2318 = vmatprep.subr.mxu0 0.0
    %2319 = vmatpush1.msra.mxu0 0.0
    %2320 = vmatprep.subr.mxu0 0.0
    %2321 = vmatpush1.msra.mxu0 0.0
    %2322 = vmatprep.subr.mxu0 0.0
    %2323 = vmatpush1.msra.mxu0 0.0
    %2324 = vmatprep.subr.mxu0 0.0
    %2325 = vmatpush1.msra.mxu0 0.0
    %2326 = vmatprep.subr.mxu0 0.0
    %2327 = vmatpush1.msra.mxu0 0.0
    %2328 = vmatprep.subr.mxu0 0.0
    %2329 = vmatpush1.msra.mxu0 0.0
    %2330 = vmatprep.subr.mxu0 0.0
    %2331 = vmatpush1.msra.mxu0 0.0
    %2332 = vmatprep.subr.mxu0 0.0
    %2333 = vmatpush1.msra.mxu0 0.0
    %2334 = vmatprep.mubr.f32.mxu0 0.0
    %2335 = vmatmul.mubr.f32.gmra.mrb[0].mxu0 %v2268
    %v2336 = vpop.f32.mrb[0].mxu0
    %v2337 = vadd.f32 0.0, %v2336
    %v2338 = vpop.f32.mrb[0].mxu0
    %v2339 = vadd.f32 0.0, %v2338
    %2340 = vdwg.mxu0
    %v2343 = vrot.slane %v2337, 6
    %v2344 = vrot.slane %v2339, 6
    %v2347 = vadd.f32 %v1530, %v2343
    %v2348 = vadd.f32 %v2265, %v2344
    %v2349 = vxor.u32 %v2347, 2147483648
    %v2350 = vxor.u32 %v2348, 2147483648
    %v2351 = vmul.f32 %v2349, 1.442695
    %v2352 = vpow.pop %v2351
    %v2353 = vmul.f32 %v2350, 1.442695
    %v2354 = vpow.pop %v2353
    %v2355 = vadd.f32 %v2352, 1.0
    %v2356 = vadd.f32 %v2354, 1.0
    %v2357 = vrcp.pop %v2355
    %v2358 = vmul.f32 1.0, %v2357
    %v2359 = vrcp.pop %v2356
    %v2360 = vmul.f32 1.0, %v2359
    %v2361 = vtanh.pop %v2347
    %v2362 = vtanh.pop %v2348
    %v2364 = vrot.slane %v2229, 6
    %v2366 = vmul.f32 %v2358, %v2364
    %2368 = vrot.lane.b32.xlu0 %v2361, 64
    %v2369 = vpop.permute.xlu0 %2368
    %v2371 = vmul.f32 %v2358, %v2369
    %2373 = vrot.lane.b32.xlu0 %v2371, 32
    %v2374 = vpop.permute.xlu0 %2373
    %v2376 = vadd.f32 %v2366, %v2374
    %v2378 = vrot.slane %v2243, 6
    %v2380 = vmul.f32 %v2360, %v2378
    %2382 = vrot.lane.b32.xlu0 %v2362, 64
    %v2383 = vpop.permute.xlu0 %2382
    %v2385 = vmul.f32 %v2360, %v2383
    %2387 = vrot.lane.b32.xlu0 %v2385, 32
    %v2388 = vpop.permute.xlu0 %2387
    %v2390 = vadd.f32 %v2380, %v2388
    %v2391 = vtanh.pop %v2376
    %2393 = vrot.lane.b32.xlu0 %v2391, 64
    %v2394 = vpop.permute.xlu0 %2393
    %v2396 = vmul.f32 %v2358, %v2394
    %v2397 = vtanh.pop %v2390
    %2399 = vrot.lane.b32.xlu0 %v2397, 64
    %v2400 = vpop.permute.xlu0 %2399
    %v2402 = vmul.f32 %v2360, %v2400
    %2404 = vrot.lane.b32.xlu0 %v2396, 32
    %v2405 = vpop.permute.xlu0 %2404
    %2408 = vrot.lane.b32.xlu0 %v2402, 64
    %v2409 = vpop.permute.xlu0 %2408
    %v2411 = vsel %vm356, %v2405, %v2409
    %v2413 = vrot.slane %v2411, 2
    %v2414 = vsel %vm223, %v2413, 0
    %2416 = vmatprep.subr.mxu0 %v1535
    %2417 = vmatpush1.msra.mxu0 %v1534
    %2418 = vmatprep.subr.mxu0 %v1537
    %2419 = vmatpush1.msra.mxu0 %v1536
    %2420 = vmatprep.subr.mxu0 %v1539
    %2421 = vmatpush1.msra.mxu0 %v1538
    %2422 = vmatprep.subr.mxu0 %v1541
    %2423 = vmatpush1.msra.mxu0 %v1540
    %2424 = vmatprep.subr.mxu0 %v1543
    %2425 = vmatpush1.msra.mxu0 %v1542
    %2426 = vmatprep.subr.mxu0 %v1545
    %2427 = vmatpush1.msra.mxu0 %v1544
    %2428 = vmatprep.subr.mxu0 %v1547
    %2429 = vmatpush1.msra.mxu0 %v1546
    %2430 = vmatprep.subr.mxu0 %v1549
    %2431 = vmatpush1.msra.mxu0 %v1548
    %2432 = vmatprep.subr.mxu0 0.0
    %2433 = vmatpush1.msra.mxu0 0.0
    %2434 = vmatprep.subr.mxu0 0.0
    %2435 = vmatpush1.msra.mxu0 0.0
    %2436 = vmatprep.subr.mxu0 0.0
    %2437 = vmatpush1.msra.mxu0 0.0
    %2438 = vmatprep.subr.mxu0 0.0
    %2439 = vmatpush1.msra.mxu0 0.0
    %2440 = vmatprep.subr.mxu0 0.0
    %2441 = vmatpush1.msra.mxu0 0.0
    %2442 = vmatprep.subr.mxu0 0.0
    %2443 = vmatpush1.msra.mxu0 0.0
    %2444 = vmatprep.subr.mxu0 0.0
    %2445 = vmatpush1.msra.mxu0 0.0
    %2446 = vmatprep.subr.mxu0 0.0
    %2447 = vmatpush1.msra.mxu0 0.0
    %2448 = vmatprep.subr.mxu0 0.0
    %2449 = vmatpush1.msra.mxu0 0.0
    %2450 = vmatprep.subr.mxu0 0.0
    %2451 = vmatpush1.msra.mxu0 0.0
    %2452 = vmatprep.subr.mxu0 0.0
    %2453 = vmatpush1.msra.mxu0 0.0
    %2454 = vmatprep.subr.mxu0 0.0
    %2455 = vmatpush1.msra.mxu0 0.0
    %2456 = vmatprep.subr.mxu0 0.0
    %2457 = vmatpush1.msra.mxu0 0.0
    %2458 = vmatprep.subr.mxu0 0.0
    %2459 = vmatpush1.msra.mxu0 0.0
    %2460 = vmatprep.subr.mxu0 0.0
    %2461 = vmatpush1.msra.mxu0 0.0
    %2462 = vmatprep.subr.mxu0 0.0
    %2463 = vmatpush1.msra.mxu0 0.0
    %2464 = vmatprep.subr.mxu0 0.0
    %2465 = vmatpush1.msra.mxu0 0.0
    %2466 = vmatprep.subr.mxu0 0.0
    %2467 = vmatpush1.msra.mxu0 0.0
    %2468 = vmatprep.subr.mxu0 0.0
    %2469 = vmatpush1.msra.mxu0 0.0
    %2470 = vmatprep.subr.mxu0 0.0
    %2471 = vmatpush1.msra.mxu0 0.0
    %2472 = vmatprep.subr.mxu0 0.0
    %2473 = vmatpush1.msra.mxu0 0.0
    %2474 = vmatprep.subr.mxu0 0.0
    %2475 = vmatpush1.msra.mxu0 0.0
    %2476 = vmatprep.subr.mxu0 0.0
    %2477 = vmatpush1.msra.mxu0 0.0
    %2478 = vmatprep.subr.mxu0 0.0
    %2479 = vmatpush1.msra.mxu0 0.0
    %2480 = vmatprep.mubr.f32.mxu0 0.0
    %2481 = vmatmul.mubr.f32.gmra.mrb[0].mxu0 %v2414
    %v2482 = vpop.f32.mrb[0].mxu0
    %v2483 = vadd.f32 0.0, %v2482
    %v2484 = vpop.f32.mrb[0].mxu0
    %v2485 = vadd.f32 0.0, %v2484
    %2486 = vdwg.mxu0
    %v2489 = vrot.slane %v2483, 4
    %v2490 = vrot.slane %v2485, 4
    %v2493 = vadd.f32 %v1530, %v2489
    %v2494 = vadd.f32 %v2123, %v2490
    %v2495 = vxor.u32 %v2493, 2147483648
    %v2496 = vxor.u32 %v2494, 2147483648
    %v2497 = vmul.f32 %v2495, 1.442695
    %v2498 = vpow.pop %v2497
    %v2499 = vmul.f32 %v2496, 1.442695
    %v2500 = vpow.pop %v2499
    %v2501 = vadd.f32 %v2498, 1.0
    %v2502 = vadd.f32 %v2500, 1.0
    %v2503 = vrcp.pop %v2501
    %v2504 = vmul.f32 1.0, %v2503
    %v2505 = vrcp.pop %v2502
    %v2506 = vmul.f32 1.0, %v2505
    %v2507 = vtanh.pop %v2493
    %v2508 = vtanh.pop %v2494
    %v2510 = vrot.slane %v2376, 6
    %v2512 = vmul.f32 %v2504, %v2510
    %2514 = vrot.lane.b32.xlu0 %v2507, 64
    %v2515 = vpop.permute.xlu0 %2514
    %v2517 = vmul.f32 %v2504, %v2515
    %2519 = vrot.lane.b32.xlu0 %v2517, 32
    %v2520 = vpop.permute.xlu0 %2519
    %v2522 = vadd.f32 %v2512, %v2520
    %v2524 = vrot.slane %v2390, 6
    %v2526 = vmul.f32 %v2506, %v2524
    %2528 = vrot.lane.b32.xlu0 %v2508, 64
    %v2529 = vpop.permute.xlu0 %2528
    %v2531 = vmul.f32 %v2506, %v2529
    %2533 = vrot.lane.b32.xlu0 %v2531, 32
    %v2534 = vpop.permute.xlu0 %2533
    %v2536 = vadd.f32 %v2526, %v2534
    %v2537 = vtanh.pop %v2522
    %2539 = vrot.lane.b32.xlu0 %v2537, 64
    %v2540 = vpop.permute.xlu0 %2539
    %v2542 = vmul.f32 %v2504, %v2540
    %v2543 = vtanh.pop %v2536
    %2545 = vrot.lane.b32.xlu0 %v2543, 64
    %v2546 = vpop.permute.xlu0 %2545
    %v2548 = vmul.f32 %v2506, %v2546
    %2550 = vrot.lane.b32.xlu0 %v2542, 32
    %v2551 = vpop.permute.xlu0 %2550
    %2554 = vrot.lane.b32.xlu0 %v2548, 64
    %v2555 = vpop.permute.xlu0 %2554
    %v2557 = vsel %vm356, %v2551, %v2555
    %v2559 = vrot.slane %v2557, 4
    %v2560 = vsel %vm223, %v2559, 0
    %2562 = vmatprep.subr.mxu0 %v1535
    %2563 = vmatpush1.msra.mxu0 %v1534
    %2564 = vmatprep.subr.mxu0 %v1537
    %2565 = vmatpush1.msra.mxu0 %v1536
    %2566 = vmatprep.subr.mxu0 %v1539
    %2567 = vmatpush1.msra.mxu0 %v1538
    %2568 = vmatprep.subr.mxu0 %v1541
    %2569 = vmatpush1.msra.mxu0 %v1540
    %2570 = vmatprep.subr.mxu0 %v1543
    %2571 = vmatpush1.msra.mxu0 %v1542
    %2572 = vmatprep.subr.mxu0 %v1545
    %2573 = vmatpush1.msra.mxu0 %v1544
    %2574 = vmatprep.subr.mxu0 %v1547
    %2575 = vmatpush1.msra.mxu0 %v1546
    %2576 = vmatprep.subr.mxu0 %v1549
    %2577 = vmatpush1.msra.mxu0 %v1548
    %2578 = vmatprep.subr.mxu0 0.0
    %2579 = vmatpush1.msra.mxu0 0.0
    %2580 = vmatprep.subr.mxu0 0.0
    %2581 = vmatpush1.msra.mxu0 0.0
    %2582 = vmatprep.subr.mxu0 0.0
    %2583 = vmatpush1.msra.mxu0 0.0
    %2584 = vmatprep.subr.mxu0 0.0
    %2585 = vmatpush1.msra.mxu0 0.0
    %2586 = vmatprep.subr.mxu0 0.0
    %2587 = vmatpush1.msra.mxu0 0.0
    %2588 = vmatprep.subr.mxu0 0.0
    %2589 = vmatpush1.msra.mxu0 0.0
    %2590 = vmatprep.subr.mxu0 0.0
    %2591 = vmatpush1.msra.mxu0 0.0
    %2592 = vmatprep.subr.mxu0 0.0
    %2593 = vmatpush1.msra.mxu0 0.0
    %2594 = vmatprep.subr.mxu0 0.0
    %2595 = vmatpush1.msra.mxu0 0.0
    %2596 = vmatprep.subr.mxu0 0.0
    %2597 = vmatpush1.msra.mxu0 0.0
    %2598 = vmatprep.subr.mxu0 0.0
    %2599 = vmatpush1.msra.mxu0 0.0
    %2600 = vmatprep.subr.mxu0 0.0
    %2601 = vmatpush1.msra.mxu0 0.0
    %2602 = vmatprep.subr.mxu0 0.0
    %2603 = vmatpush1.msra.mxu0 0.0
    %2604 = vmatprep.subr.mxu0 0.0
    %2605 = vmatpush1.msra.mxu0 0.0
    %2606 = vmatprep.subr.mxu0 0.0
    %2607 = vmatpush1.msra.mxu0 0.0
    %2608 = vmatprep.subr.mxu0 0.0
    %2609 = vmatpush1.msra.mxu0 0.0
    %2610 = vmatprep.subr.mxu0 0.0
    %2611 = vmatpush1.msra.mxu0 0.0
    %2612 = vmatprep.subr.mxu0 0.0
    %2613 = vmatpush1.msra.mxu0 0.0
    %2614 = vmatprep.subr.mxu0 0.0
    %2615 = vmatpush1.msra.mxu0 0.0
    %2616 = vmatprep.subr.mxu0 0.0
    %2617 = vmatpush1.msra.mxu0 0.0
    %2618 = vmatprep.subr.mxu0 0.0
    %2619 = vmatpush1.msra.mxu0 0.0
    %2620 = vmatprep.subr.mxu0 0.0
    %2621 = vmatpush1.msra.mxu0 0.0
    %2622 = vmatprep.subr.mxu0 0.0
    %2623 = vmatpush1.msra.mxu0 0.0
    %2624 = vmatprep.subr.mxu0 0.0
    %2625 = vmatpush1.msra.mxu0 0.0
    %2626 = vmatprep.mubr.f32.mxu0 0.0
    %2627 = vmatmul.mubr.f32.gmra.mrb[0].mxu0 %v2560
    %v2628 = vpop.f32.mrb[0].mxu0
    %v2629 = vadd.f32 0.0, %v2628
    %v2630 = vpop.f32.mrb[0].mxu0
    %v2631 = vadd.f32 0.0, %v2630
    %2632 = vdwg.mxu0
    %v2635 = vrot.slane %v2629, 2
    %v2636 = vrot.slane %v2631, 2
    %v2639 = vadd.f32 %v1530, %v2635
    %v2640 = vadd.f32 %v2265, %v2636
    %v2641 = vxor.u32 %v2639, 2147483648
    %v2642 = vxor.u32 %v2640, 2147483648
    %v2643 = vmul.f32 %v2641, 1.442695
    %v2644 = vpow.pop %v2643
    %v2645 = vmul.f32 %v2642, 1.442695
    %v2646 = vpow.pop %v2645
    %v2647 = vadd.f32 %v2644, 1.0
    %v2648 = vadd.f32 %v2646, 1.0
    %v2649 = vrcp.pop %v2647
    %v2650 = vmul.f32 1.0, %v2649
    %v2651 = vrcp.pop %v2648
    %v2652 = vmul.f32 1.0, %v2651
    %v2653 = vtanh.pop %v2639
    %v2654 = vtanh.pop %v2640
    %v2656 = vrot.slane %v2522, 6
    %v2658 = vmul.f32 %v2650, %v2656
    %2660 = vrot.lane.b32.xlu0 %v2653, 64
    %v2661 = vpop.permute.xlu0 %2660
    %v2663 = vmul.f32 %v2650, %v2661
    %2665 = vrot.lane.b32.xlu0 %v2663, 32
    %v2666 = vpop.permute.xlu0 %2665
    %v2668 = vadd.f32 %v2658, %v2666
    %v2670 = vrot.slane %v2536, 6
    %v2672 = vmul.f32 %v2652, %v2670
    %2674 = vrot.lane.b32.xlu0 %v2654, 64
    %v2675 = vpop.permute.xlu0 %2674
    %v2677 = vmul.f32 %v2652, %v2675
    %2679 = vrot.lane.b32.xlu0 %v2677, 32
    %v2680 = vpop.permute.xlu0 %2679
    %v2682 = vadd.f32 %v2672, %v2680
    %v2683 = vtanh.pop %v2668
    %2685 = vrot.lane.b32.xlu0 %v2683, 64
    %v2686 = vpop.permute.xlu0 %2685
    %v2688 = vmul.f32 %v2650, %v2686
    %v2689 = vtanh.pop %v2682
    %2691 = vrot.lane.b32.xlu0 %v2689, 64
    %v2692 = vpop.permute.xlu0 %2691
    %v2694 = vmul.f32 %v2652, %v2692
    %v2696 = vrot.slane %v2694, 6
    %2697 = vrot.lane.b32.xlu0 %v2696, 64
    %v2698 = vpop.permute.xlu0 %2697
    %v2700 = vsel %vm356, %v1676, %v2698
    %v2701 = vrot.slane %v2548, 2
    %2702 = vrot.lane.b32.xlu0 %v2701, 64
    %v2703 = vpop.permute.xlu0 %2702
    %v2705 = vsel %vm356, %v1823, %v2703
    %v2706 = vrot.slane %v2402, 6
    %2707 = vrot.lane.b32.xlu0 %v2706, 64
    %v2708 = vpop.permute.xlu0 %2707
    %v2710 = vsel %vm356, %v1969, %v2708
    %v2711 = vrot.slane %v2255, 2
    %2712 = vrot.lane.b32.xlu0 %v2711, 64
    %v2713 = vpop.permute.xlu0 %2712
    %v2715 = vsel %vm356, %v2115, %v2713
    %v2716 = vrot.slane %v2112, 6
    %2717 = vrot.lane.b32.xlu0 %v2716, 64
    %v2718 = vpop.permute.xlu0 %2717
    %v2720 = vsel %vm356, %v2258, %v2718
    %v2721 = vrot.slane %v1966, 2
    %2722 = vrot.lane.b32.xlu0 %v2721, 64
    %v2723 = vpop.permute.xlu0 %2722
    %v2725 = vsel %vm356, %v2405, %v2723
    %v2726 = vrot.slane %v1820, 6
    %2727 = vrot.lane.b32.xlu0 %v2726, 64
    %v2728 = vpop.permute.xlu0 %2727
    %v2730 = vsel %vm356, %v2551, %v2728
    %2732 = vrot.lane.b32.xlu0 %v2688, 32
    %v2733 = vpop.permute.xlu0 %2732
    %v2735 = vrot.slane %v1673, 2
    %2736 = vrot.lane.b32.xlu0 %v2735, 64
    %v2737 = vpop.permute.xlu0 %2736
    %v2739 = vsel %vm356, %v2733, %v2737
    %v2740 = vsel %vm1415, %v2700, %v2705
    %v2741 = vsel %vm1417, %v2740, %v2710
    %v2742 = vsel %vm120, %v2741, %v2715
    %v2743 = vsel %vm1415, %v2720, %v2725
    %v2744 = vsel %vm1417, %v2743, %v2730
    %v2745 = vsel %vm120, %v2744, %v2739
    %v2746 = vld [vmem:[%s7] sm:$0xff]
    %v2747 = vld [vmem:[%s7 + $0x8] sm:$0xff]
    %v2748 = vld [vmem:[%s7 + $0x10] sm:$0xff]
    %v2749 = vld [vmem:[%s7 + $0x18] sm:$0xff]
    %v2750 = vld [vmem:[%s7 + $0x20] sm:$0xff]
    %v2751 = vld [vmem:[%s7 + $0x28] sm:$0xff]
    %v2752 = vld [vmem:[%s7 + $0x30] sm:$0xff]
    %v2753 = vld [vmem:[%s7 + $0x38] sm:$0xff]
    %v2754 = vld [vmem:[#allocation2] sm:$0x1]
    %v2756 = vlaneseq
    %v2757 = vshrl.u32 %v2756, 7
    %v2758 = vsub.s32 0, %v2757
    %v2759 = vrot.slane %v2754, %v2758
    %v2762 = vsel %vm223, %v2742, 0
    %v2765 = vsel %vm223, %v2745, 0
    %2767 = vmatprep.subr.mxu0 0.0
    %2768 = vmatpush1.msra.mxu0 %v2746
    %2769 = vmatprep.subr.mxu0 0.0
    %2770 = vmatpush1.msra.mxu0 %v2747
    %2771 = vmatprep.subr.mxu0 0.0
    %2772 = vmatpush1.msra.mxu0 %v2748
    %2773 = vmatprep.subr.mxu0 0.0
    %2774 = vmatpush1.msra.mxu0 %v2749
    %2775 = vmatprep.subr.mxu0 0.0
    %2776 = vmatpush1.msra.mxu0 %v2750
    %2777 = vmatprep.subr.mxu0 0.0
    %2778 = vmatpush1.msra.mxu0 %v2751
    %2779 = vmatprep.subr.mxu0 0.0
    %2780 = vmatpush1.msra.mxu0 %v2752
    %2781 = vmatprep.subr.mxu0 0.0
    %2782 = vmatpush1.msra.mxu0 %v2753
    %2783 = vmatprep.subr.mxu0 0.0
    %2784 = vmatpush1.msra.mxu0 0.0
    %2785 = vmatprep.subr.mxu0 0.0
    %2786 = vmatpush1.msra.mxu0 0.0
    %2787 = vmatprep.subr.mxu0 0.0
    %2788 = vmatpush1.msra.mxu0 0.0
    %2789 = vmatprep.subr.mxu0 0.0
    %2790 = vmatpush1.msra.mxu0 0.0
    %2791 = vmatprep.subr.mxu0 0.0
    %2792 = vmatpush1.msra.mxu0 0.0
    %2793 = vmatprep.subr.mxu0 0.0
    %2794 = vmatpush1.msra.mxu0 0.0
    %2795 = vmatprep.subr.mxu0 0.0
    %2796 = vmatpush1.msra.mxu0 0.0
    %2797 = vmatprep.subr.mxu0 0.0
    %2798 = vmatpush1.msra.mxu0 0.0
    %2799 = vmatprep.subr.mxu0 0.0
    %2800 = vmatpush1.msra.mxu0 0.0
    %2801 = vmatprep.subr.mxu0 0.0
    %2802 = vmatpush1.msra.mxu0 0.0
    %2803 = vmatprep.subr.mxu0 0.0
    %2804 = vmatpush1.msra.mxu0 0.0
    %2805 = vmatprep.subr.mxu0 0.0
    %2806 = vmatpush1.msra.mxu0 0.0
    %2807 = vmatprep.subr.mxu0 0.0
    %2808 = vmatpush1.msra.mxu0 0.0
    %2809 = vmatprep.subr.mxu0 0.0
    %2810 = vmatpush1.msra.mxu0 0.0
    %2811 = vmatprep.subr.mxu0 0.0
    %2812 = vmatpush1.msra.mxu0 0.0
    %2813 = vmatprep.subr.mxu0 0.0
    %2814 = vmatpush1.msra.mxu0 0.0
    %2815 = vmatprep.subr.mxu0 0.0
    %2816 = vmatpush1.msra.mxu0 0.0
    %2817 = vmatprep.subr.mxu0 0.0
    %2818 = vmatpush1.msra.mxu0 0.0
    %2819 = vmatprep.subr.mxu0 0.0
    %2820 = vmatpush1.msra.mxu0 0.0
    %2821 = vmatprep.subr.mxu0 0.0
    %2822 = vmatpush1.msra.mxu0 0.0
    %2823 = vmatprep.subr.mxu0 0.0
    %2824 = vmatpush1.msra.mxu0 0.0
    %2825 = vmatprep.subr.mxu0 0.0
    %2826 = vmatpush1.msra.mxu0 0.0
    %2827 = vmatprep.subr.mxu0 0.0
    %2828 = vmatpush1.msra.mxu0 0.0
    %2829 = vmatprep.subr.mxu0 0.0
    %2830 = vmatpush1.msra.mxu0 0.0
    %2831 = vmatprep.mubr.f32.mxu0 0.0
    %2832 = vmatmul.mubr.f32.gmra.mrb[0].mxu0 %v2762
    %v2833 = vpop.f32.mrb[0].mxu0
    %v2834 = vadd.f32 %v2759, %v2833
    %v2835 = vpop.f32.mrb[0].mxu0
    %2836 = vmatprep.mubr.f32.mxu0 0.0
    %2837 = vmatmul.mubr.f32.gmra.mrb[0].mxu0 %v2765
    %v2838 = vpop.f32.mrb[0].mxu0
    %v2839 = vadd.f32 %v2759, %v2838
    %v2840 = vpop.f32.mrb[0].mxu0
    %2841 = vdwg.mxu0
    %vm2842 = vcmask 7168
    %2843 = vst.msk [vmem:[%s9] sm:$0xff] %vm2842, %v2834
    %2844 = vst.msk [vmem:[%s9 + $0x8] sm:$0xff] %vm2842, %v2839
    // Predicated region
    $region54: #{tpu_custom_call.1} parent=1 // pred_check
      _
    $region55: #{tpu_custom_call.1} parent=1 // pred_check_branch
      %2846 = sbr.rel (0) target = $region57
    $region56: #{tpu_custom_call.1} parent=1 // pred_region
      _
    $region57: #{tpu_custom_call.1} parent=1 // pred_fallthru
      _
    // Predicated region
    $region58: #{tpu_custom_call.1} parent=1 // pred_check
      _
    $region59: #{tpu_custom_call.1} parent=1 // pred_check_branch
      %2848 = sbr.rel (0) target = $region61
    $region60: #{tpu_custom_call.1} parent=1 // pred_region
      _
    $region61: #{tpu_custom_call.1} parent=1 // pred_fallthru
      _
    %2849 = vsyncpa [#allocation4], 1
    %2850 = vsyncpa [#allocation6], 1
    %2851 = vsyncpa [#allocation9], 1

</llo_original>
